<compile_context>
chip_gen: v7x
topology: tpu7x:2x2x1
jax: 0.10.0
libtpu: 0.0.40
codegen_flags: <defaults>
</compile_context>

<pallas_src>
import functools

import jax
import jax.numpy as jnp
from jax import lax
from jax.experimental import pallas as pl
from jax.experimental.pallas import tpu as pltpu

_LANE = 128


def _lstm_fc_kernel(xt_ref, wih_hi_ref, wih_lo_ref, whh_hi_ref, whh_lo_ref,
                    b_ref, wfc_ref, bfc_ref, out_ref, xg_sc,
                    *, hidden, seq_len, batch, unroll):
    """Single-invocation LSTM recurrence + FC head.

    xt_ref   : (T, B, In)   time-major input, VMEM resident
    wih_*_ref: (In, 4Hp)    bf16 hi/lo pair (lane-aligned, gate order [i,f,o,g])
    whh_*_ref: (Hp, 4Hp)    bf16 hi/lo pair
    b_ref    : (1, 4Hp)     b_ih + b_hh (f32)
    wfc_ref  : (Hp, Op)     lane-dense FC weights (f32, Op >= 128)
    bfc_ref  : (1, Op)
    out_ref  : (B, Op)      padded logits
    xg_sc    : (T, B, 4Hp)  scratch: hoisted input projection for all steps
    """
    H = hidden
    T = seq_len
    B = batch
    In = xt_ref.shape[-1]
    f32 = jnp.float32

    def dot_hilo(a_f32, w_hi_ref, w_lo_ref):
        # a @ W with W ~= W_hi + W_lo (bf16 pair): three bf16 MXU passes with
        # f32 accumulation; residual ~2^-16 relative per product.
        a_hi = a_f32.astype(jnp.bfloat16)
        a_lo = (a_f32 - a_hi.astype(f32)).astype(jnp.bfloat16)
        return (jnp.dot(a_hi, w_hi_ref[...], preferred_element_type=f32)
                + jnp.dot(a_lo, w_hi_ref[...], preferred_element_type=f32)
                + jnp.dot(a_hi, w_lo_ref[...], preferred_element_type=f32))

    # ---- hoisted input projection: all T*B rows in one (3-pass) MXU matmul --
    x_all = xt_ref[...].reshape(T * B, In)
    xg = dot_hilo(x_all, wih_hi_ref, wih_lo_ref) + b_ref[...]     # (T*B, 4Hp)
    xg_sc[...] = xg.reshape(T, B, 4 * H)

    # ---- sequential recurrence: only h @ W_hh per step ----------------------
    def step(t, carry):
        h, c = carry
        gates = xg_sc[t] + dot_hilo(h, whh_hi_ref, whh_lo_ref)    # (B, 4Hp)
        # gate layout (reordered in the wrapper): [i, f, o, g]
        sig = jax.nn.sigmoid(gates[:, :3 * H])     # one wide EUP launch
        i = sig[:, 0 * H:1 * H]
        f = sig[:, 1 * H:2 * H]
        o = sig[:, 2 * H:3 * H]
        g = jnp.tanh(gates[:, 3 * H:4 * H])        # second EUP launch
        c_new = f * c + i * g
        h_new = o * jnp.tanh(c_new)
        return h_new, c_new

    h0 = jnp.zeros((B, H), f32)
    c0 = jnp.zeros((B, H), f32)
    h_last, _ = lax.fori_loop(0, T, step, (h0, c0), unroll=unroll)

    # ---- lane-dense FC head (kept f32: tiny and precision-sensitive) --------
    out_ref[...] = (jnp.dot(h_last, wfc_ref[...], preferred_element_type=f32)
                    + bfc_ref[...]).astype(out_ref.dtype)


def _prep_gate_matrix(w, H, Hp):
    """Reorder PyTorch gate blocks [i,f,g,o] -> [i,f,o,g] (last axis) and pad
    each block from width H to lane-aligned width Hp with zeros."""
    blocks = [w[..., k * H:(k + 1) * H] for k in (0, 1, 3, 2)]
    if H != Hp:
        pad = [(0, 0)] * (w.ndim - 1) + [(0, Hp - H)]
        blocks = [jnp.pad(b, pad) for b in blocks]
    return jnp.concatenate(blocks, axis=-1)


def _split_bf16(a):
    """Split an f32 array into a bf16 (hi, lo) pair with hi + lo ~= a (~2^-16)."""
    hi = a.astype(jnp.bfloat16)
    lo = (a - hi.astype(jnp.float32)).astype(jnp.bfloat16)
    return hi, lo


def _derive_vmem_limit(resident_bytes):
    """vmem_limit_bytes from the actual resident footprint, clamped to ~90% of
    this chip's physical VMEM (v5e/v6e 128 MiB, v7x 64 MiB)."""
    need = int(sum(resident_bytes) * 1.5) + (4 << 20)   # compiler-temp slack
    try:
        info = pltpu.get_tpu_info()
        cap = int(getattr(info, "vmem_capacity_bytes", 0)) or (128 << 20)
    except Exception:
        cap = 128 << 20
    ceiling = max(16 << 20, int(cap * 0.9))
    return max(16 << 20, min(need, ceiling))


def rnn_net_forward(x, w_ih, w_hh, b_gate, w_fc, b_fc):
    """x: (B, T, In) f32.  Returns (B, O) logits (LSTM last step -> Linear)."""
    B, T, In = x.shape
    H = w_hh.shape[0]
    O = w_fc.shape[1]

    Hp = ((H + _LANE - 1) // _LANE) * _LANE              # lane-aligned hidden
    Op = max(_LANE, ((O + _LANE - 1) // _LANE) * _LANE)  # lane-dense output

    # Layout plumbing (wrapper side only): time-major x, lane-aligned +
    # [i,f,o,g]-reordered gate blocks, bf16 hi/lo weight split, lane-dense FC.
    # Padded rows/cols are zero => padded hidden lanes stay exactly 0 through
    # the recurrence and never touch the logits.
    x_tm = jnp.transpose(x, (1, 0, 2))                                # (T,B,In)
    w_ih_p = _prep_gate_matrix(w_ih, H, Hp)                           # (In,4Hp)
    w_hh_p = _prep_gate_matrix(jnp.pad(w_hh, ((0, Hp - H), (0, 0))), H, Hp)
    b_p = _prep_gate_matrix(b_gate, H, Hp)                            # (1,4Hp)
    w_fc_p = jnp.pad(w_fc, ((0, Hp - H), (0, Op - O)))                # (Hp,Op)
    b_fc_p = jnp.pad(b_fc, ((0, 0), (0, Op - O)))                     # (1,Op)

    wih_hi, wih_lo = _split_bf16(w_ih_p)
    whh_hi, whh_lo = _split_bf16(w_hh_p)

    resident = [
        x_tm.size * 4,                  # time-major input
        T * B * 4 * Hp * 4,             # xg scratch (dominant at module scale)
        wih_hi.size * 2 * 2,            # W_ih hi+lo (bf16)
        whh_hi.size * 2 * 2,            # W_hh hi+lo (bf16)
        b_p.size * 4, w_fc_p.size * 4, b_fc_p.size * 4,
        B * Op * 4,                     # output
    ]
    vmem_limit = _derive_vmem_limit(resident)

    # Full unroll only for short sequences; partial unroll keeps live vregs
    # bounded (no spills) while still hiding EUP/MXU latency at module-scale T.
    unroll = True if T <= 16 else 4

    kernel = functools.partial(_lstm_fc_kernel,
                               hidden=Hp, seq_len=T, batch=B, unroll=unroll)

    out_p = pl.pallas_call(
        kernel,
        out_shape=jax.ShapeDtypeStruct((B, Op), jnp.float32),
        in_specs=[pl.BlockSpec(memory_space=pltpu.MemorySpace.VMEM)] * 8,
        out_specs=pl.BlockSpec(memory_space=pltpu.MemorySpace.VMEM),
        scratch_shapes=[pltpu.VMEM((T, B, 4 * Hp), jnp.float32)],
        compiler_params=pltpu.CompilerParams(vmem_limit_bytes=vmem_limit),
    )(x_tm, wih_hi, wih_lo, whh_hi, whh_lo, b_p, w_fc_p, b_fc_p)

    return out_p[:, :O]


def rnn_net_reference(x, w_ih, w_hh, b_gate, w_fc, b_fc):
    """Pure-JAX reference (mirrors torch nn.LSTM(batch_first) + nn.Linear),
    forced to true-f32 matmuls so the comparison is unambiguous."""
    B, T, In = x.shape
    H = w_hh.shape[0]
    hp = lax.Precision.HIGHEST

    def step(carry, x_t):
        h, c = carry
        gates = (jnp.dot(x_t, w_ih, precision=hp)
                 + jnp.dot(h, w_hh, precision=hp) + b_gate[0])
        i = jax.nn.sigmoid(gates[:, 0 * H:1 * H])
        f = jax.nn.sigmoid(gates[:, 1 * H:2 * H])
        g = jnp.tanh(gates[:, 2 * H:3 * H])
        o = jax.nn.sigmoid(gates[:, 3 * H:4 * H])
        c = f * c + i * g
        h = o * jnp.tanh(c)
        return (h, c), None

    h0 = jnp.zeros((B, H), jnp.float32)
    c0 = jnp.zeros((B, H), jnp.float32)
    (h_last, _), _ = lax.scan(step, (h0, c0), jnp.transpose(x, (1, 0, 2)))
    return jnp.dot(h_last, w_fc, precision=hp) + b_fc[0]


if __name__ == "__main__":
    root_key = jax.random.PRNGKey(0)

    def run_case(case_idx, B, T, In, H, O):
        key = jax.random.fold_in(root_key, case_idx)
        kx, k1, k2, k3, k4, k5, k6 = jax.random.split(key, 7)

        # x enters like the torch module: (B, 1, T, In) -> squeeze -> (B, T, In).
        # The channel axis is squeezed explicitly (torch's bare .squeeze() would
        # also collapse B==1; axis=1 keeps the wrapper robust to that quirk).
        x4 = jax.random.normal(kx, (B, 1, T, In), jnp.float32)
        x = jnp.squeeze(x4, axis=1)

        scale = 0.1
        w_ih = scale * jax.random.normal(k1, (In, 4 * H), jnp.float32)
        w_hh = scale * jax.random.normal(k2, (H, 4 * H), jnp.float32)
        b_ih = scale * jax.random.normal(k3, (4 * H,), jnp.float32)
        b_hh = scale * jax.random.normal(k4, (4 * H,), jnp.float32)
        b_gate = (b_ih + b_hh).reshape(1, 4 * H)
        w_fc = scale * jax.random.normal(k5, (H, O), jnp.float32)
        b_fc = (scale * jax.random.normal(k6, (O,), jnp.float32)).reshape(1, O)

        out = jax.block_until_ready(
            rnn_net_forward(x, w_ih, w_hh, b_gate, w_fc, b_fc))
        ref = rnn_net_reference(x, w_ih, w_hh, b_gate, w_fc, b_fc)
        assert out.shape == (B, O), out.shape
        err = float(jnp.max(jnp.abs(out - ref)))
        # The bf16 hi/lo split leaves ~2^-16 relative residual per MXU product
        # (end-to-end error observed/expected at the 1e-5 level); tolerance is
        # relaxed slightly from 1e-4 for headroom, as the review allows for the
        # narrowed-weight path.
        assert jnp.allclose(out, ref, atol=2e-4, rtol=2e-4), err

    # Lane-aligned hidden size (padding is a no-op).
    run_case(0, B=8, T=8, In=96, H=128, O=10)
    # Misaligned hidden size: exercises the H -> multiple-of-128 padding path
    # (same situation as the module default hidden=490 -> 512, at small scale).
    run_case(1, B=8, T=8, In=96, H=120, O=10)

    print("KERNEL_OK")
</pallas_src>

<mosaic_0001>
module attributes {stable_mosaic.version = 11 : i64} {
  func.func @_lstm_fc_kernel(%arg0: memref<8x8x96xf32, #tpu.memory_space<vmem>>, %arg1: memref<96x512xbf16, #tpu.memory_space<vmem>>, %arg2: memref<96x512xbf16, #tpu.memory_space<vmem>>, %arg3: memref<128x512xbf16, #tpu.memory_space<vmem>>, %arg4: memref<128x512xbf16, #tpu.memory_space<vmem>>, %arg5: memref<1x512xf32, #tpu.memory_space<vmem>>, %arg6: memref<128x128xf32, #tpu.memory_space<vmem>>, %arg7: memref<1x128xf32, #tpu.memory_space<vmem>>, %arg8: memref<8x128xf32, #tpu.memory_space<vmem>>, %arg9: memref<8x8x512xf32, #tpu.memory_space<vmem>>) attributes {dimension_semantics = [], scalar_prefetch = 0 : i64, scratch_operands = 1 : i64, tpu.core_type = #tpu.core_type<tc>} {
    %c0 = arith.constant 0 : index
    %c0_0 = arith.constant 0 : index
    %c0_1 = arith.constant 0 : index
    %0 = vector.load %arg0[%c0, %c0_0, %c0_1] : memref<8x8x96xf32, #tpu.memory_space<vmem>>, vector<8x8x96xf32>
    %1 = vector.shape_cast %0 : vector<8x8x96xf32> to vector<64x96xf32>
    %2 = arith.truncf %1 : vector<64x96xf32> to vector<64x96xbf16>
    %3 = arith.extf %2 : vector<64x96xbf16> to vector<64x96xf32>
    %4 = arith.subf %1, %3 : vector<64x96xf32>
    %5 = arith.truncf %4 : vector<64x96xf32> to vector<64x96xbf16>
    %c0_2 = arith.constant 0 : index
    %c0_3 = arith.constant 0 : index
    %6 = vector.load %arg1[%c0_2, %c0_3] : memref<96x512xbf16, #tpu.memory_space<vmem>>, vector<96x512xbf16>
    %cst = arith.constant dense<0.000000e+00> : vector<64x512xf32>
    %7 = tpu.matmul %2, %6, %cst {dimension_numbers = #tpu.dot_dimension_numbers<[1], [0], [0], [1], [0, 0, 1, 1], [], []>} : vector<64x96xbf16>, vector<96x512xbf16>, vector<64x512xf32> -> vector<64x512xf32>
    %c0_4 = arith.constant 0 : index
    %c0_5 = arith.constant 0 : index
    %8 = vector.load %arg1[%c0_4, %c0_5] : memref<96x512xbf16, #tpu.memory_space<vmem>>, vector<96x512xbf16>
    %cst_6 = arith.constant dense<0.000000e+00> : vector<64x512xf32>
    %9 = tpu.matmul %5, %8, %cst_6 {dimension_numbers = #tpu.dot_dimension_numbers<[1], [0], [0], [1], [0, 0, 1, 1], [], []>} : vector<64x96xbf16>, vector<96x512xbf16>, vector<64x512xf32> -> vector<64x512xf32>
    %10 = arith.addf %7, %9 : vector<64x512xf32>
    %c0_7 = arith.constant 0 : index
    %c0_8 = arith.constant 0 : index
    %11 = vector.load %arg2[%c0_7, %c0_8] : memref<96x512xbf16, #tpu.memory_space<vmem>>, vector<96x512xbf16>
    %cst_9 = arith.constant dense<0.000000e+00> : vector<64x512xf32>
    %12 = tpu.matmul %2, %11, %cst_9 {dimension_numbers = #tpu.dot_dimension_numbers<[1], [0], [0], [1], [0, 0, 1, 1], [], []>} : vector<64x96xbf16>, vector<96x512xbf16>, vector<64x512xf32> -> vector<64x512xf32>
    %13 = arith.addf %10, %12 : vector<64x512xf32>
    %c0_10 = arith.constant 0 : index
    %c0_11 = arith.constant 0 : index
    %14 = vector.load %arg5[%c0_10, %c0_11] : memref<1x512xf32, #tpu.memory_space<vmem>>, vector<1x512xf32>
    %15 = vector.broadcast %14 : vector<1x512xf32> to vector<64x512xf32>
    %16 = arith.addf %13, %15 : vector<64x512xf32>
    %17 = vector.shape_cast %16 : vector<64x512xf32> to vector<8x8x512xf32>
    %c0_12 = arith.constant 0 : index
    %c0_13 = arith.constant 0 : index
    %c0_14 = arith.constant 0 : index
    %18 = vector.load %arg9[%c0_12, %c0_13, %c0_14] : memref<8x8x512xf32, #tpu.memory_space<vmem>>, vector<8x8x512xf32>
    tpu.vector_store %arg9[%c0_12, %c0_13, %c0_14], %17 {strides = array<i32>} : memref<8x8x512xf32, #tpu.memory_space<vmem>>, vector<8x8x512xf32>,
    %cst_15 = arith.constant 0.000000e+00 : f32
    %19 = vector.broadcast %cst_15 : f32 to vector<8x128xf32>
    %cst_16 = arith.constant 0.000000e+00 : f32
    %20 = vector.broadcast %cst_16 : f32 to vector<8x128xf32>
    %c0_i32 = arith.constant 0 : i32
    %21 = arith.index_cast %c0_i32 : i32 to index
    %c0_17 = arith.constant 0 : index
    %c0_18 = arith.constant 0 : index
    %22 = vector.load %arg9[%21, %c0_17, %c0_18] : memref<8x8x512xf32, #tpu.memory_space<vmem>>, vector<1x8x512xf32>
    %23 = vector.shape_cast %22 : vector<1x8x512xf32> to vector<8x512xf32>
    %24 = arith.truncf %19 : vector<8x128xf32> to vector<8x128xbf16>
    %25 = arith.extf %24 : vector<8x128xbf16> to vector<8x128xf32>
    %26 = arith.subf %19, %25 : vector<8x128xf32>
    %27 = arith.truncf %26 : vector<8x128xf32> to vector<8x128xbf16>
    %c0_19 = arith.constant 0 : index
    %c0_20 = arith.constant 0 : index
    %28 = vector.load %arg3[%c0_19, %c0_20] : memref<128x512xbf16, #tpu.memory_space<vmem>>, vector<128x512xbf16>
    %cst_21 = arith.constant dense<0.000000e+00> : vector<8x512xf32>
    %29 = tpu.matmul %24, %28, %cst_21 {dimension_numbers = #tpu.dot_dimension_numbers<[1], [0], [0], [1], [0, 0, 1, 1], [], []>} : vector<8x128xbf16>, vector<128x512xbf16>, vector<8x512xf32> -> vector<8x512xf32>
    %c0_22 = arith.constant 0 : index
    %c0_23 = arith.constant 0 : index
    %30 = vector.load %arg3[%c0_22, %c0_23] : memref<128x512xbf16, #tpu.memory_space<vmem>>, vector<128x512xbf16>
    %cst_24 = arith.constant dense<0.000000e+00> : vector<8x512xf32>
    %31 = tpu.matmul %27, %30, %cst_24 {dimension_numbers = #tpu.dot_dimension_numbers<[1], [0], [0], [1], [0, 0, 1, 1], [], []>} : vector<8x128xbf16>, vector<128x512xbf16>, vector<8x512xf32> -> vector<8x512xf32>
    %32 = arith.addf %29, %31 : vector<8x512xf32>
    %c0_25 = arith.constant 0 : index
    %c0_26 = arith.constant 0 : index
    %33 = vector.load %arg4[%c0_25, %c0_26] : memref<128x512xbf16, #tpu.memory_space<vmem>>, vector<128x512xbf16>
    %cst_27 = arith.constant dense<0.000000e+00> : vector<8x512xf32>
    %34 = tpu.matmul %24, %33, %cst_27 {dimension_numbers = #tpu.dot_dimension_numbers<[1], [0], [0], [1], [0, 0, 1, 1], [], []>} : vector<8x128xbf16>, vector<128x512xbf16>, vector<8x512xf32> -> vector<8x512xf32>
    %35 = arith.addf %32, %34 : vector<8x512xf32>
    %36 = arith.addf %23, %35 : vector<8x512xf32>
    %37 = vector.extract_strided_slice %36 {offsets = [0, 0], sizes = [8, 384], strides = [1, 1]} : vector<8x512xf32> to vector<8x384xf32>
    %38 = arith.negf %37 : vector<8x384xf32>
    %39 = math.exp %38 : vector<8x384xf32>
    %cst_28 = arith.constant 1.000000e+00 : f32
    %40 = vector.broadcast %cst_28 : f32 to vector<8x384xf32>
    %41 = arith.addf %40, %39 : vector<8x384xf32>
    %42 = arith.divf %40, %41 : vector<8x384xf32>
    %43 = vector.extract_strided_slice %42 {offsets = [0, 0], sizes = [8, 128], strides = [1, 1]} : vector<8x384xf32> to vector<8x128xf32>
    %44 = vector.extract_strided_slice %42 {offsets = [0, 128], sizes = [8, 128], strides = [1, 1]} : vector<8x384xf32> to vector<8x128xf32>
    %45 = vector.extract_strided_slice %42 {offsets = [0, 256], sizes = [8, 128], strides = [1, 1]} : vector<8x384xf32> to vector<8x128xf32>
    %46 = vector.extract_strided_slice %36 {offsets = [0, 384], sizes = [8, 128], strides = [1, 1]} : vector<8x512xf32> to vector<8x128xf32>
    %47 = math.tanh %46 : vector<8x128xf32>
    %48 = arith.mulf %44, %20 : vector<8x128xf32>
    %49 = arith.mulf %43, %47 : vector<8x128xf32>
    %50 = arith.addf %48, %49 : vector<8x128xf32>
    %51 = math.tanh %50 : vector<8x128xf32>
    %52 = arith.mulf %45, %51 : vector<8x128xf32>
    %c1_i32 = arith.constant 1 : i32
    %53 = arith.index_cast %c1_i32 : i32 to index
    %c0_29 = arith.constant 0 : index
    %c0_30 = arith.constant 0 : index
    %54 = vector.load %arg9[%53, %c0_29, %c0_30] : memref<8x8x512xf32, #tpu.memory_space<vmem>>, vector<1x8x512xf32>
    %55 = vector.shape_cast %54 : vector<1x8x512xf32> to vector<8x512xf32>
    %56 = arith.truncf %52 : vector<8x128xf32> to vector<8x128xbf16>
    %57 = arith.extf %56 : vector<8x128xbf16> to vector<8x128xf32>
    %58 = arith.subf %52, %57 : vector<8x128xf32>
    %59 = arith.truncf %58 : vector<8x128xf32> to vector<8x128xbf16>
    %c0_31 = arith.constant 0 : index
    %c0_32 = arith.constant 0 : index
    %60 = vector.load %arg3[%c0_31, %c0_32] : memref<128x512xbf16, #tpu.memory_space<vmem>>, vector<128x512xbf16>
    %cst_33 = arith.constant dense<0.000000e+00> : vector<8x512xf32>
    %61 = tpu.matmul %56, %60, %cst_33 {dimension_numbers = #tpu.dot_dimension_numbers<[1], [0], [0], [1], [0, 0, 1, 1], [], []>} : vector<8x128xbf16>, vector<128x512xbf16>, vector<8x512xf32> -> vector<8x512xf32>
    %c0_34 = arith.constant 0 : index
    %c0_35 = arith.constant 0 : index
    %62 = vector.load %arg3[%c0_34, %c0_35] : memref<128x512xbf16, #tpu.memory_space<vmem>>, vector<128x512xbf16>
    %cst_36 = arith.constant dense<0.000000e+00> : vector<8x512xf32>
    %63 = tpu.matmul %59, %62, %cst_36 {dimension_numbers = #tpu.dot_dimension_numbers<[1], [0], [0], [1], [0, 0, 1, 1], [], []>} : vector<8x128xbf16>, vector<128x512xbf16>, vector<8x512xf32> -> vector<8x512xf32>
    %64 = arith.addf %61, %63 : vector<8x512xf32>
    %c0_37 = arith.constant 0 : index
    %c0_38 = arith.constant 0 : index
    %65 = vector.load %arg4[%c0_37, %c0_38] : memref<128x512xbf16, #tpu.memory_space<vmem>>, vector<128x512xbf16>
    %cst_39 = arith.constant dense<0.000000e+00> : vector<8x512xf32>
    %66 = tpu.matmul %56, %65, %cst_39 {dimension_numbers = #tpu.dot_dimension_numbers<[1], [0], [0], [1], [0, 0, 1, 1], [], []>} : vector<8x128xbf16>, vector<128x512xbf16>, vector<8x512xf32> -> vector<8x512xf32>
    %67 = arith.addf %64, %66 : vector<8x512xf32>
    %68 = arith.addf %55, %67 : vector<8x512xf32>
    %69 = vector.extract_strided_slice %68 {offsets = [0, 0], sizes = [8, 384], strides = [1, 1]} : vector<8x512xf32> to vector<8x384xf32>
    %70 = arith.negf %69 : vector<8x384xf32>
    %71 = math.exp %70 : vector<8x384xf32>
    %cst_40 = arith.constant 1.000000e+00 : f32
    %72 = vector.broadcast %cst_40 : f32 to vector<8x384xf32>
    %73 = arith.addf %72, %71 : vector<8x384xf32>
    %74 = arith.divf %72, %73 : vector<8x384xf32>
    %75 = vector.extract_strided_slice %74 {offsets = [0, 0], sizes = [8, 128], strides = [1, 1]} : vector<8x384xf32> to vector<8x128xf32>
    %76 = vector.extract_strided_slice %74 {offsets = [0, 128], sizes = [8, 128], strides = [1, 1]} : vector<8x384xf32> to vector<8x128xf32>
    %77 = vector.extract_strided_slice %74 {offsets = [0, 256], sizes = [8, 128], strides = [1, 1]} : vector<8x384xf32> to vector<8x128xf32>
    %78 = vector.extract_strided_slice %68 {offsets = [0, 384], sizes = [8, 128], strides = [1, 1]} : vector<8x512xf32> to vector<8x128xf32>
    %79 = math.tanh %78 : vector<8x128xf32>
    %80 = arith.mulf %76, %50 : vector<8x128xf32>
    %81 = arith.mulf %75, %79 : vector<8x128xf32>
    %82 = arith.addf %80, %81 : vector<8x128xf32>
    %83 = math.tanh %82 : vector<8x128xf32>
    %84 = arith.mulf %77, %83 : vector<8x128xf32>
    %c2_i32 = arith.constant 2 : i32
    %85 = arith.index_cast %c2_i32 : i32 to index
    %c0_41 = arith.constant 0 : index
    %c0_42 = arith.constant 0 : index
    %86 = vector.load %arg9[%85, %c0_41, %c0_42] : memref<8x8x512xf32, #tpu.memory_space<vmem>>, vector<1x8x512xf32>
    %87 = vector.shape_cast %86 : vector<1x8x512xf32> to vector<8x512xf32>
    %88 = arith.truncf %84 : vector<8x128xf32> to vector<8x128xbf16>
    %89 = arith.extf %88 : vector<8x128xbf16> to vector<8x128xf32>
    %90 = arith.subf %84, %89 : vector<8x128xf32>
    %91 = arith.truncf %90 : vector<8x128xf32> to vector<8x128xbf16>
    %c0_43 = arith.constant 0 : index
    %c0_44 = arith.constant 0 : index
    %92 = vector.load %arg3[%c0_43, %c0_44] : memref<128x512xbf16, #tpu.memory_space<vmem>>, vector<128x512xbf16>
    %cst_45 = arith.constant dense<0.000000e+00> : vector<8x512xf32>
    %93 = tpu.matmul %88, %92, %cst_45 {dimension_numbers = #tpu.dot_dimension_numbers<[1], [0], [0], [1], [0, 0, 1, 1], [], []>} : vector<8x128xbf16>, vector<128x512xbf16>, vector<8x512xf32> -> vector<8x512xf32>
    %c0_46 = arith.constant 0 : index
    %c0_47 = arith.constant 0 : index
    %94 = vector.load %arg3[%c0_46, %c0_47] : memref<128x512xbf16, #tpu.memory_space<vmem>>, vector<128x512xbf16>
    %cst_48 = arith.constant dense<0.000000e+00> : vector<8x512xf32>
    %95 = tpu.matmul %91, %94, %cst_48 {dimension_numbers = #tpu.dot_dimension_numbers<[1], [0], [0], [1], [0, 0, 1, 1], [], []>} : vector<8x128xbf16>, vector<128x512xbf16>, vector<8x512xf32> -> vector<8x512xf32>
    %96 = arith.addf %93, %95 : vector<8x512xf32>
    %c0_49 = arith.constant 0 : index
    %c0_50 = arith.constant 0 : index
    %97 = vector.load %arg4[%c0_49, %c0_50] : memref<128x512xbf16, #tpu.memory_space<vmem>>, vector<128x512xbf16>
    %cst_51 = arith.constant dense<0.000000e+00> : vector<8x512xf32>
    %98 = tpu.matmul %88, %97, %cst_51 {dimension_numbers = #tpu.dot_dimension_numbers<[1], [0], [0], [1], [0, 0, 1, 1], [], []>} : vector<8x128xbf16>, vector<128x512xbf16>, vector<8x512xf32> -> vector<8x512xf32>
    %99 = arith.addf %96, %98 : vector<8x512xf32>
    %100 = arith.addf %87, %99 : vector<8x512xf32>
    %101 = vector.extract_strided_slice %100 {offsets = [0, 0], sizes = [8, 384], strides = [1, 1]} : vector<8x512xf32> to vector<8x384xf32>
    %102 = arith.negf %101 : vector<8x384xf32>
    %103 = math.exp %102 : vector<8x384xf32>
    %cst_52 = arith.constant 1.000000e+00 : f32
    %104 = vector.broadcast %cst_52 : f32 to vector<8x384xf32>
    %105 = arith.addf %104, %103 : vector<8x384xf32>
    %106 = arith.divf %104, %105 : vector<8x384xf32>
    %107 = vector.extract_strided_slice %106 {offsets = [0, 0], sizes = [8, 128], strides = [1, 1]} : vector<8x384xf32> to vector<8x128xf32>
    %108 = vector.extract_strided_slice %106 {offsets = [0, 128], sizes = [8, 128], strides = [1, 1]} : vector<8x384xf32> to vector<8x128xf32>
    %109 = vector.extract_strided_slice %106 {offsets = [0, 256], sizes = [8, 128], strides = [1, 1]} : vector<8x384xf32> to vector<8x128xf32>
    %110 = vector.extract_strided_slice %100 {offsets = [0, 384], sizes = [8, 128], strides = [1, 1]} : vector<8x512xf32> to vector<8x128xf32>
    %111 = math.tanh %110 : vector<8x128xf32>
    %112 = arith.mulf %108, %82 : vector<8x128xf32>
    %113 = arith.mulf %107, %111 : vector<8x128xf32>
    %114 = arith.addf %112, %113 : vector<8x128xf32>
    %115 = math.tanh %114 : vector<8x128xf32>
    %116 = arith.mulf %109, %115 : vector<8x128xf32>
    %c3_i32 = arith.constant 3 : i32
    %117 = arith.index_cast %c3_i32 : i32 to index
    %c0_53 = arith.constant 0 : index
    %c0_54 = arith.constant 0 : index
    %118 = vector.load %arg9[%117, %c0_53, %c0_54] : memref<8x8x512xf32, #tpu.memory_space<vmem>>, vector<1x8x512xf32>
    %119 = vector.shape_cast %118 : vector<1x8x512xf32> to vector<8x512xf32>
    %120 = arith.truncf %116 : vector<8x128xf32> to vector<8x128xbf16>
    %121 = arith.extf %120 : vector<8x128xbf16> to vector<8x128xf32>
    %122 = arith.subf %116, %121 : vector<8x128xf32>
    %123 = arith.truncf %122 : vector<8x128xf32> to vector<8x128xbf16>
    %c0_55 = arith.constant 0 : index
    %c0_56 = arith.constant 0 : index
    %124 = vector.load %arg3[%c0_55, %c0_56] : memref<128x512xbf16, #tpu.memory_space<vmem>>, vector<128x512xbf16>
    %cst_57 = arith.constant dense<0.000000e+00> : vector<8x512xf32>
    %125 = tpu.matmul %120, %124, %cst_57 {dimension_numbers = #tpu.dot_dimension_numbers<[1], [0], [0], [1], [0, 0, 1, 1], [], []>} : vector<8x128xbf16>, vector<128x512xbf16>, vector<8x512xf32> -> vector<8x512xf32>
    %c0_58 = arith.constant 0 : index
    %c0_59 = arith.constant 0 : index
    %126 = vector.load %arg3[%c0_58, %c0_59] : memref<128x512xbf16, #tpu.memory_space<vmem>>, vector<128x512xbf16>
    %cst_60 = arith.constant dense<0.000000e+00> : vector<8x512xf32>
    %127 = tpu.matmul %123, %126, %cst_60 {dimension_numbers = #tpu.dot_dimension_numbers<[1], [0], [0], [1], [0, 0, 1, 1], [], []>} : vector<8x128xbf16>, vector<128x512xbf16>, vector<8x512xf32> -> vector<8x512xf32>
    %128 = arith.addf %125, %127 : vector<8x512xf32>
    %c0_61 = arith.constant 0 : index
    %c0_62 = arith.constant 0 : index
    %129 = vector.load %arg4[%c0_61, %c0_62] : memref<128x512xbf16, #tpu.memory_space<vmem>>, vector<128x512xbf16>
    %cst_63 = arith.constant dense<0.000000e+00> : vector<8x512xf32>
    %130 = tpu.matmul %120, %129, %cst_63 {dimension_numbers = #tpu.dot_dimension_numbers<[1], [0], [0], [1], [0, 0, 1, 1], [], []>} : vector<8x128xbf16>, vector<128x512xbf16>, vector<8x512xf32> -> vector<8x512xf32>
    %131 = arith.addf %128, %130 : vector<8x512xf32>
    %132 = arith.addf %119, %131 : vector<8x512xf32>
    %133 = vector.extract_strided_slice %132 {offsets = [0, 0], sizes = [8, 384], strides = [1, 1]} : vector<8x512xf32> to vector<8x384xf32>
    %134 = arith.negf %133 : vector<8x384xf32>
    %135 = math.exp %134 : vector<8x384xf32>
    %cst_64 = arith.constant 1.000000e+00 : f32
    %136 = vector.broadcast %cst_64 : f32 to vector<8x384xf32>
    %137 = arith.addf %136, %135 : vector<8x384xf32>
    %138 = arith.divf %136, %137 : vector<8x384xf32>
    %139 = vector.extract_strided_slice %138 {offsets = [0, 0], sizes = [8, 128], strides = [1, 1]} : vector<8x384xf32> to vector<8x128xf32>
    %140 = vector.extract_strided_slice %138 {offsets = [0, 128], sizes = [8, 128], strides = [1, 1]} : vector<8x384xf32> to vector<8x128xf32>
    %141 = vector.extract_strided_slice %138 {offsets = [0, 256], sizes = [8, 128], strides = [1, 1]} : vector<8x384xf32> to vector<8x128xf32>
    %142 = vector.extract_strided_slice %132 {offsets = [0, 384], sizes = [8, 128], strides = [1, 1]} : vector<8x512xf32> to vector<8x128xf32>
    %143 = math.tanh %142 : vector<8x128xf32>
    %144 = arith.mulf %140, %114 : vector<8x128xf32>
    %145 = arith.mulf %139, %143 : vector<8x128xf32>
    %146 = arith.addf %144, %145 : vector<8x128xf32>
    %147 = math.tanh %146 : vector<8x128xf32>
    %148 = arith.mulf %141, %147 : vector<8x128xf32>
    %c4_i32 = arith.constant 4 : i32
    %149 = arith.index_cast %c4_i32 : i32 to index
    %c0_65 = arith.constant 0 : index
    %c0_66 = arith.constant 0 : index
    %150 = vector.load %arg9[%149, %c0_65, %c0_66] : memref<8x8x512xf32, #tpu.memory_space<vmem>>, vector<1x8x512xf32>
    %151 = vector.shape_cast %150 : vector<1x8x512xf32> to vector<8x512xf32>
    %152 = arith.truncf %148 : vector<8x128xf32> to vector<8x128xbf16>
    %153 = arith.extf %152 : vector<8x128xbf16> to vector<8x128xf32>
    %154 = arith.subf %148, %153 : vector<8x128xf32>
    %155 = arith.truncf %154 : vector<8x128xf32> to vector<8x128xbf16>
    %c0_67 = arith.constant 0 : index
    %c0_68 = arith.constant 0 : index
    %156 = vector.load %arg3[%c0_67, %c0_68] : memref<128x512xbf16, #tpu.memory_space<vmem>>, vector<128x512xbf16>
    %cst_69 = arith.constant dense<0.000000e+00> : vector<8x512xf32>
    %157 = tpu.matmul %152, %156, %cst_69 {dimension_numbers = #tpu.dot_dimension_numbers<[1], [0], [0], [1], [0, 0, 1, 1], [], []>} : vector<8x128xbf16>, vector<128x512xbf16>, vector<8x512xf32> -> vector<8x512xf32>
    %c0_70 = arith.constant 0 : index
    %c0_71 = arith.constant 0 : index
    %158 = vector.load %arg3[%c0_70, %c0_71] : memref<128x512xbf16, #tpu.memory_space<vmem>>, vector<128x512xbf16>
    %cst_72 = arith.constant dense<0.000000e+00> : vector<8x512xf32>
    %159 = tpu.matmul %155, %158, %cst_72 {dimension_numbers = #tpu.dot_dimension_numbers<[1], [0], [0], [1], [0, 0, 1, 1], [], []>} : vector<8x128xbf16>, vector<128x512xbf16>, vector<8x512xf32> -> vector<8x512xf32>
    %160 = arith.addf %157, %159 : vector<8x512xf32>
    %c0_73 = arith.constant 0 : index
    %c0_74 = arith.constant 0 : index
    %161 = vector.load %arg4[%c0_73, %c0_74] : memref<128x512xbf16, #tpu.memory_space<vmem>>, vector<128x512xbf16>
    %cst_75 = arith.constant dense<0.000000e+00> : vector<8x512xf32>
    %162 = tpu.matmul %152, %161, %cst_75 {dimension_numbers = #tpu.dot_dimension_numbers<[1], [0], [0], [1], [0, 0, 1, 1], [], []>} : vector<8x128xbf16>, vector<128x512xbf16>, vector<8x512xf32> -> vector<8x512xf32>
    %163 = arith.addf %160, %162 : vector<8x512xf32>
    %164 = arith.addf %151, %163 : vector<8x512xf32>
    %165 = vector.extract_strided_slice %164 {offsets = [0, 0], sizes = [8, 384], strides = [1, 1]} : vector<8x512xf32> to vector<8x384xf32>
    %166 = arith.negf %165 : vector<8x384xf32>
    %167 = math.exp %166 : vector<8x384xf32>
    %cst_76 = arith.constant 1.000000e+00 : f32
    %168 = vector.broadcast %cst_76 : f32 to vector<8x384xf32>
    %169 = arith.addf %168, %167 : vector<8x384xf32>
    %170 = arith.divf %168, %169 : vector<8x384xf32>
    %171 = vector.extract_strided_slice %170 {offsets = [0, 0], sizes = [8, 128], strides = [1, 1]} : vector<8x384xf32> to vector<8x128xf32>
    %172 = vector.extract_strided_slice %170 {offsets = [0, 128], sizes = [8, 128], strides = [1, 1]} : vector<8x384xf32> to vector<8x128xf32>
    %173 = vector.extract_strided_slice %170 {offsets = [0, 256], sizes = [8, 128], strides = [1, 1]} : vector<8x384xf32> to vector<8x128xf32>
    %174 = vector.extract_strided_slice %164 {offsets = [0, 384], sizes = [8, 128], strides = [1, 1]} : vector<8x512xf32> to vector<8x128xf32>
    %175 = math.tanh %174 : vector<8x128xf32>
    %176 = arith.mulf %172, %146 : vector<8x128xf32>
    %177 = arith.mulf %171, %175 : vector<8x128xf32>
    %178 = arith.addf %176, %177 : vector<8x128xf32>
    %179 = math.tanh %178 : vector<8x128xf32>
    %180 = arith.mulf %173, %179 : vector<8x128xf32>
    %c5_i32 = arith.constant 5 : i32
    %181 = arith.index_cast %c5_i32 : i32 to index
    %c0_77 = arith.constant 0 : index
    %c0_78 = arith.constant 0 : index
    %182 = vector.load %arg9[%181, %c0_77, %c0_78] : memref<8x8x512xf32, #tpu.memory_space<vmem>>, vector<1x8x512xf32>
    %183 = vector.shape_cast %182 : vector<1x8x512xf32> to vector<8x512xf32>
    %184 = arith.truncf %180 : vector<8x128xf32> to vector<8x128xbf16>
    %185 = arith.extf %184 : vector<8x128xbf16> to vector<8x128xf32>
    %186 = arith.subf %180, %185 : vector<8x128xf32>
    %187 = arith.truncf %186 : vector<8x128xf32> to vector<8x128xbf16>
    %c0_79 = arith.constant 0 : index
    %c0_80 = arith.constant 0 : index
    %188 = vector.load %arg3[%c0_79, %c0_80] : memref<128x512xbf16, #tpu.memory_space<vmem>>, vector<128x512xbf16>
    %cst_81 = arith.constant dense<0.000000e+00> : vector<8x512xf32>
    %189 = tpu.matmul %184, %188, %cst_81 {dimension_numbers = #tpu.dot_dimension_numbers<[1], [0], [0], [1], [0, 0, 1, 1], [], []>} : vector<8x128xbf16>, vector<128x512xbf16>, vector<8x512xf32> -> vector<8x512xf32>
    %c0_82 = arith.constant 0 : index
    %c0_83 = arith.constant 0 : index
    %190 = vector.load %arg3[%c0_82, %c0_83] : memref<128x512xbf16, #tpu.memory_space<vmem>>, vector<128x512xbf16>
    %cst_84 = arith.constant dense<0.000000e+00> : vector<8x512xf32>
    %191 = tpu.matmul %187, %190, %cst_84 {dimension_numbers = #tpu.dot_dimension_numbers<[1], [0], [0], [1], [0, 0, 1, 1], [], []>} : vector<8x128xbf16>, vector<128x512xbf16>, vector<8x512xf32> -> vector<8x512xf32>
    %192 = arith.addf %189, %191 : vector<8x512xf32>
    %c0_85 = arith.constant 0 : index
    %c0_86 = arith.constant 0 : index
    %193 = vector.load %arg4[%c0_85, %c0_86] : memref<128x512xbf16, #tpu.memory_space<vmem>>, vector<128x512xbf16>
    %cst_87 = arith.constant dense<0.000000e+00> : vector<8x512xf32>
    %194 = tpu.matmul %184, %193, %cst_87 {dimension_numbers = #tpu.dot_dimension_numbers<[1], [0], [0], [1], [0, 0, 1, 1], [], []>} : vector<8x128xbf16>, vector<128x512xbf16>, vector<8x512xf32> -> vector<8x512xf32>
    %195 = arith.addf %192, %194 : vector<8x512xf32>
    %196 = arith.addf %183, %195 : vector<8x512xf32>
    %197 = vector.extract_strided_slice %196 {offsets = [0, 0], sizes = [8, 384], strides = [1, 1]} : vector<8x512xf32> to vector<8x384xf32>
    %198 = arith.negf %197 : vector<8x384xf32>
    %199 = math.exp %198 : vector<8x384xf32>
    %cst_88 = arith.constant 1.000000e+00 : f32
    %200 = vector.broadcast %cst_88 : f32 to vector<8x384xf32>
    %201 = arith.addf %200, %199 : vector<8x384xf32>
    %202 = arith.divf %200, %201 : vector<8x384xf32>
    %203 = vector.extract_strided_slice %202 {offsets = [0, 0], sizes = [8, 128], strides = [1, 1]} : vector<8x384xf32> to vector<8x128xf32>
    %204 = vector.extract_strided_slice %202 {offsets = [0, 128], sizes = [8, 128], strides = [1, 1]} : vector<8x384xf32> to vector<8x128xf32>
    %205 = vector.extract_strided_slice %202 {offsets = [0, 256], sizes = [8, 128], strides = [1, 1]} : vector<8x384xf32> to vector<8x128xf32>
    %206 = vector.extract_strided_slice %196 {offsets = [0, 384], sizes = [8, 128], strides = [1, 1]} : vector<8x512xf32> to vector<8x128xf32>
    %207 = math.tanh %206 : vector<8x128xf32>
    %208 = arith.mulf %204, %178 : vector<8x128xf32>
    %209 = arith.mulf %203, %207 : vector<8x128xf32>
    %210 = arith.addf %208, %209 : vector<8x128xf32>
    %211 = math.tanh %210 : vector<8x128xf32>
    %212 = arith.mulf %205, %211 : vector<8x128xf32>
    %c6_i32 = arith.constant 6 : i32
    %213 = arith.index_cast %c6_i32 : i32 to index
    %c0_89 = arith.constant 0 : index
    %c0_90 = arith.constant 0 : index
    %214 = vector.load %arg9[%213, %c0_89, %c0_90] : memref<8x8x512xf32, #tpu.memory_space<vmem>>, vector<1x8x512xf32>
    %215 = vector.shape_cast %214 : vector<1x8x512xf32> to vector<8x512xf32>
    %216 = arith.truncf %212 : vector<8x128xf32> to vector<8x128xbf16>
    %217 = arith.extf %216 : vector<8x128xbf16> to vector<8x128xf32>
    %218 = arith.subf %212, %217 : vector<8x128xf32>
    %219 = arith.truncf %218 : vector<8x128xf32> to vector<8x128xbf16>
    %c0_91 = arith.constant 0 : index
    %c0_92 = arith.constant 0 : index
    %220 = vector.load %arg3[%c0_91, %c0_92] : memref<128x512xbf16, #tpu.memory_space<vmem>>, vector<128x512xbf16>
    %cst_93 = arith.constant dense<0.000000e+00> : vector<8x512xf32>
    %221 = tpu.matmul %216, %220, %cst_93 {dimension_numbers = #tpu.dot_dimension_numbers<[1], [0], [0], [1], [0, 0, 1, 1], [], []>} : vector<8x128xbf16>, vector<128x512xbf16>, vector<8x512xf32> -> vector<8x512xf32>
    %c0_94 = arith.constant 0 : index
    %c0_95 = arith.constant 0 : index
    %222 = vector.load %arg3[%c0_94, %c0_95] : memref<128x512xbf16, #tpu.memory_space<vmem>>, vector<128x512xbf16>
    %cst_96 = arith.constant dense<0.000000e+00> : vector<8x512xf32>
    %223 = tpu.matmul %219, %222, %cst_96 {dimension_numbers = #tpu.dot_dimension_numbers<[1], [0], [0], [1], [0, 0, 1, 1], [], []>} : vector<8x128xbf16>, vector<128x512xbf16>, vector<8x512xf32> -> vector<8x512xf32>
    %224 = arith.addf %221, %223 : vector<8x512xf32>
    %c0_97 = arith.constant 0 : index
    %c0_98 = arith.constant 0 : index
    %225 = vector.load %arg4[%c0_97, %c0_98] : memref<128x512xbf16, #tpu.memory_space<vmem>>, vector<128x512xbf16>
    %cst_99 = arith.constant dense<0.000000e+00> : vector<8x512xf32>
    %226 = tpu.matmul %216, %225, %cst_99 {dimension_numbers = #tpu.dot_dimension_numbers<[1], [0], [0], [1], [0, 0, 1, 1], [], []>} : vector<8x128xbf16>, vector<128x512xbf16>, vector<8x512xf32> -> vector<8x512xf32>
    %227 = arith.addf %224, %226 : vector<8x512xf32>
    %228 = arith.addf %215, %227 : vector<8x512xf32>
    %229 = vector.extract_strided_slice %228 {offsets = [0, 0], sizes = [8, 384], strides = [1, 1]} : vector<8x512xf32> to vector<8x384xf32>
    %230 = arith.negf %229 : vector<8x384xf32>
    %231 = math.exp %230 : vector<8x384xf32>
    %cst_100 = arith.constant 1.000000e+00 : f32
    %232 = vector.broadcast %cst_100 : f32 to vector<8x384xf32>
    %233 = arith.addf %232, %231 : vector<8x384xf32>
    %234 = arith.divf %232, %233 : vector<8x384xf32>
    %235 = vector.extract_strided_slice %234 {offsets = [0, 0], sizes = [8, 128], strides = [1, 1]} : vector<8x384xf32> to vector<8x128xf32>
    %236 = vector.extract_strided_slice %234 {offsets = [0, 128], sizes = [8, 128], strides = [1, 1]} : vector<8x384xf32> to vector<8x128xf32>
    %237 = vector.extract_strided_slice %234 {offsets = [0, 256], sizes = [8, 128], strides = [1, 1]} : vector<8x384xf32> to vector<8x128xf32>
    %238 = vector.extract_strided_slice %228 {offsets = [0, 384], sizes = [8, 128], strides = [1, 1]} : vector<8x512xf32> to vector<8x128xf32>
    %239 = math.tanh %238 : vector<8x128xf32>
    %240 = arith.mulf %236, %210 : vector<8x128xf32>
    %241 = arith.mulf %235, %239 : vector<8x128xf32>
    %242 = arith.addf %240, %241 : vector<8x128xf32>
    %243 = math.tanh %242 : vector<8x128xf32>
    %244 = arith.mulf %237, %243 : vector<8x128xf32>
    %c7_i32 = arith.constant 7 : i32
    %245 = arith.index_cast %c7_i32 : i32 to index
    %c0_101 = arith.constant 0 : index
    %c0_102 = arith.constant 0 : index
    %246 = vector.load %arg9[%245, %c0_101, %c0_102] : memref<8x8x512xf32, #tpu.memory_space<vmem>>, vector<1x8x512xf32>
    %247 = vector.shape_cast %246 : vector<1x8x512xf32> to vector<8x512xf32>
    %248 = arith.truncf %244 : vector<8x128xf32> to vector<8x128xbf16>
    %249 = arith.extf %248 : vector<8x128xbf16> to vector<8x128xf32>
    %250 = arith.subf %244, %249 : vector<8x128xf32>
    %251 = arith.truncf %250 : vector<8x128xf32> to vector<8x128xbf16>
    %c0_103 = arith.constant 0 : index
    %c0_104 = arith.constant 0 : index
    %252 = vector.load %arg3[%c0_103, %c0_104] : memref<128x512xbf16, #tpu.memory_space<vmem>>, vector<128x512xbf16>
    %cst_105 = arith.constant dense<0.000000e+00> : vector<8x512xf32>
    %253 = tpu.matmul %248, %252, %cst_105 {dimension_numbers = #tpu.dot_dimension_numbers<[1], [0], [0], [1], [0, 0, 1, 1], [], []>} : vector<8x128xbf16>, vector<128x512xbf16>, vector<8x512xf32> -> vector<8x512xf32>
    %c0_106 = arith.constant 0 : index
    %c0_107 = arith.constant 0 : index
    %254 = vector.load %arg3[%c0_106, %c0_107] : memref<128x512xbf16, #tpu.memory_space<vmem>>, vector<128x512xbf16>
    %cst_108 = arith.constant dense<0.000000e+00> : vector<8x512xf32>
    %255 = tpu.matmul %251, %254, %cst_108 {dimension_numbers = #tpu.dot_dimension_numbers<[1], [0], [0], [1], [0, 0, 1, 1], [], []>} : vector<8x128xbf16>, vector<128x512xbf16>, vector<8x512xf32> -> vector<8x512xf32>
    %256 = arith.addf %253, %255 : vector<8x512xf32>
    %c0_109 = arith.constant 0 : index
    %c0_110 = arith.constant 0 : index
    %257 = vector.load %arg4[%c0_109, %c0_110] : memref<128x512xbf16, #tpu.memory_space<vmem>>, vector<128x512xbf16>
    %cst_111 = arith.constant dense<0.000000e+00> : vector<8x512xf32>
    %258 = tpu.matmul %248, %257, %cst_111 {dimension_numbers = #tpu.dot_dimension_numbers<[1], [0], [0], [1], [0, 0, 1, 1], [], []>} : vector<8x128xbf16>, vector<128x512xbf16>, vector<8x512xf32> -> vector<8x512xf32>
    %259 = arith.addf %256, %258 : vector<8x512xf32>
    %260 = arith.addf %247, %259 : vector<8x512xf32>
    %261 = vector.extract_strided_slice %260 {offsets = [0, 0], sizes = [8, 384], strides = [1, 1]} : vector<8x512xf32> to vector<8x384xf32>
    %262 = arith.negf %261 : vector<8x384xf32>
    %263 = math.exp %262 : vector<8x384xf32>
    %cst_112 = arith.constant 1.000000e+00 : f32
    %264 = vector.broadcast %cst_112 : f32 to vector<8x384xf32>
    %265 = arith.addf %264, %263 : vector<8x384xf32>
    %266 = arith.divf %264, %265 : vector<8x384xf32>
    %267 = vector.extract_strided_slice %266 {offsets = [0, 0], sizes = [8, 128], strides = [1, 1]} : vector<8x384xf32> to vector<8x128xf32>
    %268 = vector.extract_strided_slice %266 {offsets = [0, 128], sizes = [8, 128], strides = [1, 1]} : vector<8x384xf32> to vector<8x128xf32>
    %269 = vector.extract_strided_slice %266 {offsets = [0, 256], sizes = [8, 128], strides = [1, 1]} : vector<8x384xf32> to vector<8x128xf32>
    %270 = vector.extract_strided_slice %260 {offsets = [0, 384], sizes = [8, 128], strides = [1, 1]} : vector<8x512xf32> to vector<8x128xf32>
    %271 = math.tanh %270 : vector<8x128xf32>
    %272 = arith.mulf %268, %242 : vector<8x128xf32>
    %273 = arith.mulf %267, %271 : vector<8x128xf32>
    %274 = arith.addf %272, %273 : vector<8x128xf32>
    %275 = math.tanh %274 : vector<8x128xf32>
    %276 = arith.mulf %269, %275 : vector<8x128xf32>
    %c8_i32 = arith.constant 8 : i32
    %c0_113 = arith.constant 0 : index
    %c0_114 = arith.constant 0 : index
    %277 = vector.load %arg6[%c0_113, %c0_114] : memref<128x128xf32, #tpu.memory_space<vmem>>, vector<128x128xf32>
    %cst_115 = arith.constant dense<0.000000e+00> : vector<8x128xf32>
    %278 = tpu.matmul %276, %277, %cst_115 {dimension_numbers = #tpu.dot_dimension_numbers<[1], [0], [0], [1], [0, 0, 1, 1], [], []>} : vector<8x128xf32>, vector<128x128xf32>, vector<8x128xf32> -> vector<8x128xf32>
    %c0_116 = arith.constant 0 : index
    %c0_117 = arith.constant 0 : index
    %279 = vector.load %arg7[%c0_116, %c0_117] : memref<1x128xf32, #tpu.memory_space<vmem>>, vector<1x128xf32>
    %280 = vector.broadcast %279 : vector<1x128xf32> to vector<8x128xf32>
    %281 = arith.addf %278, %280 : vector<8x128xf32>
    %c0_118 = arith.constant 0 : index
    %c0_119 = arith.constant 0 : index
    %282 = vector.load %arg8[%c0_118, %c0_119] : memref<8x128xf32, #tpu.memory_space<vmem>>, vector<8x128xf32>
    tpu.vector_store %arg8[%c0_118, %c0_119], %281 {strides = array<i32>} : memref<8x128xf32, #tpu.memory_space<vmem>>, vector<8x128xf32>,
    return
  }
}

</mosaic_0001>

<llo_original>
// kernel: tpu_custom_call.1
$region0: #{tpu_custom_call.1}
  #allocation0 [shape = 'u32[]', space=smem, size = 0x4, offset = 0x4, fixed_abs, tag = 'smem constant byte address 0x4 - core index']
  #allocation1 [shape = 'u32[144,128]{1,0:T(1,128)}', space=vmem, size = 0x12000, scoped, tag = 'internal scratch']
  #allocation2 [shape = 'f32[8,8,512]{2,1,0:T(8,128)}', space=vmem, size = 0x20000, scoped, tag = 'scratch operand']
  %s0 = inlined_call_operand.hbm [shape: f32[8,8,96], index: 0, kind: input, shape index: {}]
  %s1 = inlined_call_operand.hbm [shape: bf16[96,512], index: 1, kind: input, shape index: {}]
  %s2 = inlined_call_operand.hbm [shape: bf16[96,512], index: 2, kind: input, shape index: {}]
  %s3 = inlined_call_operand.hbm [shape: bf16[128,512], index: 3, kind: input, shape index: {}]
  %s4 = inlined_call_operand.hbm [shape: bf16[128,512], index: 4, kind: input, shape index: {}]
  %s5 = inlined_call_operand.vmem [shape: f32[1,512], index: 5, kind: input, shape index: {}]
  %s6 = inlined_call_operand.hbm [shape: f32[128,128], index: 6, kind: input, shape index: {}]
  %s7 = inlined_call_operand.vmem [shape: f32[1,128], index: 7, kind: input, shape index: {}]
  %s8 = inlined_call_operand.hbm [shape: f32[8,128], index: 8, kind: output, shape index: {}]
  %s9 = sld [smem:[#allocation0]]
  $region66: #{tpu_custom_call.1} parent=0
    _
  %s11 = ssub.s32 1, %s9
  %s12 = scalar_select 0, %s11, %s9
  $region1: #{tpu_custom_call.1} parent=0
    #allocation3 [shape = 'u8[32768]{0}', space=vmem, size = 0x8000, scoped, tag = 'input window, operand 0, single buffered']
    #allocation4 [shape = 's32[1]{0}', space=sflag, size = 0x4, scoped, tag = 'scoped memory for tpu_custom_call.1']
    #allocation5 [shape = 's32[1]{0}', space=sflag, size = 0x4, scoped, tag = 'scoped memory for tpu_custom_call.1']
    #allocation6 [shape = 'u8[98304]{0}', space=vmem, size = 0x18000, scoped, tag = 'input window, operand 1, single buffered']
    #allocation7 [shape = 's32[1]{0}', space=sflag, size = 0x4, scoped, tag = 'scoped memory for tpu_custom_call.1']
    #allocation8 [shape = 'u8[98304]{0}', space=vmem, size = 0x18000, scoped, tag = 'input window, operand 2, single buffered']
    #allocation9 [shape = 'u8[131072]{0}', space=vmem, size = 0x20000, scoped, tag = 'input window, operand 3, single buffered']
    #allocation10 [shape = 's32[1]{0}', space=sflag, size = 0x4, scoped, tag = 'scoped memory for tpu_custom_call.1']
    #allocation11 [shape = 'u8[131072]{0}', space=vmem, size = 0x20000, scoped, tag = 'input window, operand 4, single buffered']
    #allocation12 [shape = 'u8[65536]{0}', space=vmem, size = 0x10000, scoped, tag = 'input window, operand 6, single buffered']
    #allocation13 [shape = 's32[1]{0}', space=sflag, size = 0x4, scoped, tag = 'scoped memory for tpu_custom_call.1']
    #allocation14 [shape = 'u8[4096]{0}', space=vmem, size = 0x1000, scoped, tag = 'output window, operand 0, single buffered']
    %13 = vsyncpa [#allocation4], 0
    %14 = vsyncpa [#allocation7], 0
    %15 = vsyncpa [#allocation10], 0
    %16 = vsyncpa [#allocation13], 0
    %17 = vsyncpa [#allocation5], 0
    // Predicated region
    $region2: #{tpu_custom_call.1} parent=1 // pred_check
      _
    $region3: #{tpu_custom_call.1} parent=1 // pred_check_branch
      %19 = sbr.rel (0) target = $region5
    $region4: #{tpu_custom_call.1} parent=1 // pred_region
      %s21 = ssub.s32 1024, 1024
      %22 = vsyncadd [#allocation4], %s21
      %s23 = sshll.u32 [#allocation3], 4
      %s24 = int_to_ptr.vmem [resolvable:$true] %s23
      %29 = dma.hbm_to_vmem [thread:$0]  %s0, 1024, %s24, [#allocation4], 128, 128, 8
    $region5: #{tpu_custom_call.1} parent=1 // pred_fallthru
      _
    // Predicated region
    $region6: #{tpu_custom_call.1} parent=1 // pred_check
      _
    $region7: #{tpu_custom_call.1} parent=1 // pred_check_branch
      %31 = sbr.rel (0) target = $region9
    $region8: #{tpu_custom_call.1} parent=1 // pred_region
      %s33 = ssub.s32 3072, 3072
      %34 = vsyncadd [#allocation7], %s33
      %s35 = sshll.u32 [#allocation6], 4
      %s36 = int_to_ptr.vmem [resolvable:$true] %s35
      %41 = dma.hbm_to_vmem [thread:$0]  %s1, 3072, %s36, [#allocation7], 256, 256, 16
    $region9: #{tpu_custom_call.1} parent=1 // pred_fallthru
      _
    // Predicated region
    $region10: #{tpu_custom_call.1} parent=1 // pred_check
      _
    $region11: #{tpu_custom_call.1} parent=1 // pred_check_branch
      %43 = sbr.rel (0) target = $region13
    $region12: #{tpu_custom_call.1} parent=1 // pred_region
      %s45 = ssub.s32 3072, 3072
      %46 = vsyncadd [#allocation7], %s45
      %s47 = sshll.u32 [#allocation8], 4
      %s48 = int_to_ptr.vmem [resolvable:$true] %s47
      %53 = dma.hbm_to_vmem [thread:$0]  %s2, 3072, %s48, [#allocation7], 256, 256, 16
    $region13: #{tpu_custom_call.1} parent=1 // pred_fallthru
      _
    // Predicated region
    $region14: #{tpu_custom_call.1} parent=1 // pred_check
      _
    $region15: #{tpu_custom_call.1} parent=1 // pred_check_branch
      %55 = sbr.rel (0) target = $region17
    $region16: #{tpu_custom_call.1} parent=1 // pred_region
      %s57 = ssub.s32 4096, 4096
      %58 = vsyncadd [#allocation10], %s57
      %s59 = sshll.u32 [#allocation9], 4
      %s60 = int_to_ptr.vmem [resolvable:$true] %s59
      %65 = dma.hbm_to_vmem [thread:$0]  %s3, 4096, %s60, [#allocation10], 256, 256, 16
    $region17: #{tpu_custom_call.1} parent=1 // pred_fallthru
      _
    // Predicated region
    $region18: #{tpu_custom_call.1} parent=1 // pred_check
      _
    $region19: #{tpu_custom_call.1} parent=1 // pred_check_branch
      %67 = sbr.rel (0) target = $region21
    $region20: #{tpu_custom_call.1} parent=1 // pred_region
      %s69 = ssub.s32 4096, 4096
      %70 = vsyncadd [#allocation10], %s69
      %s71 = sshll.u32 [#allocation11], 4
      %s72 = int_to_ptr.vmem [resolvable:$true] %s71
      %77 = dma.hbm_to_vmem [thread:$0]  %s4, 4096, %s72, [#allocation10], 256, 256, 16
    $region21: #{tpu_custom_call.1} parent=1 // pred_fallthru
      _
    // Predicated region
    $region22: #{tpu_custom_call.1} parent=1 // pred_check
      _
    $region23: #{tpu_custom_call.1} parent=1 // pred_check_branch
      %79 = sbr.rel (0) target = $region25
    $region24: #{tpu_custom_call.1} parent=1 // pred_region
      _
    $region25: #{tpu_custom_call.1} parent=1 // pred_fallthru
      _
    // Predicated region
    $region26: #{tpu_custom_call.1} parent=1 // pred_check
      _
    $region27: #{tpu_custom_call.1} parent=1 // pred_check_branch
      %81 = sbr.rel (0) target = $region29
    $region28: #{tpu_custom_call.1} parent=1 // pred_region
      %s83 = ssub.s32 2048, 2048
      %84 = vsyncadd [#allocation13], %s83
      %s85 = sshll.u32 [#allocation12], 4
      %s86 = int_to_ptr.vmem [resolvable:$true] %s85
      %91 = dma.hbm_to_vmem [thread:$0]  %s6, 2048, %s86, [#allocation13], 128, 128, 8
    $region29: #{tpu_custom_call.1} parent=1 // pred_fallthru
      _
    // Predicated region
    $region30: #{tpu_custom_call.1} parent=1 // pred_check
      _
    $region31: #{tpu_custom_call.1} parent=1 // pred_check_branch
      %93 = sbr.rel (0) target = $region33
    $region32: #{tpu_custom_call.1} parent=1 // pred_region
      _
    $region33: #{tpu_custom_call.1} parent=1 // pred_fallthru
      _
    // Predicated region
    $region34: #{tpu_custom_call.1} parent=1 // pred_check
      _
    $region35: #{tpu_custom_call.1} parent=1 // pred_check_branch
      %95 = sbr.rel (0) target = $region37
    $region36: #{tpu_custom_call.1} parent=1 // pred_region
      %96 = dma.done [#allocation4], 1024
    $region37: #{tpu_custom_call.1} parent=1 // pred_fallthru
      _
    // Predicated region
    $region38: #{tpu_custom_call.1} parent=1 // pred_check
      _
    $region39: #{tpu_custom_call.1} parent=1 // pred_check_branch
      %98 = sbr.rel (0) target = $region41
    $region40: #{tpu_custom_call.1} parent=1 // pred_region
      %99 = dma.done [#allocation7], 3072
    $region41: #{tpu_custom_call.1} parent=1 // pred_fallthru
      _
    // Predicated region
    $region42: #{tpu_custom_call.1} parent=1 // pred_check
      _
    $region43: #{tpu_custom_call.1} parent=1 // pred_check_branch
      %101 = sbr.rel (0) target = $region45
    $region44: #{tpu_custom_call.1} parent=1 // pred_region
      %102 = dma.done [#allocation7], 3072
    $region45: #{tpu_custom_call.1} parent=1 // pred_fallthru
      _
    // Predicated region
    $region46: #{tpu_custom_call.1} parent=1 // pred_check
      _
    $region47: #{tpu_custom_call.1} parent=1 // pred_check_branch
      %104 = sbr.rel (0) target = $region49
    $region48: #{tpu_custom_call.1} parent=1 // pred_region
      %105 = dma.done [#allocation10], 4096
    $region49: #{tpu_custom_call.1} parent=1 // pred_fallthru
      _
    // Predicated region
    $region50: #{tpu_custom_call.1} parent=1 // pred_check
      _
    $region51: #{tpu_custom_call.1} parent=1 // pred_check_branch
      %107 = sbr.rel (0) target = $region53
    $region52: #{tpu_custom_call.1} parent=1 // pred_region
      %108 = dma.done [#allocation10], 4096
    $region53: #{tpu_custom_call.1} parent=1 // pred_fallthru
      _
    // Predicated region
    $region54: #{tpu_custom_call.1} parent=1 // pred_check
      _
    $region55: #{tpu_custom_call.1} parent=1 // pred_check_branch
      %110 = sbr.rel (0) target = $region57
    $region56: #{tpu_custom_call.1} parent=1 // pred_region
      %111 = dma.done [#allocation13], 2048
    $region57: #{tpu_custom_call.1} parent=1 // pred_fallthru
      _
    %v113 = vld [vmem:[#allocation3] sm:$0xff]
    %v114 = vld [vmem:[#allocation3 + $0x8] sm:$0xff]
    %v115 = vld [vmem:[#allocation3 + $0x10] sm:$0xff]
    %v116 = vld [vmem:[#allocation3 + $0x18] sm:$0xff]
    %v117 = vld [vmem:[#allocation3 + $0x20] sm:$0xff]
    %v118 = vld [vmem:[#allocation3 + $0x28] sm:$0xff]
    %v119 = vld [vmem:[#allocation3 + $0x30] sm:$0xff]
    %v120 = vld [vmem:[#allocation3 + $0x38] sm:$0xff]
    %v121 = vpack.c.bf16 %v114, %v113
    %v122 = vpack.c.bf16 %v116, %v115
    %v123 = vpack.c.bf16 %v118, %v117
    %v124 = vpack.c.bf16 %v120, %v119
    %v125 = vunpack.c.l.bf16 %v121
    %v126 = vunpack.c.h.bf16 %v121
    %v127 = vunpack.c.l.bf16 %v122
    %v128 = vunpack.c.h.bf16 %v122
    %v129 = vunpack.c.l.bf16 %v123
    %v130 = vunpack.c.h.bf16 %v123
    %v131 = vunpack.c.l.bf16 %v124
    %v132 = vunpack.c.h.bf16 %v124
    %v133 = vsub.f32 %v113, %v125
    %v134 = vsub.f32 %v114, %v126
    %v135 = vsub.f32 %v115, %v127
    %v136 = vsub.f32 %v116, %v128
    %v137 = vsub.f32 %v117, %v129
    %v138 = vsub.f32 %v118, %v130
    %v139 = vsub.f32 %v119, %v131
    %v140 = vsub.f32 %v120, %v132
    %v141 = vpack.c.bf16 %v134, %v133
    %v142 = vpack.c.bf16 %v136, %v135
    %v143 = vpack.c.bf16 %v138, %v137
    %v144 = vpack.c.bf16 %v140, %v139
    %v145 = vld [vmem:[#allocation6] sm:$0xff]
    %v146 = vld [vmem:[#allocation6 + $0x8] sm:$0xff]
    %v147 = vld [vmem:[#allocation6 + $0x10] sm:$0xff]
    %v148 = vld [vmem:[#allocation6 + $0x18] sm:$0xff]
    %v149 = vld [vmem:[#allocation6 + $0x20] sm:$0xff]
    %v150 = vld [vmem:[#allocation6 + $0x28] sm:$0xff]
    %v151 = vld [vmem:[#allocation6 + $0x30] sm:$0xff]
    %v152 = vld [vmem:[#allocation6 + $0x38] sm:$0xff]
    %v153 = vld [vmem:[#allocation6 + $0x40] sm:$0xff]
    %v154 = vld [vmem:[#allocation6 + $0x48] sm:$0xff]
    %v155 = vld [vmem:[#allocation6 + $0x50] sm:$0xff]
    %v156 = vld [vmem:[#allocation6 + $0x58] sm:$0xff]
    %v157 = vld [vmem:[#allocation6 + $0x60] sm:$0xff]
    %v158 = vld [vmem:[#allocation6 + $0x68] sm:$0xff]
    %v159 = vld [vmem:[#allocation6 + $0x70] sm:$0xff]
    %v160 = vld [vmem:[#allocation6 + $0x78] sm:$0xff]
    %v161 = vld [vmem:[#allocation6 + $0x80] sm:$0xff]
    %v162 = vld [vmem:[#allocation6 + $0x88] sm:$0xff]
    %v163 = vld [vmem:[#allocation6 + $0x90] sm:$0xff]
    %v164 = vld [vmem:[#allocation6 + $0x98] sm:$0xff]
    %v165 = vld [vmem:[#allocation6 + $0xa0] sm:$0xff]
    %v166 = vld [vmem:[#allocation6 + $0xa8] sm:$0xff]
    %v167 = vld [vmem:[#allocation6 + $0xb0] sm:$0xff]
    %v168 = vld [vmem:[#allocation6 + $0xb8] sm:$0xff]
    %v193 = vunpack.c.l.b16 %v145
    %v194 = vunpack.c.h.b16 %v145
    %v195 = vunpack.c.l.b16 %v146
    %v196 = vunpack.c.h.b16 %v146
    %v197 = vunpack.c.l.b16 %v147
    %v198 = vunpack.c.h.b16 %v147
    %v199 = vunpack.c.l.b16 %v148
    %v200 = vunpack.c.h.b16 %v148
    %v201 = vunpack.c.l.b16 %v149
    %v202 = vunpack.c.h.b16 %v149
    %v203 = vunpack.c.l.b16 %v150
    %v204 = vunpack.c.h.b16 %v150
    %v205 = vunpack.c.l.b16 %v151
    %v206 = vunpack.c.h.b16 %v151
    %v207 = vunpack.c.l.b16 %v152
    %v208 = vunpack.c.h.b16 %v152
    %v209 = vunpack.c.l.b16 %v153
    %v210 = vunpack.c.h.b16 %v153
    %v211 = vunpack.c.l.b16 %v154
    %v212 = vunpack.c.h.b16 %v154
    %v213 = vunpack.c.l.b16 %v155
    %v214 = vunpack.c.h.b16 %v155
    %v215 = vunpack.c.l.b16 %v156
    %v216 = vunpack.c.h.b16 %v156
    %v217 = vunpack.c.l.b16 %v157
    %v218 = vunpack.c.h.b16 %v157
    %v219 = vunpack.c.l.b16 %v158
    %v220 = vunpack.c.h.b16 %v158
    %v221 = vunpack.c.l.b16 %v159
    %v222 = vunpack.c.h.b16 %v159
    %v223 = vunpack.c.l.b16 %v160
    %v224 = vunpack.c.h.b16 %v160
    %v225 = vunpack.c.l.b16 %v161
    %v226 = vunpack.c.h.b16 %v161
    %v227 = vunpack.c.l.b16 %v162
    %v228 = vunpack.c.h.b16 %v162
    %v229 = vunpack.c.l.b16 %v163
    %v230 = vunpack.c.h.b16 %v163
    %v231 = vunpack.c.l.b16 %v164
    %v232 = vunpack.c.h.b16 %v164
    %v233 = vunpack.c.l.b16 %v165
    %v234 = vunpack.c.h.b16 %v165
    %v235 = vunpack.c.l.b16 %v166
    %v236 = vunpack.c.h.b16 %v166
    %v237 = vunpack.c.l.b16 %v167
    %v238 = vunpack.c.h.b16 %v167
    %v239 = vunpack.c.l.b16 %v168
    %v240 = vunpack.c.h.b16 %v168
    %v241 = vpack.c.b16 %v197, %v193
    %v242 = vpack.c.b16 %v198, %v194
    %v243 = vpack.c.b16 %v199, %v195
    %v244 = vpack.c.b16 %v200, %v196
    %v245 = vpack.c.b16 %v205, %v201
    %v246 = vpack.c.b16 %v206, %v202
    %v247 = vpack.c.b16 %v207, %v203
    %v248 = vpack.c.b16 %v208, %v204
    %v249 = vpack.c.b16 %v213, %v209
    %v250 = vpack.c.b16 %v214, %v210
    %v251 = vpack.c.b16 %v215, %v211
    %v252 = vpack.c.b16 %v216, %v212
    %v253 = vpack.c.b16 %v221, %v217
    %v254 = vpack.c.b16 %v222, %v218
    %v255 = vpack.c.b16 %v223, %v219
    %v256 = vpack.c.b16 %v224, %v220
    %v257 = vpack.c.b16 %v229, %v225
    %v258 = vpack.c.b16 %v230, %v226
    %v259 = vpack.c.b16 %v231, %v227
    %v260 = vpack.c.b16 %v232, %v228
    %v261 = vpack.c.b16 %v237, %v233
    %v262 = vpack.c.b16 %v238, %v234
    %v263 = vpack.c.b16 %v239, %v235
    %v264 = vpack.c.b16 %v240, %v236
    %vm289 = vcmask 785408
    %v291 = vsel %vm289, %v141, 0
    %v294 = vsel %vm289, %v142, 0
    %v297 = vsel %vm289, %v143, 0
    %v300 = vsel %vm289, %v144, 0
    %302 = vmatprep.subr.bf16.mxu0 %v242
    %303 = vmatpush1.bf16.msra.mxu0 %v241
    %304 = vmatprep.subr.bf16.mxu0 %v246
    %305 = vmatpush1.bf16.msra.mxu0 %v245
    %306 = vmatprep.subr.bf16.mxu0 %v250
    %307 = vmatpush1.bf16.msra.mxu0 %v249
    %308 = vmatprep.subr.bf16.mxu0 %v254
    %309 = vmatpush1.bf16.msra.mxu0 %v253
    %310 = vmatprep.subr.bf16.mxu0 %v258
    %311 = vmatpush1.bf16.msra.mxu0 %v257
    %312 = vmatprep.subr.bf16.mxu0 %v262
    %313 = vmatpush1.bf16.msra.mxu0 %v261
    %314 = vmatprep.subr.bf16.mxu0 0
    %315 = vmatpush1.bf16.msra.mxu0 0
    %316 = vmatprep.subr.bf16.mxu0 0
    %317 = vmatpush1.bf16.msra.mxu0 0
    %318 = vmatprep.subr.bf16.mxu0 0
    %319 = vmatpush1.bf16.msra.mxu0 0
    %320 = vmatprep.subr.bf16.mxu0 0
    %321 = vmatpush1.bf16.msra.mxu0 0
    %322 = vmatprep.subr.bf16.mxu0 0
    %323 = vmatpush1.bf16.msra.mxu0 0
    %324 = vmatprep.subr.bf16.mxu0 0
    %325 = vmatpush1.bf16.msra.mxu0 0
    %326 = vmatprep.subr.bf16.mxu0 0
    %327 = vmatpush1.bf16.msra.mxu0 0
    %328 = vmatprep.subr.bf16.mxu0 0
    %329 = vmatpush1.bf16.msra.mxu0 0
    %330 = vmatprep.subr.bf16.mxu0 0
    %331 = vmatpush1.bf16.msra.mxu0 0
    %332 = vmatprep.subr.bf16.mxu0 0
    %333 = vmatpush1.bf16.msra.mxu0 0
    %334 = vmatprep.mubr.bf16.mxu0 0
    %335 = vmatmul.mubr.bf16.gmra.mrb[0].mxu0 %v291
    %v336 = vpop.f32.mrb[0].mxu0
    %v337 = vadd.f32 0.0, %v336
    %v338 = vpop.f32.mrb[0].mxu0
    %v339 = vadd.f32 0.0, %v338
    %v340 = vpop.f32.mrb[0].mxu0
    %v341 = vadd.f32 0.0, %v340
    %v342 = vpop.f32.mrb[0].mxu0
    %v343 = vadd.f32 0.0, %v342
    %344 = vmatprep.mubr.bf16.mxu0 0
    %345 = vmatmul.mubr.bf16.gmra.mrb[0].mxu0 %v294
    %v346 = vpop.f32.mrb[0].mxu0
    %v347 = vadd.f32 0.0, %v346
    %v348 = vpop.f32.mrb[0].mxu0
    %v349 = vadd.f32 0.0, %v348
    %v350 = vpop.f32.mrb[0].mxu0
    %v351 = vadd.f32 0.0, %v350
    %v352 = vpop.f32.mrb[0].mxu0
    %v353 = vadd.f32 0.0, %v352
    %354 = vmatprep.mubr.bf16.mxu0 0
    %355 = vmatmul.mubr.bf16.gmra.mrb[0].mxu0 %v297
    %v356 = vpop.f32.mrb[0].mxu0
    %v357 = vadd.f32 0.0, %v356
    %v358 = vpop.f32.mrb[0].mxu0
    %v359 = vadd.f32 0.0, %v358
    %v360 = vpop.f32.mrb[0].mxu0
    %v361 = vadd.f32 0.0, %v360
    %v362 = vpop.f32.mrb[0].mxu0
    %v363 = vadd.f32 0.0, %v362
    %364 = vmatprep.mubr.bf16.mxu0 0
    %365 = vmatmul.mubr.bf16.gmra.mrb[0].mxu0 %v300
    %v366 = vpop.f32.mrb[0].mxu0
    %v367 = vadd.f32 0.0, %v366
    %v368 = vpop.f32.mrb[0].mxu0
    %v369 = vadd.f32 0.0, %v368
    %v370 = vpop.f32.mrb[0].mxu0
    %v371 = vadd.f32 0.0, %v370
    %v372 = vpop.f32.mrb[0].mxu0
    %v373 = vadd.f32 0.0, %v372
    %374 = vdwg.mxu0
    %375 = vmatprep.subr.bf16.mxu0 %v244
    %376 = vmatpush1.bf16.msra.mxu0 %v243
    %377 = vmatprep.subr.bf16.mxu0 %v248
    %378 = vmatpush1.bf16.msra.mxu0 %v247
    %379 = vmatprep.subr.bf16.mxu0 %v252
    %380 = vmatpush1.bf16.msra.mxu0 %v251
    %381 = vmatprep.subr.bf16.mxu0 %v256
    %382 = vmatpush1.bf16.msra.mxu0 %v255
    %383 = vmatprep.subr.bf16.mxu0 %v260
    %384 = vmatpush1.bf16.msra.mxu0 %v259
    %385 = vmatprep.subr.bf16.mxu0 %v264
    %386 = vmatpush1.bf16.msra.mxu0 %v263
    %387 = vmatprep.subr.bf16.mxu0 0
    %388 = vmatpush1.bf16.msra.mxu0 0
    %389 = vmatprep.subr.bf16.mxu0 0
    %390 = vmatpush1.bf16.msra.mxu0 0
    %391 = vmatprep.subr.bf16.mxu0 0
    %392 = vmatpush1.bf16.msra.mxu0 0
    %393 = vmatprep.subr.bf16.mxu0 0
    %394 = vmatpush1.bf16.msra.mxu0 0
    %395 = vmatprep.subr.bf16.mxu0 0
    %396 = vmatpush1.bf16.msra.mxu0 0
    %397 = vmatprep.subr.bf16.mxu0 0
    %398 = vmatpush1.bf16.msra.mxu0 0
    %399 = vmatprep.subr.bf16.mxu0 0
    %400 = vmatpush1.bf16.msra.mxu0 0
    %401 = vmatprep.subr.bf16.mxu0 0
    %402 = vmatpush1.bf16.msra.mxu0 0
    %403 = vmatprep.subr.bf16.mxu0 0
    %404 = vmatpush1.bf16.msra.mxu0 0
    %405 = vmatprep.subr.bf16.mxu0 0
    %406 = vmatpush1.bf16.msra.mxu0 0
    %407 = vmatprep.mubr.bf16.mxu0 0
    %408 = vmatmul.mubr.bf16.gmra.mrb[0].mxu0 %v291
    %v409 = vpop.f32.mrb[0].mxu0
    %v410 = vadd.f32 0.0, %v409
    %v411 = vpop.f32.mrb[0].mxu0
    %v412 = vadd.f32 0.0, %v411
    %v413 = vpop.f32.mrb[0].mxu0
    %v414 = vadd.f32 0.0, %v413
    %v415 = vpop.f32.mrb[0].mxu0
    %v416 = vadd.f32 0.0, %v415
    %417 = vmatprep.mubr.bf16.mxu0 0
    %418 = vmatmul.mubr.bf16.gmra.mrb[0].mxu0 %v294
    %v419 = vpop.f32.mrb[0].mxu0
    %v420 = vadd.f32 0.0, %v419
    %v421 = vpop.f32.mrb[0].mxu0
    %v422 = vadd.f32 0.0, %v421
    %v423 = vpop.f32.mrb[0].mxu0
    %v424 = vadd.f32 0.0, %v423
    %v425 = vpop.f32.mrb[0].mxu0
    %v426 = vadd.f32 0.0, %v425
    %427 = vmatprep.mubr.bf16.mxu0 0
    %428 = vmatmul.mubr.bf16.gmra.mrb[0].mxu0 %v297
    %v429 = vpop.f32.mrb[0].mxu0
    %v430 = vadd.f32 0.0, %v429
    %v431 = vpop.f32.mrb[0].mxu0
    %v432 = vadd.f32 0.0, %v431
    %v433 = vpop.f32.mrb[0].mxu0
    %v434 = vadd.f32 0.0, %v433
    %v435 = vpop.f32.mrb[0].mxu0
    %v436 = vadd.f32 0.0, %v435
    %437 = vmatprep.mubr.bf16.mxu0 0
    %438 = vmatmul.mubr.bf16.gmra.mrb[0].mxu0 %v300
    %v439 = vpop.f32.mrb[0].mxu0
    %v440 = vadd.f32 0.0, %v439
    %v441 = vpop.f32.mrb[0].mxu0
    %v442 = vadd.f32 0.0, %v441
    %v443 = vpop.f32.mrb[0].mxu0
    %v444 = vadd.f32 0.0, %v443
    %v445 = vpop.f32.mrb[0].mxu0
    %v446 = vadd.f32 0.0, %v445
    %447 = vdwg.mxu0
    %v449 = vsel %vm289, %v121, 0
    %v452 = vsel %vm289, %v122, 0
    %v455 = vsel %vm289, %v123, 0
    %v458 = vsel %vm289, %v124, 0
    %460 = vmatprep.subr.bf16.mxu0 %v242
    %461 = vmatpush1.bf16.msra.mxu0 %v241
    %462 = vmatprep.subr.bf16.mxu0 %v246
    %463 = vmatpush1.bf16.msra.mxu0 %v245
    %464 = vmatprep.subr.bf16.mxu0 %v250
    %465 = vmatpush1.bf16.msra.mxu0 %v249
    %466 = vmatprep.subr.bf16.mxu0 %v254
    %467 = vmatpush1.bf16.msra.mxu0 %v253
    %468 = vmatprep.subr.bf16.mxu0 %v258
    %469 = vmatpush1.bf16.msra.mxu0 %v257
    %470 = vmatprep.subr.bf16.mxu0 %v262
    %471 = vmatpush1.bf16.msra.mxu0 %v261
    %472 = vmatprep.subr.bf16.mxu0 0
    %473 = vmatpush1.bf16.msra.mxu0 0
    %474 = vmatprep.subr.bf16.mxu0 0
    %475 = vmatpush1.bf16.msra.mxu0 0
    %476 = vmatprep.subr.bf16.mxu0 0
    %477 = vmatpush1.bf16.msra.mxu0 0
    %478 = vmatprep.subr.bf16.mxu0 0
    %479 = vmatpush1.bf16.msra.mxu0 0
    %480 = vmatprep.subr.bf16.mxu0 0
    %481 = vmatpush1.bf16.msra.mxu0 0
    %482 = vmatprep.subr.bf16.mxu0 0
    %483 = vmatpush1.bf16.msra.mxu0 0
    %484 = vmatprep.subr.bf16.mxu0 0
    %485 = vmatpush1.bf16.msra.mxu0 0
    %486 = vmatprep.subr.bf16.mxu0 0
    %487 = vmatpush1.bf16.msra.mxu0 0
    %488 = vmatprep.subr.bf16.mxu0 0
    %489 = vmatpush1.bf16.msra.mxu0 0
    %490 = vmatprep.subr.bf16.mxu0 0
    %491 = vmatpush1.bf16.msra.mxu0 0
    %492 = vmatprep.mubr.bf16.mxu0 0
    %493 = vmatmul.mubr.bf16.gmra.mrb[0].mxu0 %v449
    %v494 = vpop.f32.mrb[0].mxu0
    %v495 = vadd.f32 %v337, %v494
    %v496 = vpop.f32.mrb[0].mxu0
    %v497 = vadd.f32 %v339, %v496
    %v498 = vpop.f32.mrb[0].mxu0
    %v499 = vadd.f32 %v341, %v498
    %v500 = vpop.f32.mrb[0].mxu0
    %v501 = vadd.f32 %v343, %v500
    %502 = vmatprep.mubr.bf16.mxu0 0
    %503 = vmatmul.mubr.bf16.gmra.mrb[0].mxu0 %v452
    %v504 = vpop.f32.mrb[0].mxu0
    %v505 = vadd.f32 %v347, %v504
    %v506 = vpop.f32.mrb[0].mxu0
    %v507 = vadd.f32 %v349, %v506
    %v508 = vpop.f32.mrb[0].mxu0
    %v509 = vadd.f32 %v351, %v508
    %v510 = vpop.f32.mrb[0].mxu0
    %v511 = vadd.f32 %v353, %v510
    %512 = vmatprep.mubr.bf16.mxu0 0
    %513 = vmatmul.mubr.bf16.gmra.mrb[0].mxu0 %v455
    %v514 = vpop.f32.mrb[0].mxu0
    %v515 = vadd.f32 %v357, %v514
    %v516 = vpop.f32.mrb[0].mxu0
    %v517 = vadd.f32 %v359, %v516
    %v518 = vpop.f32.mrb[0].mxu0
    %v519 = vadd.f32 %v361, %v518
    %v520 = vpop.f32.mrb[0].mxu0
    %v521 = vadd.f32 %v363, %v520
    %522 = vmatprep.mubr.bf16.mxu0 0
    %523 = vmatmul.mubr.bf16.gmra.mrb[0].mxu0 %v458
    %v524 = vpop.f32.mrb[0].mxu0
    %v525 = vadd.f32 %v367, %v524
    %v526 = vpop.f32.mrb[0].mxu0
    %v527 = vadd.f32 %v369, %v526
    %v528 = vpop.f32.mrb[0].mxu0
    %v529 = vadd.f32 %v371, %v528
    %v530 = vpop.f32.mrb[0].mxu0
    %v531 = vadd.f32 %v373, %v530
    %532 = vdwg.mxu0
    %533 = vmatprep.subr.bf16.mxu0 %v244
    %534 = vmatpush1.bf16.msra.mxu0 %v243
    %535 = vmatprep.subr.bf16.mxu0 %v248
    %536 = vmatpush1.bf16.msra.mxu0 %v247
    %537 = vmatprep.subr.bf16.mxu0 %v252
    %538 = vmatpush1.bf16.msra.mxu0 %v251
    %539 = vmatprep.subr.bf16.mxu0 %v256
    %540 = vmatpush1.bf16.msra.mxu0 %v255
    %541 = vmatprep.subr.bf16.mxu0 %v260
    %542 = vmatpush1.bf16.msra.mxu0 %v259
    %543 = vmatprep.subr.bf16.mxu0 %v264
    %544 = vmatpush1.bf16.msra.mxu0 %v263
    %545 = vmatprep.subr.bf16.mxu0 0
    %546 = vmatpush1.bf16.msra.mxu0 0
    %547 = vmatprep.subr.bf16.mxu0 0
    %548 = vmatpush1.bf16.msra.mxu0 0
    %549 = vmatprep.subr.bf16.mxu0 0
    %550 = vmatpush1.bf16.msra.mxu0 0
    %551 = vmatprep.subr.bf16.mxu0 0
    %552 = vmatpush1.bf16.msra.mxu0 0
    %553 = vmatprep.subr.bf16.mxu0 0
    %554 = vmatpush1.bf16.msra.mxu0 0
    %555 = vmatprep.subr.bf16.mxu0 0
    %556 = vmatpush1.bf16.msra.mxu0 0
    %557 = vmatprep.subr.bf16.mxu0 0
    %558 = vmatpush1.bf16.msra.mxu0 0
    %559 = vmatprep.subr.bf16.mxu0 0
    %560 = vmatpush1.bf16.msra.mxu0 0
    %561 = vmatprep.subr.bf16.mxu0 0
    %562 = vmatpush1.bf16.msra.mxu0 0
    %563 = vmatprep.subr.bf16.mxu0 0
    %564 = vmatpush1.bf16.msra.mxu0 0
    %565 = vmatprep.mubr.bf16.mxu0 0
    %566 = vmatmul.mubr.bf16.gmra.mrb[0].mxu0 %v449
    %v567 = vpop.f32.mrb[0].mxu0
    %v568 = vadd.f32 %v410, %v567
    %v569 = vpop.f32.mrb[0].mxu0
    %v570 = vadd.f32 %v412, %v569
    %v571 = vpop.f32.mrb[0].mxu0
    %v572 = vadd.f32 %v414, %v571
    %v573 = vpop.f32.mrb[0].mxu0
    %v574 = vadd.f32 %v416, %v573
    %575 = vmatprep.mubr.bf16.mxu0 0
    %576 = vmatmul.mubr.bf16.gmra.mrb[0].mxu0 %v452
    %v577 = vpop.f32.mrb[0].mxu0
    %v578 = vadd.f32 %v420, %v577
    %v579 = vpop.f32.mrb[0].mxu0
    %v580 = vadd.f32 %v422, %v579
    %v581 = vpop.f32.mrb[0].mxu0
    %v582 = vadd.f32 %v424, %v581
    %v583 = vpop.f32.mrb[0].mxu0
    %v584 = vadd.f32 %v426, %v583
    %585 = vmatprep.mubr.bf16.mxu0 0
    %586 = vmatmul.mubr.bf16.gmra.mrb[0].mxu0 %v455
    %v587 = vpop.f32.mrb[0].mxu0
    %v588 = vadd.f32 %v430, %v587
    %v589 = vpop.f32.mrb[0].mxu0
    %v590 = vadd.f32 %v432, %v589
    %v591 = vpop.f32.mrb[0].mxu0
    %v592 = vadd.f32 %v434, %v591
    %v593 = vpop.f32.mrb[0].mxu0
    %v594 = vadd.f32 %v436, %v593
    %595 = vmatprep.mubr.bf16.mxu0 0
    %596 = vmatmul.mubr.bf16.gmra.mrb[0].mxu0 %v458
    %v597 = vpop.f32.mrb[0].mxu0
    %v598 = vadd.f32 %v440, %v597
    %v599 = vpop.f32.mrb[0].mxu0
    %v600 = vadd.f32 %v442, %v599
    %v601 = vpop.f32.mrb[0].mxu0
    %v602 = vadd.f32 %v444, %v601
    %v603 = vpop.f32.mrb[0].mxu0
    %v604 = vadd.f32 %v446, %v603
    %605 = vdwg.mxu0
    %v606 = vld [vmem:[#allocation8] sm:$0xff]
    %v607 = vld [vmem:[#allocation8 + $0x8] sm:$0xff]
    %v608 = vld [vmem:[#allocation8 + $0x10] sm:$0xff]
    %v609 = vld [vmem:[#allocation8 + $0x18] sm:$0xff]
    %v610 = vld [vmem:[#allocation8 + $0x20] sm:$0xff]
    %v611 = vld [vmem:[#allocation8 + $0x28] sm:$0xff]
    %v612 = vld [vmem:[#allocation8 + $0x30] sm:$0xff]
    %v613 = vld [vmem:[#allocation8 + $0x38] sm:$0xff]
    %v614 = vld [vmem:[#allocation8 + $0x40] sm:$0xff]
    %v615 = vld [vmem:[#allocation8 + $0x48] sm:$0xff]
    %v616 = vld [vmem:[#allocation8 + $0x50] sm:$0xff]
    %v617 = vld [vmem:[#allocation8 + $0x58] sm:$0xff]
    %v618 = vld [vmem:[#allocation8 + $0x60] sm:$0xff]
    %v619 = vld [vmem:[#allocation8 + $0x68] sm:$0xff]
    %v620 = vld [vmem:[#allocation8 + $0x70] sm:$0xff]
    %v621 = vld [vmem:[#allocation8 + $0x78] sm:$0xff]
    %v622 = vld [vmem:[#allocation8 + $0x80] sm:$0xff]
    %v623 = vld [vmem:[#allocation8 + $0x88] sm:$0xff]
    %v624 = vld [vmem:[#allocation8 + $0x90] sm:$0xff]
    %v625 = vld [vmem:[#allocation8 + $0x98] sm:$0xff]
    %v626 = vld [vmem:[#allocation8 + $0xa0] sm:$0xff]
    %v627 = vld [vmem:[#allocation8 + $0xa8] sm:$0xff]
    %v628 = vld [vmem:[#allocation8 + $0xb0] sm:$0xff]
    %v629 = vld [vmem:[#allocation8 + $0xb8] sm:$0xff]
    %v654 = vunpack.c.l.b16 %v606
    %v655 = vunpack.c.h.b16 %v606
    %v656 = vunpack.c.l.b16 %v607
    %v657 = vunpack.c.h.b16 %v607
    %v658 = vunpack.c.l.b16 %v608
    %v659 = vunpack.c.h.b16 %v608
    %v660 = vunpack.c.l.b16 %v609
    %v661 = vunpack.c.h.b16 %v609
    %v662 = vunpack.c.l.b16 %v610
    %v663 = vunpack.c.h.b16 %v610
    %v664 = vunpack.c.l.b16 %v611
    %v665 = vunpack.c.h.b16 %v611
    %v666 = vunpack.c.l.b16 %v612
    %v667 = vunpack.c.h.b16 %v612
    %v668 = vunpack.c.l.b16 %v613
    %v669 = vunpack.c.h.b16 %v613
    %v670 = vunpack.c.l.b16 %v614
    %v671 = vunpack.c.h.b16 %v614
    %v672 = vunpack.c.l.b16 %v615
    %v673 = vunpack.c.h.b16 %v615
    %v674 = vunpack.c.l.b16 %v616
    %v675 = vunpack.c.h.b16 %v616
    %v676 = vunpack.c.l.b16 %v617
    %v677 = vunpack.c.h.b16 %v617
    %v678 = vunpack.c.l.b16 %v618
    %v679 = vunpack.c.h.b16 %v618
    %v680 = vunpack.c.l.b16 %v619
    %v681 = vunpack.c.h.b16 %v619
    %v682 = vunpack.c.l.b16 %v620
    %v683 = vunpack.c.h.b16 %v620
    %v684 = vunpack.c.l.b16 %v621
    %v685 = vunpack.c.h.b16 %v621
    %v686 = vunpack.c.l.b16 %v622
    %v687 = vunpack.c.h.b16 %v622
    %v688 = vunpack.c.l.b16 %v623
    %v689 = vunpack.c.h.b16 %v623
    %v690 = vunpack.c.l.b16 %v624
    %v691 = vunpack.c.h.b16 %v624
    %v692 = vunpack.c.l.b16 %v625
    %v693 = vunpack.c.h.b16 %v625
    %v694 = vunpack.c.l.b16 %v626
    %v695 = vunpack.c.h.b16 %v626
    %v696 = vunpack.c.l.b16 %v627
    %v697 = vunpack.c.h.b16 %v627
    %v698 = vunpack.c.l.b16 %v628
    %v699 = vunpack.c.h.b16 %v628
    %v700 = vunpack.c.l.b16 %v629
    %v701 = vunpack.c.h.b16 %v629
    %v702 = vpack.c.b16 %v658, %v654
    %v703 = vpack.c.b16 %v659, %v655
    %v704 = vpack.c.b16 %v660, %v656
    %v705 = vpack.c.b16 %v661, %v657
    %v706 = vpack.c.b16 %v666, %v662
    %v707 = vpack.c.b16 %v667, %v663
    %v708 = vpack.c.b16 %v668, %v664
    %v709 = vpack.c.b16 %v669, %v665
    %v710 = vpack.c.b16 %v674, %v670
    %v711 = vpack.c.b16 %v675, %v671
    %v712 = vpack.c.b16 %v676, %v672
    %v713 = vpack.c.b16 %v677, %v673
    %v714 = vpack.c.b16 %v682, %v678
    %v715 = vpack.c.b16 %v683, %v679
    %v716 = vpack.c.b16 %v684, %v680
    %v717 = vpack.c.b16 %v685, %v681
    %v718 = vpack.c.b16 %v690, %v686
    %v719 = vpack.c.b16 %v691, %v687
    %v720 = vpack.c.b16 %v692, %v688
    %v721 = vpack.c.b16 %v693, %v689
    %v722 = vpack.c.b16 %v698, %v694
    %v723 = vpack.c.b16 %v699, %v695
    %v724 = vpack.c.b16 %v700, %v696
    %v725 = vpack.c.b16 %v701, %v697
    %750 = vmatprep.subr.bf16.mxu0 %v703
    %751 = vmatpush1.bf16.msra.mxu0 %v702
    %752 = vmatprep.subr.bf16.mxu0 %v707
    %753 = vmatpush1.bf16.msra.mxu0 %v706
    %754 = vmatprep.subr.bf16.mxu0 %v711
    %755 = vmatpush1.bf16.msra.mxu0 %v710
    %756 = vmatprep.subr.bf16.mxu0 %v715
    %757 = vmatpush1.bf16.msra.mxu0 %v714
    %758 = vmatprep.subr.bf16.mxu0 %v719
    %759 = vmatpush1.bf16.msra.mxu0 %v718
    %760 = vmatprep.subr.bf16.mxu0 %v723
    %761 = vmatpush1.bf16.msra.mxu0 %v722
    %762 = vmatprep.subr.bf16.mxu0 0
    %763 = vmatpush1.bf16.msra.mxu0 0
    %764 = vmatprep.subr.bf16.mxu0 0
    %765 = vmatpush1.bf16.msra.mxu0 0
    %766 = vmatprep.subr.bf16.mxu0 0
    %767 = vmatpush1.bf16.msra.mxu0 0
    %768 = vmatprep.subr.bf16.mxu0 0
    %769 = vmatpush1.bf16.msra.mxu0 0
    %770 = vmatprep.subr.bf16.mxu0 0
    %771 = vmatpush1.bf16.msra.mxu0 0
    %772 = vmatprep.subr.bf16.mxu0 0
    %773 = vmatpush1.bf16.msra.mxu0 0
    %774 = vmatprep.subr.bf16.mxu0 0
    %775 = vmatpush1.bf16.msra.mxu0 0
    %776 = vmatprep.subr.bf16.mxu0 0
    %777 = vmatpush1.bf16.msra.mxu0 0
    %778 = vmatprep.subr.bf16.mxu0 0
    %779 = vmatpush1.bf16.msra.mxu0 0
    %780 = vmatprep.subr.bf16.mxu0 0
    %781 = vmatpush1.bf16.msra.mxu0 0
    %782 = vmatprep.mubr.bf16.mxu0 0
    %783 = vmatmul.mubr.bf16.gmra.mrb[0].mxu0 %v449
    %v784 = vpop.f32.mrb[0].mxu0
    %v785 = vadd.f32 0.0, %v784
    %v786 = vpop.f32.mrb[0].mxu0
    %v787 = vadd.f32 0.0, %v786
    %v788 = vpop.f32.mrb[0].mxu0
    %v789 = vadd.f32 0.0, %v788
    %v790 = vpop.f32.mrb[0].mxu0
    %v791 = vadd.f32 0.0, %v790
    %792 = vmatprep.mubr.bf16.mxu0 0
    %793 = vmatmul.mubr.bf16.gmra.mrb[0].mxu0 %v452
    %v794 = vpop.f32.mrb[0].mxu0
    %v795 = vadd.f32 0.0, %v794
    %v796 = vpop.f32.mrb[0].mxu0
    %v797 = vadd.f32 0.0, %v796
    %v798 = vpop.f32.mrb[0].mxu0
    %v799 = vadd.f32 0.0, %v798
    %v800 = vpop.f32.mrb[0].mxu0
    %v801 = vadd.f32 0.0, %v800
    %802 = vmatprep.mubr.bf16.mxu0 0
    %803 = vmatmul.mubr.bf16.gmra.mrb[0].mxu0 %v455
    %v804 = vpop.f32.mrb[0].mxu0
    %v805 = vadd.f32 0.0, %v804
    %v806 = vpop.f32.mrb[0].mxu0
    %v807 = vadd.f32 0.0, %v806
    %v808 = vpop.f32.mrb[0].mxu0
    %v809 = vadd.f32 0.0, %v808
    %v810 = vpop.f32.mrb[0].mxu0
    %v811 = vadd.f32 0.0, %v810
    %812 = vmatprep.mubr.bf16.mxu0 0
    %813 = vmatmul.mubr.bf16.gmra.mrb[0].mxu0 %v458
    %v814 = vpop.f32.mrb[0].mxu0
    %v815 = vadd.f32 0.0, %v814
    %v816 = vpop.f32.mrb[0].mxu0
    %v817 = vadd.f32 0.0, %v816
    %v818 = vpop.f32.mrb[0].mxu0
    %v819 = vadd.f32 0.0, %v818
    %v820 = vpop.f32.mrb[0].mxu0
    %v821 = vadd.f32 0.0, %v820
    %822 = vdwg.mxu0
    %823 = vmatprep.subr.bf16.mxu0 %v705
    %824 = vmatpush1.bf16.msra.mxu0 %v704
    %825 = vmatprep.subr.bf16.mxu0 %v709
    %826 = vmatpush1.bf16.msra.mxu0 %v708
    %827 = vmatprep.subr.bf16.mxu0 %v713
    %828 = vmatpush1.bf16.msra.mxu0 %v712
    %829 = vmatprep.subr.bf16.mxu0 %v717
    %830 = vmatpush1.bf16.msra.mxu0 %v716
    %831 = vmatprep.subr.bf16.mxu0 %v721
    %832 = vmatpush1.bf16.msra.mxu0 %v720
    %833 = vmatprep.subr.bf16.mxu0 %v725
    %834 = vmatpush1.bf16.msra.mxu0 %v724
    %835 = vmatprep.subr.bf16.mxu0 0
    %836 = vmatpush1.bf16.msra.mxu0 0
    %837 = vmatprep.subr.bf16.mxu0 0
    %838 = vmatpush1.bf16.msra.mxu0 0
    %839 = vmatprep.subr.bf16.mxu0 0
    %840 = vmatpush1.bf16.msra.mxu0 0
    %841 = vmatprep.subr.bf16.mxu0 0
    %842 = vmatpush1.bf16.msra.mxu0 0
    %843 = vmatprep.subr.bf16.mxu0 0
    %844 = vmatpush1.bf16.msra.mxu0 0
    %845 = vmatprep.subr.bf16.mxu0 0
    %846 = vmatpush1.bf16.msra.mxu0 0
    %847 = vmatprep.subr.bf16.mxu0 0
    %848 = vmatpush1.bf16.msra.mxu0 0
    %849 = vmatprep.subr.bf16.mxu0 0
    %850 = vmatpush1.bf16.msra.mxu0 0
    %851 = vmatprep.subr.bf16.mxu0 0
    %852 = vmatpush1.bf16.msra.mxu0 0
    %853 = vmatprep.subr.bf16.mxu0 0
    %854 = vmatpush1.bf16.msra.mxu0 0
    %855 = vmatprep.mubr.bf16.mxu0 0
    %856 = vmatmul.mubr.bf16.gmra.mrb[0].mxu0 %v449
    %v857 = vpop.f32.mrb[0].mxu0
    %v858 = vadd.f32 0.0, %v857
    %v859 = vpop.f32.mrb[0].mxu0
    %v860 = vadd.f32 0.0, %v859
    %v861 = vpop.f32.mrb[0].mxu0
    %v862 = vadd.f32 0.0, %v861
    %v863 = vpop.f32.mrb[0].mxu0
    %v864 = vadd.f32 0.0, %v863
    %865 = vmatprep.mubr.bf16.mxu0 0
    %866 = vmatmul.mubr.bf16.gmra.mrb[0].mxu0 %v452
    %v867 = vpop.f32.mrb[0].mxu0
    %v868 = vadd.f32 0.0, %v867
    %v869 = vpop.f32.mrb[0].mxu0
    %v870 = vadd.f32 0.0, %v869
    %v871 = vpop.f32.mrb[0].mxu0
    %v872 = vadd.f32 0.0, %v871
    %v873 = vpop.f32.mrb[0].mxu0
    %v874 = vadd.f32 0.0, %v873
    %875 = vmatprep.mubr.bf16.mxu0 0
    %876 = vmatmul.mubr.bf16.gmra.mrb[0].mxu0 %v455
    %v877 = vpop.f32.mrb[0].mxu0
    %v878 = vadd.f32 0.0, %v877
    %v879 = vpop.f32.mrb[0].mxu0
    %v880 = vadd.f32 0.0, %v879
    %v881 = vpop.f32.mrb[0].mxu0
    %v882 = vadd.f32 0.0, %v881
    %v883 = vpop.f32.mrb[0].mxu0
    %v884 = vadd.f32 0.0, %v883
    %885 = vmatprep.mubr.bf16.mxu0 0
    %886 = vmatmul.mubr.bf16.gmra.mrb[0].mxu0 %v458
    %v887 = vpop.f32.mrb[0].mxu0
    %v888 = vadd.f32 0.0, %v887
    %v889 = vpop.f32.mrb[0].mxu0
    %v890 = vadd.f32 0.0, %v889
    %v891 = vpop.f32.mrb[0].mxu0
    %v892 = vadd.f32 0.0, %v891
    %v893 = vpop.f32.mrb[0].mxu0
    %v894 = vadd.f32 0.0, %v893
    %895 = vdwg.mxu0
    %v896 = vadd.f32 %v495, %v785
    %v897 = vadd.f32 %v497, %v787
    %v898 = vadd.f32 %v568, %v858
    %v899 = vadd.f32 %v570, %v860
    %v900 = vadd.f32 %v499, %v789
    %v901 = vadd.f32 %v501, %v791
    %v902 = vadd.f32 %v572, %v862
    %v903 = vadd.f32 %v574, %v864
    %v904 = vadd.f32 %v505, %v795
    %v905 = vadd.f32 %v507, %v797
    %v906 = vadd.f32 %v578, %v868
    %v907 = vadd.f32 %v580, %v870
    %v908 = vadd.f32 %v509, %v799
    %v909 = vadd.f32 %v511, %v801
    %v910 = vadd.f32 %v582, %v872
    %v911 = vadd.f32 %v584, %v874
    %v912 = vadd.f32 %v515, %v805
    %v913 = vadd.f32 %v517, %v807
    %v914 = vadd.f32 %v588, %v878
    %v915 = vadd.f32 %v590, %v880
    %v916 = vadd.f32 %v519, %v809
    %v917 = vadd.f32 %v521, %v811
    %v918 = vadd.f32 %v592, %v882
    %v919 = vadd.f32 %v594, %v884
    %v920 = vadd.f32 %v525, %v815
    %v921 = vadd.f32 %v527, %v817
    %v922 = vadd.f32 %v598, %v888
    %v923 = vadd.f32 %v600, %v890
    %v924 = vadd.f32 %v529, %v819
    %v925 = vadd.f32 %v531, %v821
    %v926 = vadd.f32 %v602, %v892
    %v927 = vadd.f32 %v604, %v894
    %v928 = vld [vmem:[%s5] sm:$0xf]
    %v930 = vlaneseq
    %v931 = vshrl.u32 %v930, 7
    %v932 = vsub.s32 0, %v931
    %v933 = vrot.slane %v928, %v932
    %v934 = vlaneseq
    %v935 = vshrl.u32 %v934, 7
    %v936 = vsub.s32 1, %v935
    %v937 = vrot.slane %v928, %v936
    %v938 = vlaneseq
    %v939 = vshrl.u32 %v938, 7
    %v940 = vsub.s32 2, %v939
    %v941 = vrot.slane %v928, %v940
    %v942 = vlaneseq
    %v943 = vshrl.u32 %v942, 7
    %v944 = vsub.s32 3, %v943
    %v945 = vrot.slane %v928, %v944
    %v950 = vadd.f32 %v896, %v933
    %v951 = vadd.f32 %v897, %v937
    %v952 = vadd.f32 %v898, %v941
    %v953 = vadd.f32 %v899, %v945
    %v954 = vadd.f32 %v900, %v933
    %v955 = vadd.f32 %v901, %v937
    %v956 = vadd.f32 %v902, %v941
    %v957 = vadd.f32 %v903, %v945
    %v958 = vadd.f32 %v904, %v933
    %v959 = vadd.f32 %v905, %v937
    %v960 = vadd.f32 %v906, %v941
    %v961 = vadd.f32 %v907, %v945
    %v962 = vadd.f32 %v908, %v933
    %v963 = vadd.f32 %v909, %v937
    %v964 = vadd.f32 %v910, %v941
    %v965 = vadd.f32 %v911, %v945
    %v966 = vadd.f32 %v912, %v933
    %v967 = vadd.f32 %v913, %v937
    %v968 = vadd.f32 %v914, %v941
    %v969 = vadd.f32 %v915, %v945
    %v970 = vadd.f32 %v916, %v933
    %v971 = vadd.f32 %v917, %v937
    %v972 = vadd.f32 %v918, %v941
    %v973 = vadd.f32 %v919, %v945
    %v974 = vadd.f32 %v920, %v933
    %v975 = vadd.f32 %v921, %v937
    %v976 = vadd.f32 %v922, %v941
    %v977 = vadd.f32 %v923, %v945
    %v978 = vadd.f32 %v924, %v933
    %v979 = vadd.f32 %v925, %v937
    %v980 = vadd.f32 %v926, %v941
    %v981 = vadd.f32 %v927, %v945
    %982 = vst [vmem:[#allocation2] sm:$0xff] %v950
    %983 = vst [vmem:[#allocation2 + $0x8] sm:$0xff] %v951
    %984 = vst [vmem:[#allocation2 + $0x10] sm:$0xff] %v952
    %985 = vst [vmem:[#allocation2 + $0x18] sm:$0xff] %v953
    %986 = vst [vmem:[#allocation2 + $0x20] sm:$0xff] %v954
    %987 = vst [vmem:[#allocation2 + $0x28] sm:$0xff] %v955
    %988 = vst [vmem:[#allocation2 + $0x30] sm:$0xff] %v956
    %989 = vst [vmem:[#allocation2 + $0x38] sm:$0xff] %v957
    %990 = vst [vmem:[#allocation2 + $0x40] sm:$0xff] %v958
    %991 = vst [vmem:[#allocation2 + $0x48] sm:$0xff] %v959
    %992 = vst [vmem:[#allocation2 + $0x50] sm:$0xff] %v960
    %993 = vst [vmem:[#allocation2 + $0x58] sm:$0xff] %v961
    %994 = vst [vmem:[#allocation2 + $0x60] sm:$0xff] %v962
    %995 = vst [vmem:[#allocation2 + $0x68] sm:$0xff] %v963
    %996 = vst [vmem:[#allocation2 + $0x70] sm:$0xff] %v964
    %997 = vst [vmem:[#allocation2 + $0x78] sm:$0xff] %v965
    %998 = vst [vmem:[#allocation2 + $0x80] sm:$0xff] %v966
    %999 = vst [vmem:[#allocation2 + $0x88] sm:$0xff] %v967
    %1000 = vst [vmem:[#allocation2 + $0x90] sm:$0xff] %v968
    %1001 = vst [vmem:[#allocation2 + $0x98] sm:$0xff] %v969
    %1002 = vst [vmem:[#allocation2 + $0xa0] sm:$0xff] %v970
    %1003 = vst [vmem:[#allocation2 + $0xa8] sm:$0xff] %v971
    %1004 = vst [vmem:[#allocation2 + $0xb0] sm:$0xff] %v972
    %1005 = vst [vmem:[#allocation2 + $0xb8] sm:$0xff] %v973
    %1006 = vst [vmem:[#allocation2 + $0xc0] sm:$0xff] %v974
    %1007 = vst [vmem:[#allocation2 + $0xc8] sm:$0xff] %v975
    %1008 = vst [vmem:[#allocation2 + $0xd0] sm:$0xff] %v976
    %1009 = vst [vmem:[#allocation2 + $0xd8] sm:$0xff] %v977
    %1010 = vst [vmem:[#allocation2 + $0xe0] sm:$0xff] %v978
    %1011 = vst [vmem:[#allocation2 + $0xe8] sm:$0xff] %v979
    %1012 = vst [vmem:[#allocation2 + $0xf0] sm:$0xff] %v980
    %1013 = vst [vmem:[#allocation2 + $0xf8] sm:$0xff] %v981
    %v1014 = vld [vmem:[#allocation2] sm:$0xff]
    %v1015 = vld [vmem:[#allocation2 + $0x8] sm:$0xff]
    %v1016 = vld [vmem:[#allocation2 + $0x10] sm:$0xff]
    %v1017 = vld [vmem:[#allocation2 + $0x18] sm:$0xff]
    %v1018 = vld [vmem:[#allocation9] sm:$0xff]
    %v1019 = vld [vmem:[#allocation9 + $0x8] sm:$0xff]
    %v1020 = vld [vmem:[#allocation9 + $0x10] sm:$0xff]
    %v1021 = vld [vmem:[#allocation9 + $0x18] sm:$0xff]
    %v1022 = vld [vmem:[#allocation9 + $0x20] sm:$0xff]
    %v1023 = vld [vmem:[#allocation9 + $0x28] sm:$0xff]
    %v1024 = vld [vmem:[#allocation9 + $0x30] sm:$0xff]
    %v1025 = vld [vmem:[#allocation9 + $0x38] sm:$0xff]
    %v1026 = vld [vmem:[#allocation9 + $0x40] sm:$0xff]
    %v1027 = vld [vmem:[#allocation9 + $0x48] sm:$0xff]
    %v1028 = vld [vmem:[#allocation9 + $0x50] sm:$0xff]
    %v1029 = vld [vmem:[#allocation9 + $0x58] sm:$0xff]
    %v1030 = vld [vmem:[#allocation9 + $0x60] sm:$0xff]
    %v1031 = vld [vmem:[#allocation9 + $0x68] sm:$0xff]
    %v1032 = vld [vmem:[#allocation9 + $0x70] sm:$0xff]
    %v1033 = vld [vmem:[#allocation9 + $0x78] sm:$0xff]
    %v1034 = vld [vmem:[#allocation9 + $0x80] sm:$0xff]
    %v1035 = vld [vmem:[#allocation9 + $0x88] sm:$0xff]
    %v1036 = vld [vmem:[#allocation9 + $0x90] sm:$0xff]
    %v1037 = vld [vmem:[#allocation9 + $0x98] sm:$0xff]
    %v1038 = vld [vmem:[#allocation9 + $0xa0] sm:$0xff]
    %v1039 = vld [vmem:[#allocation9 + $0xa8] sm:$0xff]
    %v1040 = vld [vmem:[#allocation9 + $0xb0] sm:$0xff]
    %v1041 = vld [vmem:[#allocation9 + $0xb8] sm:$0xff]
    %v1042 = vld [vmem:[#allocation9 + $0xc0] sm:$0xff]
    %v1043 = vld [vmem:[#allocation9 + $0xc8] sm:$0xff]
    %v1044 = vld [vmem:[#allocation9 + $0xd0] sm:$0xff]
    %v1045 = vld [vmem:[#allocation9 + $0xd8] sm:$0xff]
    %v1046 = vld [vmem:[#allocation9 + $0xe0] sm:$0xff]
    %v1047 = vld [vmem:[#allocation9 + $0xe8] sm:$0xff]
    %v1048 = vld [vmem:[#allocation9 + $0xf0] sm:$0xff]
    %v1049 = vld [vmem:[#allocation9 + $0xf8] sm:$0xff]
    %v1082 = vunpack.c.l.b16 %v1018
    %v1083 = vunpack.c.h.b16 %v1018
    %v1084 = vunpack.c.l.b16 %v1019
    %v1085 = vunpack.c.h.b16 %v1019
    %v1086 = vunpack.c.l.b16 %v1020
    %v1087 = vunpack.c.h.b16 %v1020
    %v1088 = vunpack.c.l.b16 %v1021
    %v1089 = vunpack.c.h.b16 %v1021
    %v1090 = vunpack.c.l.b16 %v1022
    %v1091 = vunpack.c.h.b16 %v1022
    %v1092 = vunpack.c.l.b16 %v1023
    %v1093 = vunpack.c.h.b16 %v1023
    %v1094 = vunpack.c.l.b16 %v1024
    %v1095 = vunpack.c.h.b16 %v1024
    %v1096 = vunpack.c.l.b16 %v1025
    %v1097 = vunpack.c.h.b16 %v1025
    %v1098 = vunpack.c.l.b16 %v1026
    %v1099 = vunpack.c.h.b16 %v1026
    %v1100 = vunpack.c.l.b16 %v1027
    %v1101 = vunpack.c.h.b16 %v1027
    %v1102 = vunpack.c.l.b16 %v1028
    %v1103 = vunpack.c.h.b16 %v1028
    %v1104 = vunpack.c.l.b16 %v1029
    %v1105 = vunpack.c.h.b16 %v1029
    %v1106 = vunpack.c.l.b16 %v1030
    %v1107 = vunpack.c.h.b16 %v1030
    %v1108 = vunpack.c.l.b16 %v1031
    %v1109 = vunpack.c.h.b16 %v1031
    %v1110 = vunpack.c.l.b16 %v1032
    %v1111 = vunpack.c.h.b16 %v1032
    %v1112 = vunpack.c.l.b16 %v1033
    %v1113 = vunpack.c.h.b16 %v1033
    %v1114 = vunpack.c.l.b16 %v1034
    %v1115 = vunpack.c.h.b16 %v1034
    %v1116 = vunpack.c.l.b16 %v1035
    %v1117 = vunpack.c.h.b16 %v1035
    %v1118 = vunpack.c.l.b16 %v1036
    %v1119 = vunpack.c.h.b16 %v1036
    %v1120 = vunpack.c.l.b16 %v1037
    %v1121 = vunpack.c.h.b16 %v1037
    %v1122 = vunpack.c.l.b16 %v1038
    %v1123 = vunpack.c.h.b16 %v1038
    %v1124 = vunpack.c.l.b16 %v1039
    %v1125 = vunpack.c.h.b16 %v1039
    %v1126 = vunpack.c.l.b16 %v1040
    %v1127 = vunpack.c.h.b16 %v1040
    %v1128 = vunpack.c.l.b16 %v1041
    %v1129 = vunpack.c.h.b16 %v1041
    %v1130 = vunpack.c.l.b16 %v1042
    %v1131 = vunpack.c.h.b16 %v1042
    %v1132 = vunpack.c.l.b16 %v1043
    %v1133 = vunpack.c.h.b16 %v1043
    %v1134 = vunpack.c.l.b16 %v1044
    %v1135 = vunpack.c.h.b16 %v1044
    %v1136 = vunpack.c.l.b16 %v1045
    %v1137 = vunpack.c.h.b16 %v1045
    %v1138 = vunpack.c.l.b16 %v1046
    %v1139 = vunpack.c.h.b16 %v1046
    %v1140 = vunpack.c.l.b16 %v1047
    %v1141 = vunpack.c.h.b16 %v1047
    %v1142 = vunpack.c.l.b16 %v1048
    %v1143 = vunpack.c.h.b16 %v1048
    %v1144 = vunpack.c.l.b16 %v1049
    %v1145 = vunpack.c.h.b16 %v1049
    %v1146 = vpack.c.b16 %v1086, %v1082
    %v1147 = vpack.c.b16 %v1087, %v1083
    %v1148 = vpack.c.b16 %v1088, %v1084
    %v1149 = vpack.c.b16 %v1089, %v1085
    %v1150 = vpack.c.b16 %v1094, %v1090
    %v1151 = vpack.c.b16 %v1095, %v1091
    %v1152 = vpack.c.b16 %v1096, %v1092
    %v1153 = vpack.c.b16 %v1097, %v1093
    %v1154 = vpack.c.b16 %v1102, %v1098
    %v1155 = vpack.c.b16 %v1103, %v1099
    %v1156 = vpack.c.b16 %v1104, %v1100
    %v1157 = vpack.c.b16 %v1105, %v1101
    %v1158 = vpack.c.b16 %v1110, %v1106
    %v1159 = vpack.c.b16 %v1111, %v1107
    %v1160 = vpack.c.b16 %v1112, %v1108
    %v1161 = vpack.c.b16 %v1113, %v1109
    %v1162 = vpack.c.b16 %v1118, %v1114
    %v1163 = vpack.c.b16 %v1119, %v1115
    %v1164 = vpack.c.b16 %v1120, %v1116
    %v1165 = vpack.c.b16 %v1121, %v1117
    %v1166 = vpack.c.b16 %v1126, %v1122
    %v1167 = vpack.c.b16 %v1127, %v1123
    %v1168 = vpack.c.b16 %v1128, %v1124
    %v1169 = vpack.c.b16 %v1129, %v1125
    %v1170 = vpack.c.b16 %v1134, %v1130
    %v1171 = vpack.c.b16 %v1135, %v1131
    %v1172 = vpack.c.b16 %v1136, %v1132
    %v1173 = vpack.c.b16 %v1137, %v1133
    %v1174 = vpack.c.b16 %v1142, %v1138
    %v1175 = vpack.c.b16 %v1143, %v1139
    %v1176 = vpack.c.b16 %v1144, %v1140
    %v1177 = vpack.c.b16 %v1145, %v1141
    %1210 = vmatprep.subr.bf16.mxu0 %v1147
    %1211 = vmatpush1.bf16.msra.mxu0 %v1146
    %1212 = vmatprep.subr.bf16.mxu0 %v1151
    %1213 = vmatpush1.bf16.msra.mxu0 %v1150
    %1214 = vmatprep.subr.bf16.mxu0 %v1155
    %1215 = vmatpush1.bf16.msra.mxu0 %v1154
    %1216 = vmatprep.subr.bf16.mxu0 %v1159
    %1217 = vmatpush1.bf16.msra.mxu0 %v1158
    %1218 = vmatprep.subr.bf16.mxu0 %v1163
    %1219 = vmatpush1.bf16.msra.mxu0 %v1162
    %1220 = vmatprep.subr.bf16.mxu0 %v1167
    %1221 = vmatpush1.bf16.msra.mxu0 %v1166
    %1222 = vmatprep.subr.bf16.mxu0 %v1171
    %1223 = vmatpush1.bf16.msra.mxu0 %v1170
    %1224 = vmatprep.subr.bf16.mxu0 %v1175
    %1225 = vmatpush1.bf16.msra.mxu0 %v1174
    %1226 = vmatprep.subr.bf16.mxu0 0
    %1227 = vmatpush1.bf16.msra.mxu0 0
    %1228 = vmatprep.subr.bf16.mxu0 0
    %1229 = vmatpush1.bf16.msra.mxu0 0
    %1230 = vmatprep.subr.bf16.mxu0 0
    %1231 = vmatpush1.bf16.msra.mxu0 0
    %1232 = vmatprep.subr.bf16.mxu0 0
    %1233 = vmatpush1.bf16.msra.mxu0 0
    %1234 = vmatprep.subr.bf16.mxu0 0
    %1235 = vmatpush1.bf16.msra.mxu0 0
    %1236 = vmatprep.subr.bf16.mxu0 0
    %1237 = vmatpush1.bf16.msra.mxu0 0
    %1238 = vmatprep.subr.bf16.mxu0 0
    %1239 = vmatpush1.bf16.msra.mxu0 0
    %1240 = vmatprep.subr.bf16.mxu0 0
    %1241 = vmatpush1.bf16.msra.mxu0 0
    %1242 = vmatprep.mubr.bf16.mxu0 0
    %1243 = vmatmul.mubr.bf16.gmra.mrb[0].mxu0 0
    %v1244 = vpop.f32.mrb[0].mxu0
    %v1245 = vadd.f32 0.0, %v1244
    %v1246 = vpop.f32.mrb[0].mxu0
    %v1247 = vadd.f32 0.0, %v1246
    %v1248 = vpop.f32.mrb[0].mxu0
    %v1249 = vpop.f32.mrb[0].mxu0
    %1250 = vdwg.mxu0
    %1251 = vmatprep.subr.bf16.mxu0 %v1149
    %1252 = vmatpush1.bf16.msra.mxu0 %v1148
    %1253 = vmatprep.subr.bf16.mxu0 %v1153
    %1254 = vmatpush1.bf16.msra.mxu0 %v1152
    %1255 = vmatprep.subr.bf16.mxu0 %v1157
    %1256 = vmatpush1.bf16.msra.mxu0 %v1156
    %1257 = vmatprep.subr.bf16.mxu0 %v1161
    %1258 = vmatpush1.bf16.msra.mxu0 %v1160
    %1259 = vmatprep.subr.bf16.mxu0 %v1165
    %1260 = vmatpush1.bf16.msra.mxu0 %v1164
    %1261 = vmatprep.subr.bf16.mxu0 %v1169
    %1262 = vmatpush1.bf16.msra.mxu0 %v1168
    %1263 = vmatprep.subr.bf16.mxu0 %v1173
    %1264 = vmatpush1.bf16.msra.mxu0 %v1172
    %1265 = vmatprep.subr.bf16.mxu0 %v1177
    %1266 = vmatpush1.bf16.msra.mxu0 %v1176
    %1267 = vmatprep.subr.bf16.mxu0 0
    %1268 = vmatpush1.bf16.msra.mxu0 0
    %1269 = vmatprep.subr.bf16.mxu0 0
    %1270 = vmatpush1.bf16.msra.mxu0 0
    %1271 = vmatprep.subr.bf16.mxu0 0
    %1272 = vmatpush1.bf16.msra.mxu0 0
    %1273 = vmatprep.subr.bf16.mxu0 0
    %1274 = vmatpush1.bf16.msra.mxu0 0
    %1275 = vmatprep.subr.bf16.mxu0 0
    %1276 = vmatpush1.bf16.msra.mxu0 0
    %1277 = vmatprep.subr.bf16.mxu0 0
    %1278 = vmatpush1.bf16.msra.mxu0 0
    %1279 = vmatprep.subr.bf16.mxu0 0
    %1280 = vmatpush1.bf16.msra.mxu0 0
    %1281 = vmatprep.subr.bf16.mxu0 0
    %1282 = vmatpush1.bf16.msra.mxu0 0
    %1283 = vmatprep.mubr.bf16.mxu0 0
    %1284 = vmatmul.mubr.bf16.gmra.mrb[0].mxu0 0
    %v1285 = vpop.f32.mrb[0].mxu0
    %v1286 = vadd.f32 0.0, %v1285
    %v1287 = vpop.f32.mrb[0].mxu0
    %v1288 = vadd.f32 0.0, %v1287
    %v1289 = vpop.f32.mrb[0].mxu0
    %v1290 = vpop.f32.mrb[0].mxu0
    %1291 = vdwg.mxu0
    %1292 = vmatprep.subr.bf16.mxu0 %v1147
    %1293 = vmatpush1.bf16.msra.mxu0 %v1146
    %1294 = vmatprep.subr.bf16.mxu0 %v1151
    %1295 = vmatpush1.bf16.msra.mxu0 %v1150
    %1296 = vmatprep.subr.bf16.mxu0 %v1155
    %1297 = vmatpush1.bf16.msra.mxu0 %v1154
    %1298 = vmatprep.subr.bf16.mxu0 %v1159
    %1299 = vmatpush1.bf16.msra.mxu0 %v1158
    %1300 = vmatprep.subr.bf16.mxu0 %v1163
    %1301 = vmatpush1.bf16.msra.mxu0 %v1162
    %1302 = vmatprep.subr.bf16.mxu0 %v1167
    %1303 = vmatpush1.bf16.msra.mxu0 %v1166
    %1304 = vmatprep.subr.bf16.mxu0 %v1171
    %1305 = vmatpush1.bf16.msra.mxu0 %v1170
    %1306 = vmatprep.subr.bf16.mxu0 %v1175
    %1307 = vmatpush1.bf16.msra.mxu0 %v1174
    %1308 = vmatprep.subr.bf16.mxu0 0
    %1309 = vmatpush1.bf16.msra.mxu0 0
    %1310 = vmatprep.subr.bf16.mxu0 0
    %1311 = vmatpush1.bf16.msra.mxu0 0
    %1312 = vmatprep.subr.bf16.mxu0 0
    %1313 = vmatpush1.bf16.msra.mxu0 0
    %1314 = vmatprep.subr.bf16.mxu0 0
    %1315 = vmatpush1.bf16.msra.mxu0 0
    %1316 = vmatprep.subr.bf16.mxu0 0
    %1317 = vmatpush1.bf16.msra.mxu0 0
    %1318 = vmatprep.subr.bf16.mxu0 0
    %1319 = vmatpush1.bf16.msra.mxu0 0
    %1320 = vmatprep.subr.bf16.mxu0 0
    %1321 = vmatpush1.bf16.msra.mxu0 0
    %1322 = vmatprep.subr.bf16.mxu0 0
    %1323 = vmatpush1.bf16.msra.mxu0 0
    %1324 = vmatprep.mubr.bf16.mxu0 0
    %1325 = vmatmul.mubr.bf16.gmra.mrb[0].mxu0 0
    %v1326 = vpop.f32.mrb[0].mxu0
    %v1327 = vadd.f32 %v1245, %v1326
    %v1328 = vpop.f32.mrb[0].mxu0
    %v1329 = vadd.f32 %v1247, %v1328
    %v1330 = vpop.f32.mrb[0].mxu0
    %v1331 = vpop.f32.mrb[0].mxu0
    %1332 = vdwg.mxu0
    %1333 = vmatprep.subr.bf16.mxu0 %v1149
    %1334 = vmatpush1.bf16.msra.mxu0 %v1148
    %1335 = vmatprep.subr.bf16.mxu0 %v1153
    %1336 = vmatpush1.bf16.msra.mxu0 %v1152
    %1337 = vmatprep.subr.bf16.mxu0 %v1157
    %1338 = vmatpush1.bf16.msra.mxu0 %v1156
    %1339 = vmatprep.subr.bf16.mxu0 %v1161
    %1340 = vmatpush1.bf16.msra.mxu0 %v1160
    %1341 = vmatprep.subr.bf16.mxu0 %v1165
    %1342 = vmatpush1.bf16.msra.mxu0 %v1164
    %1343 = vmatprep.subr.bf16.mxu0 %v1169
    %1344 = vmatpush1.bf16.msra.mxu0 %v1168
    %1345 = vmatprep.subr.bf16.mxu0 %v1173
    %1346 = vmatpush1.bf16.msra.mxu0 %v1172
    %1347 = vmatprep.subr.bf16.mxu0 %v1177
    %1348 = vmatpush1.bf16.msra.mxu0 %v1176
    %1349 = vmatprep.subr.bf16.mxu0 0
    %1350 = vmatpush1.bf16.msra.mxu0 0
    %1351 = vmatprep.subr.bf16.mxu0 0
    %1352 = vmatpush1.bf16.msra.mxu0 0
    %1353 = vmatprep.subr.bf16.mxu0 0
    %1354 = vmatpush1.bf16.msra.mxu0 0
    %1355 = vmatprep.subr.bf16.mxu0 0
    %1356 = vmatpush1.bf16.msra.mxu0 0
    %1357 = vmatprep.subr.bf16.mxu0 0
    %1358 = vmatpush1.bf16.msra.mxu0 0
    %1359 = vmatprep.subr.bf16.mxu0 0
    %1360 = vmatpush1.bf16.msra.mxu0 0
    %1361 = vmatprep.subr.bf16.mxu0 0
    %1362 = vmatpush1.bf16.msra.mxu0 0
    %1363 = vmatprep.subr.bf16.mxu0 0
    %1364 = vmatpush1.bf16.msra.mxu0 0
    %1365 = vmatprep.mubr.bf16.mxu0 0
    %1366 = vmatmul.mubr.bf16.gmra.mrb[0].mxu0 0
    %v1367 = vpop.f32.mrb[0].mxu0
    %v1368 = vadd.f32 %v1286, %v1367
    %v1369 = vpop.f32.mrb[0].mxu0
    %v1370 = vadd.f32 %v1288, %v1369
    %v1371 = vpop.f32.mrb[0].mxu0
    %v1372 = vpop.f32.mrb[0].mxu0
    %1373 = vdwg.mxu0
    %v1374 = vld [vmem:[#allocation11] sm:$0xff]
    %v1375 = vld [vmem:[#allocation11 + $0x8] sm:$0xff]
    %v1376 = vld [vmem:[#allocation11 + $0x10] sm:$0xff]
    %v1377 = vld [vmem:[#allocation11 + $0x18] sm:$0xff]
    %v1378 = vld [vmem:[#allocation11 + $0x20] sm:$0xff]
    %v1379 = vld [vmem:[#allocation11 + $0x28] sm:$0xff]
    %v1380 = vld [vmem:[#allocation11 + $0x30] sm:$0xff]
    %v1381 = vld [vmem:[#allocation11 + $0x38] sm:$0xff]
    %v1382 = vld [vmem:[#allocation11 + $0x40] sm:$0xff]
    %v1383 = vld [vmem:[#allocation11 + $0x48] sm:$0xff]
    %v1384 = vld [vmem:[#allocation11 + $0x50] sm:$0xff]
    %v1385 = vld [vmem:[#allocation11 + $0x58] sm:$0xff]
    %v1386 = vld [vmem:[#allocation11 + $0x60] sm:$0xff]
    %v1387 = vld [vmem:[#allocation11 + $0x68] sm:$0xff]
    %v1388 = vld [vmem:[#allocation11 + $0x70] sm:$0xff]
    %v1389 = vld [vmem:[#allocation11 + $0x78] sm:$0xff]
    %v1390 = vld [vmem:[#allocation11 + $0x80] sm:$0xff]
    %v1391 = vld [vmem:[#allocation11 + $0x88] sm:$0xff]
    %v1392 = vld [vmem:[#allocation11 + $0x90] sm:$0xff]
    %v1393 = vld [vmem:[#allocation11 + $0x98] sm:$0xff]
    %v1394 = vld [vmem:[#allocation11 + $0xa0] sm:$0xff]
    %v1395 = vld [vmem:[#allocation11 + $0xa8] sm:$0xff]
    %v1396 = vld [vmem:[#allocation11 + $0xb0] sm:$0xff]
    %v1397 = vld [vmem:[#allocation11 + $0xb8] sm:$0xff]
    %v1398 = vld [vmem:[#allocation11 + $0xc0] sm:$0xff]
    %v1399 = vld [vmem:[#allocation11 + $0xc8] sm:$0xff]
    %v1400 = vld [vmem:[#allocation11 + $0xd0] sm:$0xff]
    %v1401 = vld [vmem:[#allocation11 + $0xd8] sm:$0xff]
    %v1402 = vld [vmem:[#allocation11 + $0xe0] sm:$0xff]
    %v1403 = vld [vmem:[#allocation11 + $0xe8] sm:$0xff]
    %v1404 = vld [vmem:[#allocation11 + $0xf0] sm:$0xff]
    %v1405 = vld [vmem:[#allocation11 + $0xf8] sm:$0xff]
    %v1438 = vunpack.c.l.b16 %v1374
    %v1439 = vunpack.c.h.b16 %v1374
    %v1440 = vunpack.c.l.b16 %v1375
    %v1441 = vunpack.c.h.b16 %v1375
    %v1442 = vunpack.c.l.b16 %v1376
    %v1443 = vunpack.c.h.b16 %v1376
    %v1444 = vunpack.c.l.b16 %v1377
    %v1445 = vunpack.c.h.b16 %v1377
    %v1446 = vunpack.c.l.b16 %v1378
    %v1447 = vunpack.c.h.b16 %v1378
    %v1448 = vunpack.c.l.b16 %v1379
    %v1449 = vunpack.c.h.b16 %v1379
    %v1450 = vunpack.c.l.b16 %v1380
    %v1451 = vunpack.c.h.b16 %v1380
    %v1452 = vunpack.c.l.b16 %v1381
    %v1453 = vunpack.c.h.b16 %v1381
    %v1454 = vunpack.c.l.b16 %v1382
    %v1455 = vunpack.c.h.b16 %v1382
    %v1456 = vunpack.c.l.b16 %v1383
    %v1457 = vunpack.c.h.b16 %v1383
    %v1458 = vunpack.c.l.b16 %v1384
    %v1459 = vunpack.c.h.b16 %v1384
    %v1460 = vunpack.c.l.b16 %v1385
    %v1461 = vunpack.c.h.b16 %v1385
    %v1462 = vunpack.c.l.b16 %v1386
    %v1463 = vunpack.c.h.b16 %v1386
    %v1464 = vunpack.c.l.b16 %v1387
    %v1465 = vunpack.c.h.b16 %v1387
    %v1466 = vunpack.c.l.b16 %v1388
    %v1467 = vunpack.c.h.b16 %v1388
    %v1468 = vunpack.c.l.b16 %v1389
    %v1469 = vunpack.c.h.b16 %v1389
    %v1470 = vunpack.c.l.b16 %v1390
    %v1471 = vunpack.c.h.b16 %v1390
    %v1472 = vunpack.c.l.b16 %v1391
    %v1473 = vunpack.c.h.b16 %v1391
    %v1474 = vunpack.c.l.b16 %v1392
    %v1475 = vunpack.c.h.b16 %v1392
    %v1476 = vunpack.c.l.b16 %v1393
    %v1477 = vunpack.c.h.b16 %v1393
    %v1478 = vunpack.c.l.b16 %v1394
    %v1479 = vunpack.c.h.b16 %v1394
    %v1480 = vunpack.c.l.b16 %v1395
    %v1481 = vunpack.c.h.b16 %v1395
    %v1482 = vunpack.c.l.b16 %v1396
    %v1483 = vunpack.c.h.b16 %v1396
    %v1484 = vunpack.c.l.b16 %v1397
    %v1485 = vunpack.c.h.b16 %v1397
    %v1486 = vunpack.c.l.b16 %v1398
    %v1487 = vunpack.c.h.b16 %v1398
    %v1488 = vunpack.c.l.b16 %v1399
    %v1489 = vunpack.c.h.b16 %v1399
    %v1490 = vunpack.c.l.b16 %v1400
    %v1491 = vunpack.c.h.b16 %v1400
    %v1492 = vunpack.c.l.b16 %v1401
    %v1493 = vunpack.c.h.b16 %v1401
    %v1494 = vunpack.c.l.b16 %v1402
    %v1495 = vunpack.c.h.b16 %v1402
    %v1496 = vunpack.c.l.b16 %v1403
    %v1497 = vunpack.c.h.b16 %v1403
    %v1498 = vunpack.c.l.b16 %v1404
    %v1499 = vunpack.c.h.b16 %v1404
    %v1500 = vunpack.c.l.b16 %v1405
    %v1501 = vunpack.c.h.b16 %v1405
    %v1502 = vpack.c.b16 %v1442, %v1438
    %v1503 = vpack.c.b16 %v1443, %v1439
    %v1504 = vpack.c.b16 %v1444, %v1440
    %v1505 = vpack.c.b16 %v1445, %v1441
    %v1506 = vpack.c.b16 %v1450, %v1446
    %v1507 = vpack.c.b16 %v1451, %v1447
    %v1508 = vpack.c.b16 %v1452, %v1448
    %v1509 = vpack.c.b16 %v1453, %v1449
    %v1510 = vpack.c.b16 %v1458, %v1454
    %v1511 = vpack.c.b16 %v1459, %v1455
    %v1512 = vpack.c.b16 %v1460, %v1456
    %v1513 = vpack.c.b16 %v1461, %v1457
    %v1514 = vpack.c.b16 %v1466, %v1462
    %v1515 = vpack.c.b16 %v1467, %v1463
    %v1516 = vpack.c.b16 %v1468, %v1464
    %v1517 = vpack.c.b16 %v1469, %v1465
    %v1518 = vpack.c.b16 %v1474, %v1470
    %v1519 = vpack.c.b16 %v1475, %v1471
    %v1520 = vpack.c.b16 %v1476, %v1472
    %v1521 = vpack.c.b16 %v1477, %v1473
    %v1522 = vpack.c.b16 %v1482, %v1478
    %v1523 = vpack.c.b16 %v1483, %v1479
    %v1524 = vpack.c.b16 %v1484, %v1480
    %v1525 = vpack.c.b16 %v1485, %v1481
    %v1526 = vpack.c.b16 %v1490, %v1486
    %v1527 = vpack.c.b16 %v1491, %v1487
    %v1528 = vpack.c.b16 %v1492, %v1488
    %v1529 = vpack.c.b16 %v1493, %v1489
    %v1530 = vpack.c.b16 %v1498, %v1494
    %v1531 = vpack.c.b16 %v1499, %v1495
    %v1532 = vpack.c.b16 %v1500, %v1496
    %v1533 = vpack.c.b16 %v1501, %v1497
    %1566 = vmatprep.subr.bf16.mxu0 %v1503
    %1567 = vmatpush1.bf16.msra.mxu0 %v1502
    %1568 = vmatprep.subr.bf16.mxu0 %v1507
    %1569 = vmatpush1.bf16.msra.mxu0 %v1506
    %1570 = vmatprep.subr.bf16.mxu0 %v1511
    %1571 = vmatpush1.bf16.msra.mxu0 %v1510
    %1572 = vmatprep.subr.bf16.mxu0 %v1515
    %1573 = vmatpush1.bf16.msra.mxu0 %v1514
    %1574 = vmatprep.subr.bf16.mxu0 %v1519
    %1575 = vmatpush1.bf16.msra.mxu0 %v1518
    %1576 = vmatprep.subr.bf16.mxu0 %v1523
    %1577 = vmatpush1.bf16.msra.mxu0 %v1522
    %1578 = vmatprep.subr.bf16.mxu0 %v1527
    %1579 = vmatpush1.bf16.msra.mxu0 %v1526
    %1580 = vmatprep.subr.bf16.mxu0 %v1531
    %1581 = vmatpush1.bf16.msra.mxu0 %v1530
    %1582 = vmatprep.subr.bf16.mxu0 0
    %1583 = vmatpush1.bf16.msra.mxu0 0
    %1584 = vmatprep.subr.bf16.mxu0 0
    %1585 = vmatpush1.bf16.msra.mxu0 0
    %1586 = vmatprep.subr.bf16.mxu0 0
    %1587 = vmatpush1.bf16.msra.mxu0 0
    %1588 = vmatprep.subr.bf16.mxu0 0
    %1589 = vmatpush1.bf16.msra.mxu0 0
    %1590 = vmatprep.subr.bf16.mxu0 0
    %1591 = vmatpush1.bf16.msra.mxu0 0
    %1592 = vmatprep.subr.bf16.mxu0 0
    %1593 = vmatpush1.bf16.msra.mxu0 0
    %1594 = vmatprep.subr.bf16.mxu0 0
    %1595 = vmatpush1.bf16.msra.mxu0 0
    %1596 = vmatprep.subr.bf16.mxu0 0
    %1597 = vmatpush1.bf16.msra.mxu0 0
    %1598 = vmatprep.mubr.bf16.mxu0 0
    %1599 = vmatmul.mubr.bf16.gmra.mrb[0].mxu0 0
    %v1600 = vpop.f32.mrb[0].mxu0
    %v1601 = vadd.f32 0.0, %v1600
    %v1602 = vpop.f32.mrb[0].mxu0
    %v1603 = vadd.f32 0.0, %v1602
    %v1604 = vpop.f32.mrb[0].mxu0
    %v1605 = vpop.f32.mrb[0].mxu0
    %1606 = vdwg.mxu0
    %1607 = vmatprep.subr.bf16.mxu0 %v1505
    %1608 = vmatpush1.bf16.msra.mxu0 %v1504
    %1609 = vmatprep.subr.bf16.mxu0 %v1509
    %1610 = vmatpush1.bf16.msra.mxu0 %v1508
    %1611 = vmatprep.subr.bf16.mxu0 %v1513
    %1612 = vmatpush1.bf16.msra.mxu0 %v1512
    %1613 = vmatprep.subr.bf16.mxu0 %v1517
    %1614 = vmatpush1.bf16.msra.mxu0 %v1516
    %1615 = vmatprep.subr.bf16.mxu0 %v1521
    %1616 = vmatpush1.bf16.msra.mxu0 %v1520
    %1617 = vmatprep.subr.bf16.mxu0 %v1525
    %1618 = vmatpush1.bf16.msra.mxu0 %v1524
    %1619 = vmatprep.subr.bf16.mxu0 %v1529
    %1620 = vmatpush1.bf16.msra.mxu0 %v1528
    %1621 = vmatprep.subr.bf16.mxu0 %v1533
    %1622 = vmatpush1.bf16.msra.mxu0 %v1532
    %1623 = vmatprep.subr.bf16.mxu0 0
    %1624 = vmatpush1.bf16.msra.mxu0 0
    %1625 = vmatprep.subr.bf16.mxu0 0
    %1626 = vmatpush1.bf16.msra.mxu0 0
    %1627 = vmatprep.subr.bf16.mxu0 0
    %1628 = vmatpush1.bf16.msra.mxu0 0
    %1629 = vmatprep.subr.bf16.mxu0 0
    %1630 = vmatpush1.bf16.msra.mxu0 0
    %1631 = vmatprep.subr.bf16.mxu0 0
    %1632 = vmatpush1.bf16.msra.mxu0 0
    %1633 = vmatprep.subr.bf16.mxu0 0
    %1634 = vmatpush1.bf16.msra.mxu0 0
    %1635 = vmatprep.subr.bf16.mxu0 0
    %1636 = vmatpush1.bf16.msra.mxu0 0
    %1637 = vmatprep.subr.bf16.mxu0 0
    %1638 = vmatpush1.bf16.msra.mxu0 0
    %1639 = vmatprep.mubr.bf16.mxu0 0
    %1640 = vmatmul.mubr.bf16.gmra.mrb[0].mxu0 0
    %v1641 = vpop.f32.mrb[0].mxu0
    %v1642 = vadd.f32 0.0, %v1641
    %v1643 = vpop.f32.mrb[0].mxu0
    %v1644 = vadd.f32 0.0, %v1643
    %v1645 = vpop.f32.mrb[0].mxu0
    %v1646 = vpop.f32.mrb[0].mxu0
    %1647 = vdwg.mxu0
    %v1648 = vadd.f32 %v1327, %v1601
    %v1649 = vadd.f32 %v1329, %v1603
    %v1650 = vadd.f32 %v1368, %v1642
    %v1651 = vadd.f32 %v1370, %v1644
    %v1652 = vadd.f32 %v1014, %v1648
    %v1653 = vadd.f32 %v1015, %v1649
    %v1654 = vadd.f32 %v1016, %v1650
    %v1655 = vadd.f32 %v1017, %v1651
    %v1656 = vxor.u32 %v1652, 2147483648
    %v1657 = vxor.u32 %v1653, 2147483648
    %v1658 = vxor.u32 %v1654, 2147483648
    %v1659 = vmul.f32 %v1656, 1.442695
    %v1660 = vpow.pop %v1659
    %v1661 = vmul.f32 %v1657, 1.442695
    %v1662 = vpow.pop %v1661
    %v1663 = vmul.f32 %v1658, 1.442695
    %v1664 = vpow.pop %v1663
    %v1665 = vadd.f32 %v1660, 1.0
    %v1666 = vadd.f32 %v1662, 1.0
    %v1667 = vadd.f32 %v1664, 1.0
    %v1668 = vrcp.pop %v1665
    %v1669 = vmul.f32 1.0, %v1668
    %v1670 = vrcp.pop %v1666
    %v1671 = vmul.f32 1.0, %v1670
    %v1672 = vrcp.pop %v1667
    %v1673 = vmul.f32 1.0, %v1672
    %v1674 = vtanh.pop %v1655
    %v1675 = vmul.f32 %v1671, 0.0
    %v1676 = vmul.f32 %v1669, %v1674
    %v1677 = vadd.f32 %v1675, %v1676
    %v1678 = vtanh.pop %v1677
    %v1679 = vmul.f32 %v1673, %v1678
    %s1680 = scalar_lea.vmem [#allocation2], 32
    %v1681 = vld [vmem:[%s1680] sm:$0xff]
    %v1682 = vld [vmem:[%s1680 + $0x8] sm:$0xff]
    %v1683 = vld [vmem:[%s1680 + $0x10] sm:$0xff]
    %v1684 = vld [vmem:[%s1680 + $0x18] sm:$0xff]
    %v1685 = vpack.c.bf16 %v1679, %v1679
    %v1686 = vunpack.c.l.bf16 %v1685
    %v1687 = vsub.f32 %v1679, %v1686
    %v1688 = vpack.c.bf16 %v1687, %v1687
    %1689 = vmatprep.subr.bf16.mxu0 %v1147
    %1690 = vmatpush1.bf16.msra.mxu0 %v1146
    %1691 = vmatprep.subr.bf16.mxu0 %v1151
    %1692 = vmatpush1.bf16.msra.mxu0 %v1150
    %1693 = vmatprep.subr.bf16.mxu0 %v1155
    %1694 = vmatpush1.bf16.msra.mxu0 %v1154
    %1695 = vmatprep.subr.bf16.mxu0 %v1159
    %1696 = vmatpush1.bf16.msra.mxu0 %v1158
    %1697 = vmatprep.subr.bf16.mxu0 %v1163
    %1698 = vmatpush1.bf16.msra.mxu0 %v1162
    %1699 = vmatprep.subr.bf16.mxu0 %v1167
    %1700 = vmatpush1.bf16.msra.mxu0 %v1166
    %1701 = vmatprep.subr.bf16.mxu0 %v1171
    %1702 = vmatpush1.bf16.msra.mxu0 %v1170
    %1703 = vmatprep.subr.bf16.mxu0 %v1175
    %1704 = vmatpush1.bf16.msra.mxu0 %v1174
    %1705 = vmatprep.subr.bf16.mxu0 0
    %1706 = vmatpush1.bf16.msra.mxu0 0
    %1707 = vmatprep.subr.bf16.mxu0 0
    %1708 = vmatpush1.bf16.msra.mxu0 0
    %1709 = vmatprep.subr.bf16.mxu0 0
    %1710 = vmatpush1.bf16.msra.mxu0 0
    %1711 = vmatprep.subr.bf16.mxu0 0
    %1712 = vmatpush1.bf16.msra.mxu0 0
    %1713 = vmatprep.subr.bf16.mxu0 0
    %1714 = vmatpush1.bf16.msra.mxu0 0
    %1715 = vmatprep.subr.bf16.mxu0 0
    %1716 = vmatpush1.bf16.msra.mxu0 0
    %1717 = vmatprep.subr.bf16.mxu0 0
    %1718 = vmatpush1.bf16.msra.mxu0 0
    %1719 = vmatprep.subr.bf16.mxu0 0
    %1720 = vmatpush1.bf16.msra.mxu0 0
    %1721 = vmatprep.mubr.bf16.mxu0 0
    %1722 = vmatmul.mubr.bf16.gmra.mrb[0].mxu0 %v1688
    %v1723 = vpop.f32.mrb[0].mxu0
    %v1724 = vadd.f32 0.0, %v1723
    %v1725 = vpop.f32.mrb[0].mxu0
    %v1726 = vadd.f32 0.0, %v1725
    %v1727 = vpop.f32.mrb[0].mxu0
    %v1728 = vpop.f32.mrb[0].mxu0
    %1729 = vdwg.mxu0
    %1730 = vmatprep.subr.bf16.mxu0 %v1149
    %1731 = vmatpush1.bf16.msra.mxu0 %v1148
    %1732 = vmatprep.subr.bf16.mxu0 %v1153
    %1733 = vmatpush1.bf16.msra.mxu0 %v1152
    %1734 = vmatprep.subr.bf16.mxu0 %v1157
    %1735 = vmatpush1.bf16.msra.mxu0 %v1156
    %1736 = vmatprep.subr.bf16.mxu0 %v1161
    %1737 = vmatpush1.bf16.msra.mxu0 %v1160
    %1738 = vmatprep.subr.bf16.mxu0 %v1165
    %1739 = vmatpush1.bf16.msra.mxu0 %v1164
    %1740 = vmatprep.subr.bf16.mxu0 %v1169
    %1741 = vmatpush1.bf16.msra.mxu0 %v1168
    %1742 = vmatprep.subr.bf16.mxu0 %v1173
    %1743 = vmatpush1.bf16.msra.mxu0 %v1172
    %1744 = vmatprep.subr.bf16.mxu0 %v1177
    %1745 = vmatpush1.bf16.msra.mxu0 %v1176
    %1746 = vmatprep.subr.bf16.mxu0 0
    %1747 = vmatpush1.bf16.msra.mxu0 0
    %1748 = vmatprep.subr.bf16.mxu0 0
    %1749 = vmatpush1.bf16.msra.mxu0 0
    %1750 = vmatprep.subr.bf16.mxu0 0
    %1751 = vmatpush1.bf16.msra.mxu0 0
    %1752 = vmatprep.subr.bf16.mxu0 0
    %1753 = vmatpush1.bf16.msra.mxu0 0
    %1754 = vmatprep.subr.bf16.mxu0 0
    %1755 = vmatpush1.bf16.msra.mxu0 0
    %1756 = vmatprep.subr.bf16.mxu0 0
    %1757 = vmatpush1.bf16.msra.mxu0 0
    %1758 = vmatprep.subr.bf16.mxu0 0
    %1759 = vmatpush1.bf16.msra.mxu0 0
    %1760 = vmatprep.subr.bf16.mxu0 0
    %1761 = vmatpush1.bf16.msra.mxu0 0
    %1762 = vmatprep.mubr.bf16.mxu0 0
    %1763 = vmatmul.mubr.bf16.gmra.mrb[0].mxu0 %v1688
    %v1764 = vpop.f32.mrb[0].mxu0
    %v1765 = vadd.f32 0.0, %v1764
    %v1766 = vpop.f32.mrb[0].mxu0
    %v1767 = vadd.f32 0.0, %v1766
    %v1768 = vpop.f32.mrb[0].mxu0
    %v1769 = vpop.f32.mrb[0].mxu0
    %1770 = vdwg.mxu0
    %1771 = vmatprep.subr.bf16.mxu0 %v1147
    %1772 = vmatpush1.bf16.msra.mxu0 %v1146
    %1773 = vmatprep.subr.bf16.mxu0 %v1151
    %1774 = vmatpush1.bf16.msra.mxu0 %v1150
    %1775 = vmatprep.subr.bf16.mxu0 %v1155
    %1776 = vmatpush1.bf16.msra.mxu0 %v1154
    %1777 = vmatprep.subr.bf16.mxu0 %v1159
    %1778 = vmatpush1.bf16.msra.mxu0 %v1158
    %1779 = vmatprep.subr.bf16.mxu0 %v1163
    %1780 = vmatpush1.bf16.msra.mxu0 %v1162
    %1781 = vmatprep.subr.bf16.mxu0 %v1167
    %1782 = vmatpush1.bf16.msra.mxu0 %v1166
    %1783 = vmatprep.subr.bf16.mxu0 %v1171
    %1784 = vmatpush1.bf16.msra.mxu0 %v1170
    %1785 = vmatprep.subr.bf16.mxu0 %v1175
    %1786 = vmatpush1.bf16.msra.mxu0 %v1174
    %1787 = vmatprep.subr.bf16.mxu0 0
    %1788 = vmatpush1.bf16.msra.mxu0 0
    %1789 = vmatprep.subr.bf16.mxu0 0
    %1790 = vmatpush1.bf16.msra.mxu0 0
    %1791 = vmatprep.subr.bf16.mxu0 0
    %1792 = vmatpush1.bf16.msra.mxu0 0
    %1793 = vmatprep.subr.bf16.mxu0 0
    %1794 = vmatpush1.bf16.msra.mxu0 0
    %1795 = vmatprep.subr.bf16.mxu0 0
    %1796 = vmatpush1.bf16.msra.mxu0 0
    %1797 = vmatprep.subr.bf16.mxu0 0
    %1798 = vmatpush1.bf16.msra.mxu0 0
    %1799 = vmatprep.subr.bf16.mxu0 0
    %1800 = vmatpush1.bf16.msra.mxu0 0
    %1801 = vmatprep.subr.bf16.mxu0 0
    %1802 = vmatpush1.bf16.msra.mxu0 0
    %1803 = vmatprep.mubr.bf16.mxu0 0
    %1804 = vmatmul.mubr.bf16.gmra.mrb[0].mxu0 %v1685
    %v1805 = vpop.f32.mrb[0].mxu0
    %v1806 = vadd.f32 %v1724, %v1805
    %v1807 = vpop.f32.mrb[0].mxu0
    %v1808 = vadd.f32 %v1726, %v1807
    %v1809 = vpop.f32.mrb[0].mxu0
    %v1810 = vpop.f32.mrb[0].mxu0
    %1811 = vdwg.mxu0
    %1812 = vmatprep.subr.bf16.mxu0 %v1149
    %1813 = vmatpush1.bf16.msra.mxu0 %v1148
    %1814 = vmatprep.subr.bf16.mxu0 %v1153
    %1815 = vmatpush1.bf16.msra.mxu0 %v1152
    %1816 = vmatprep.subr.bf16.mxu0 %v1157
    %1817 = vmatpush1.bf16.msra.mxu0 %v1156
    %1818 = vmatprep.subr.bf16.mxu0 %v1161
    %1819 = vmatpush1.bf16.msra.mxu0 %v1160
    %1820 = vmatprep.subr.bf16.mxu0 %v1165
    %1821 = vmatpush1.bf16.msra.mxu0 %v1164
    %1822 = vmatprep.subr.bf16.mxu0 %v1169
    %1823 = vmatpush1.bf16.msra.mxu0 %v1168
    %1824 = vmatprep.subr.bf16.mxu0 %v1173
    %1825 = vmatpush1.bf16.msra.mxu0 %v1172
    %1826 = vmatprep.subr.bf16.mxu0 %v1177
    %1827 = vmatpush1.bf16.msra.mxu0 %v1176
    %1828 = vmatprep.subr.bf16.mxu0 0
    %1829 = vmatpush1.bf16.msra.mxu0 0
    %1830 = vmatprep.subr.bf16.mxu0 0
    %1831 = vmatpush1.bf16.msra.mxu0 0
    %1832 = vmatprep.subr.bf16.mxu0 0
    %1833 = vmatpush1.bf16.msra.mxu0 0
    %1834 = vmatprep.subr.bf16.mxu0 0
    %1835 = vmatpush1.bf16.msra.mxu0 0
    %1836 = vmatprep.subr.bf16.mxu0 0
    %1837 = vmatpush1.bf16.msra.mxu0 0
    %1838 = vmatprep.subr.bf16.mxu0 0
    %1839 = vmatpush1.bf16.msra.mxu0 0
    %1840 = vmatprep.subr.bf16.mxu0 0
    %1841 = vmatpush1.bf16.msra.mxu0 0
    %1842 = vmatprep.subr.bf16.mxu0 0
    %1843 = vmatpush1.bf16.msra.mxu0 0
    %1844 = vmatprep.mubr.bf16.mxu0 0
    %1845 = vmatmul.mubr.bf16.gmra.mrb[0].mxu0 %v1685
    %v1846 = vpop.f32.mrb[0].mxu0
    %v1847 = vadd.f32 %v1765, %v1846
    %v1848 = vpop.f32.mrb[0].mxu0
    %v1849 = vadd.f32 %v1767, %v1848
    %v1850 = vpop.f32.mrb[0].mxu0
    %v1851 = vpop.f32.mrb[0].mxu0
    %1852 = vdwg.mxu0
    %1853 = vmatprep.subr.bf16.mxu0 %v1503
    %1854 = vmatpush1.bf16.msra.mxu0 %v1502
    %1855 = vmatprep.subr.bf16.mxu0 %v1507
    %1856 = vmatpush1.bf16.msra.mxu0 %v1506
    %1857 = vmatprep.subr.bf16.mxu0 %v1511
    %1858 = vmatpush1.bf16.msra.mxu0 %v1510
    %1859 = vmatprep.subr.bf16.mxu0 %v1515
    %1860 = vmatpush1.bf16.msra.mxu0 %v1514
    %1861 = vmatprep.subr.bf16.mxu0 %v1519
    %1862 = vmatpush1.bf16.msra.mxu0 %v1518
    %1863 = vmatprep.subr.bf16.mxu0 %v1523
    %1864 = vmatpush1.bf16.msra.mxu0 %v1522
    %1865 = vmatprep.subr.bf16.mxu0 %v1527
    %1866 = vmatpush1.bf16.msra.mxu0 %v1526
    %1867 = vmatprep.subr.bf16.mxu0 %v1531
    %1868 = vmatpush1.bf16.msra.mxu0 %v1530
    %1869 = vmatprep.subr.bf16.mxu0 0
    %1870 = vmatpush1.bf16.msra.mxu0 0
    %1871 = vmatprep.subr.bf16.mxu0 0
    %1872 = vmatpush1.bf16.msra.mxu0 0
    %1873 = vmatprep.subr.bf16.mxu0 0
    %1874 = vmatpush1.bf16.msra.mxu0 0
    %1875 = vmatprep.subr.bf16.mxu0 0
    %1876 = vmatpush1.bf16.msra.mxu0 0
    %1877 = vmatprep.subr.bf16.mxu0 0
    %1878 = vmatpush1.bf16.msra.mxu0 0
    %1879 = vmatprep.subr.bf16.mxu0 0
    %1880 = vmatpush1.bf16.msra.mxu0 0
    %1881 = vmatprep.subr.bf16.mxu0 0
    %1882 = vmatpush1.bf16.msra.mxu0 0
    %1883 = vmatprep.subr.bf16.mxu0 0
    %1884 = vmatpush1.bf16.msra.mxu0 0
    %1885 = vmatprep.mubr.bf16.mxu0 0
    %1886 = vmatmul.mubr.bf16.gmra.mrb[0].mxu0 %v1685
    %v1887 = vpop.f32.mrb[0].mxu0
    %v1888 = vadd.f32 0.0, %v1887
    %v1889 = vpop.f32.mrb[0].mxu0
    %v1890 = vadd.f32 0.0, %v1889
    %v1891 = vpop.f32.mrb[0].mxu0
    %v1892 = vpop.f32.mrb[0].mxu0
    %1893 = vdwg.mxu0
    %1894 = vmatprep.subr.bf16.mxu0 %v1505
    %1895 = vmatpush1.bf16.msra.mxu0 %v1504
    %1896 = vmatprep.subr.bf16.mxu0 %v1509
    %1897 = vmatpush1.bf16.msra.mxu0 %v1508
    %1898 = vmatprep.subr.bf16.mxu0 %v1513
    %1899 = vmatpush1.bf16.msra.mxu0 %v1512
    %1900 = vmatprep.subr.bf16.mxu0 %v1517
    %1901 = vmatpush1.bf16.msra.mxu0 %v1516
    %1902 = vmatprep.subr.bf16.mxu0 %v1521
    %1903 = vmatpush1.bf16.msra.mxu0 %v1520
    %1904 = vmatprep.subr.bf16.mxu0 %v1525
    %1905 = vmatpush1.bf16.msra.mxu0 %v1524
    %1906 = vmatprep.subr.bf16.mxu0 %v1529
    %1907 = vmatpush1.bf16.msra.mxu0 %v1528
    %1908 = vmatprep.subr.bf16.mxu0 %v1533
    %1909 = vmatpush1.bf16.msra.mxu0 %v1532
    %1910 = vmatprep.subr.bf16.mxu0 0
    %1911 = vmatpush1.bf16.msra.mxu0 0
    %1912 = vmatprep.subr.bf16.mxu0 0
    %1913 = vmatpush1.bf16.msra.mxu0 0
    %1914 = vmatprep.subr.bf16.mxu0 0
    %1915 = vmatpush1.bf16.msra.mxu0 0
    %1916 = vmatprep.subr.bf16.mxu0 0
    %1917 = vmatpush1.bf16.msra.mxu0 0
    %1918 = vmatprep.subr.bf16.mxu0 0
    %1919 = vmatpush1.bf16.msra.mxu0 0
    %1920 = vmatprep.subr.bf16.mxu0 0
    %1921 = vmatpush1.bf16.msra.mxu0 0
    %1922 = vmatprep.subr.bf16.mxu0 0
    %1923 = vmatpush1.bf16.msra.mxu0 0
    %1924 = vmatprep.subr.bf16.mxu0 0
    %1925 = vmatpush1.bf16.msra.mxu0 0
    %1926 = vmatprep.mubr.bf16.mxu0 0
    %1927 = vmatmul.mubr.bf16.gmra.mrb[0].mxu0 %v1685
    %v1928 = vpop.f32.mrb[0].mxu0
    %v1929 = vadd.f32 0.0, %v1928
    %v1930 = vpop.f32.mrb[0].mxu0
    %v1931 = vadd.f32 0.0, %v1930
    %v1932 = vpop.f32.mrb[0].mxu0
    %v1933 = vpop.f32.mrb[0].mxu0
    %1934 = vdwg.mxu0
    %v1935 = vadd.f32 %v1806, %v1888
    %v1936 = vadd.f32 %v1808, %v1890
    %v1937 = vadd.f32 %v1847, %v1929
    %v1938 = vadd.f32 %v1849, %v1931
    %v1939 = vadd.f32 %v1681, %v1935
    %v1940 = vadd.f32 %v1682, %v1936
    %v1941 = vadd.f32 %v1683, %v1937
    %v1942 = vadd.f32 %v1684, %v1938
    %v1943 = vxor.u32 %v1939, 2147483648
    %v1944 = vxor.u32 %v1940, 2147483648
    %v1945 = vxor.u32 %v1941, 2147483648
    %v1946 = vmul.f32 %v1943, 1.442695
    %v1947 = vpow.pop %v1946
    %v1948 = vmul.f32 %v1944, 1.442695
    %v1949 = vpow.pop %v1948
    %v1950 = vmul.f32 %v1945, 1.442695
    %v1951 = vpow.pop %v1950
    %v1952 = vadd.f32 %v1947, 1.0
    %v1953 = vadd.f32 %v1949, 1.0
    %v1954 = vadd.f32 %v1951, 1.0
    %v1955 = vrcp.pop %v1952
    %v1956 = vmul.f32 1.0, %v1955
    %v1957 = vrcp.pop %v1953
    %v1958 = vmul.f32 1.0, %v1957
    %v1959 = vrcp.pop %v1954
    %v1960 = vmul.f32 1.0, %v1959
    %v1961 = vtanh.pop %v1942
    %v1962 = vmul.f32 %v1958, %v1677
    %v1963 = vmul.f32 %v1956, %v1961
    %v1964 = vadd.f32 %v1962, %v1963
    %v1965 = vtanh.pop %v1964
    %v1966 = vmul.f32 %v1960, %v1965
    %s1967 = scalar_lea.vmem [#allocation2], 64
    %v1968 = vld [vmem:[%s1967] sm:$0xff]
    %v1969 = vld [vmem:[%s1967 + $0x8] sm:$0xff]
    %v1970 = vld [vmem:[%s1967 + $0x10] sm:$0xff]
    %v1971 = vld [vmem:[%s1967 + $0x18] sm:$0xff]
    %v1972 = vpack.c.bf16 %v1966, %v1966
    %v1973 = vunpack.c.l.bf16 %v1972
    %v1974 = vsub.f32 %v1966, %v1973
    %v1975 = vpack.c.bf16 %v1974, %v1974
    %1976 = vmatprep.subr.bf16.mxu0 %v1147
    %1977 = vmatpush1.bf16.msra.mxu0 %v1146
    %1978 = vmatprep.subr.bf16.mxu0 %v1151
    %1979 = vmatpush1.bf16.msra.mxu0 %v1150
    %1980 = vmatprep.subr.bf16.mxu0 %v1155
    %1981 = vmatpush1.bf16.msra.mxu0 %v1154
    %1982 = vmatprep.subr.bf16.mxu0 %v1159
    %1983 = vmatpush1.bf16.msra.mxu0 %v1158
    %1984 = vmatprep.subr.bf16.mxu0 %v1163
    %1985 = vmatpush1.bf16.msra.mxu0 %v1162
    %1986 = vmatprep.subr.bf16.mxu0 %v1167
    %1987 = vmatpush1.bf16.msra.mxu0 %v1166
    %1988 = vmatprep.subr.bf16.mxu0 %v1171
    %1989 = vmatpush1.bf16.msra.mxu0 %v1170
    %1990 = vmatprep.subr.bf16.mxu0 %v1175
    %1991 = vmatpush1.bf16.msra.mxu0 %v1174
    %1992 = vmatprep.subr.bf16.mxu0 0
    %1993 = vmatpush1.bf16.msra.mxu0 0
    %1994 = vmatprep.subr.bf16.mxu0 0
    %1995 = vmatpush1.bf16.msra.mxu0 0
    %1996 = vmatprep.subr.bf16.mxu0 0
    %1997 = vmatpush1.bf16.msra.mxu0 0
    %1998 = vmatprep.subr.bf16.mxu0 0
    %1999 = vmatpush1.bf16.msra.mxu0 0
    %2000 = vmatprep.subr.bf16.mxu0 0
    %2001 = vmatpush1.bf16.msra.mxu0 0
    %2002 = vmatprep.subr.bf16.mxu0 0
    %2003 = vmatpush1.bf16.msra.mxu0 0
    %2004 = vmatprep.subr.bf16.mxu0 0
    %2005 = vmatpush1.bf16.msra.mxu0 0
    %2006 = vmatprep.subr.bf16.mxu0 0
    %2007 = vmatpush1.bf16.msra.mxu0 0
    %2008 = vmatprep.mubr.bf16.mxu0 0
    %2009 = vmatmul.mubr.bf16.gmra.mrb[0].mxu0 %v1975
    %v2010 = vpop.f32.mrb[0].mxu0
    %v2011 = vadd.f32 0.0, %v2010
    %v2012 = vpop.f32.mrb[0].mxu0
    %v2013 = vadd.f32 0.0, %v2012
    %v2014 = vpop.f32.mrb[0].mxu0
    %v2015 = vpop.f32.mrb[0].mxu0
    %2016 = vdwg.mxu0
    %2017 = vmatprep.subr.bf16.mxu0 %v1149
    %2018 = vmatpush1.bf16.msra.mxu0 %v1148
    %2019 = vmatprep.subr.bf16.mxu0 %v1153
    %2020 = vmatpush1.bf16.msra.mxu0 %v1152
    %2021 = vmatprep.subr.bf16.mxu0 %v1157
    %2022 = vmatpush1.bf16.msra.mxu0 %v1156
    %2023 = vmatprep.subr.bf16.mxu0 %v1161
    %2024 = vmatpush1.bf16.msra.mxu0 %v1160
    %2025 = vmatprep.subr.bf16.mxu0 %v1165
    %2026 = vmatpush1.bf16.msra.mxu0 %v1164
    %2027 = vmatprep.subr.bf16.mxu0 %v1169
    %2028 = vmatpush1.bf16.msra.mxu0 %v1168
    %2029 = vmatprep.subr.bf16.mxu0 %v1173
    %2030 = vmatpush1.bf16.msra.mxu0 %v1172
    %2031 = vmatprep.subr.bf16.mxu0 %v1177
    %2032 = vmatpush1.bf16.msra.mxu0 %v1176
    %2033 = vmatprep.subr.bf16.mxu0 0
    %2034 = vmatpush1.bf16.msra.mxu0 0
    %2035 = vmatprep.subr.bf16.mxu0 0
    %2036 = vmatpush1.bf16.msra.mxu0 0
    %2037 = vmatprep.subr.bf16.mxu0 0
    %2038 = vmatpush1.bf16.msra.mxu0 0
    %2039 = vmatprep.subr.bf16.mxu0 0
    %2040 = vmatpush1.bf16.msra.mxu0 0
    %2041 = vmatprep.subr.bf16.mxu0 0
    %2042 = vmatpush1.bf16.msra.mxu0 0
    %2043 = vmatprep.subr.bf16.mxu0 0
    %2044 = vmatpush1.bf16.msra.mxu0 0
    %2045 = vmatprep.subr.bf16.mxu0 0
    %2046 = vmatpush1.bf16.msra.mxu0 0
    %2047 = vmatprep.subr.bf16.mxu0 0
    %2048 = vmatpush1.bf16.msra.mxu0 0
    %2049 = vmatprep.mubr.bf16.mxu0 0
    %2050 = vmatmul.mubr.bf16.gmra.mrb[0].mxu0 %v1975
    %v2051 = vpop.f32.mrb[0].mxu0
    %v2052 = vadd.f32 0.0, %v2051
    %v2053 = vpop.f32.mrb[0].mxu0
    %v2054 = vadd.f32 0.0, %v2053
    %v2055 = vpop.f32.mrb[0].mxu0
    %v2056 = vpop.f32.mrb[0].mxu0
    %2057 = vdwg.mxu0
    %2058 = vmatprep.subr.bf16.mxu0 %v1147
    %2059 = vmatpush1.bf16.msra.mxu0 %v1146
    %2060 = vmatprep.subr.bf16.mxu0 %v1151
    %2061 = vmatpush1.bf16.msra.mxu0 %v1150
    %2062 = vmatprep.subr.bf16.mxu0 %v1155
    %2063 = vmatpush1.bf16.msra.mxu0 %v1154
    %2064 = vmatprep.subr.bf16.mxu0 %v1159
    %2065 = vmatpush1.bf16.msra.mxu0 %v1158
    %2066 = vmatprep.subr.bf16.mxu0 %v1163
    %2067 = vmatpush1.bf16.msra.mxu0 %v1162
    %2068 = vmatprep.subr.bf16.mxu0 %v1167
    %2069 = vmatpush1.bf16.msra.mxu0 %v1166
    %2070 = vmatprep.subr.bf16.mxu0 %v1171
    %2071 = vmatpush1.bf16.msra.mxu0 %v1170
    %2072 = vmatprep.subr.bf16.mxu0 %v1175
    %2073 = vmatpush1.bf16.msra.mxu0 %v1174
    %2074 = vmatprep.subr.bf16.mxu0 0
    %2075 = vmatpush1.bf16.msra.mxu0 0
    %2076 = vmatprep.subr.bf16.mxu0 0
    %2077 = vmatpush1.bf16.msra.mxu0 0
    %2078 = vmatprep.subr.bf16.mxu0 0
    %2079 = vmatpush1.bf16.msra.mxu0 0
    %2080 = vmatprep.subr.bf16.mxu0 0
    %2081 = vmatpush1.bf16.msra.mxu0 0
    %2082 = vmatprep.subr.bf16.mxu0 0
    %2083 = vmatpush1.bf16.msra.mxu0 0
    %2084 = vmatprep.subr.bf16.mxu0 0
    %2085 = vmatpush1.bf16.msra.mxu0 0
    %2086 = vmatprep.subr.bf16.mxu0 0
    %2087 = vmatpush1.bf16.msra.mxu0 0
    %2088 = vmatprep.subr.bf16.mxu0 0
    %2089 = vmatpush1.bf16.msra.mxu0 0
    %2090 = vmatprep.mubr.bf16.mxu0 0
    %2091 = vmatmul.mubr.bf16.gmra.mrb[0].mxu0 %v1972
    %v2092 = vpop.f32.mrb[0].mxu0
    %v2093 = vadd.f32 %v2011, %v2092
    %v2094 = vpop.f32.mrb[0].mxu0
    %v2095 = vadd.f32 %v2013, %v2094
    %v2096 = vpop.f32.mrb[0].mxu0
    %v2097 = vpop.f32.mrb[0].mxu0
    %2098 = vdwg.mxu0
    %2099 = vmatprep.subr.bf16.mxu0 %v1149
    %2100 = vmatpush1.bf16.msra.mxu0 %v1148
    %2101 = vmatprep.subr.bf16.mxu0 %v1153
    %2102 = vmatpush1.bf16.msra.mxu0 %v1152
    %2103 = vmatprep.subr.bf16.mxu0 %v1157
    %2104 = vmatpush1.bf16.msra.mxu0 %v1156
    %2105 = vmatprep.subr.bf16.mxu0 %v1161
    %2106 = vmatpush1.bf16.msra.mxu0 %v1160
    %2107 = vmatprep.subr.bf16.mxu0 %v1165
    %2108 = vmatpush1.bf16.msra.mxu0 %v1164
    %2109 = vmatprep.subr.bf16.mxu0 %v1169
    %2110 = vmatpush1.bf16.msra.mxu0 %v1168
    %2111 = vmatprep.subr.bf16.mxu0 %v1173
    %2112 = vmatpush1.bf16.msra.mxu0 %v1172
    %2113 = vmatprep.subr.bf16.mxu0 %v1177
    %2114 = vmatpush1.bf16.msra.mxu0 %v1176
    %2115 = vmatprep.subr.bf16.mxu0 0
    %2116 = vmatpush1.bf16.msra.mxu0 0
    %2117 = vmatprep.subr.bf16.mxu0 0
    %2118 = vmatpush1.bf16.msra.mxu0 0
    %2119 = vmatprep.subr.bf16.mxu0 0
    %2120 = vmatpush1.bf16.msra.mxu0 0
    %2121 = vmatprep.subr.bf16.mxu0 0
    %2122 = vmatpush1.bf16.msra.mxu0 0
    %2123 = vmatprep.subr.bf16.mxu0 0
    %2124 = vmatpush1.bf16.msra.mxu0 0
    %2125 = vmatprep.subr.bf16.mxu0 0
    %2126 = vmatpush1.bf16.msra.mxu0 0
    %2127 = vmatprep.subr.bf16.mxu0 0
    %2128 = vmatpush1.bf16.msra.mxu0 0
    %2129 = vmatprep.subr.bf16.mxu0 0
    %2130 = vmatpush1.bf16.msra.mxu0 0
    %2131 = vmatprep.mubr.bf16.mxu0 0
    %2132 = vmatmul.mubr.bf16.gmra.mrb[0].mxu0 %v1972
    %v2133 = vpop.f32.mrb[0].mxu0
    %v2134 = vadd.f32 %v2052, %v2133
    %v2135 = vpop.f32.mrb[0].mxu0
    %v2136 = vadd.f32 %v2054, %v2135
    %v2137 = vpop.f32.mrb[0].mxu0
    %v2138 = vpop.f32.mrb[0].mxu0
    %2139 = vdwg.mxu0
    %2140 = vmatprep.subr.bf16.mxu0 %v1503
    %2141 = vmatpush1.bf16.msra.mxu0 %v1502
    %2142 = vmatprep.subr.bf16.mxu0 %v1507
    %2143 = vmatpush1.bf16.msra.mxu0 %v1506
    %2144 = vmatprep.subr.bf16.mxu0 %v1511
    %2145 = vmatpush1.bf16.msra.mxu0 %v1510
    %2146 = vmatprep.subr.bf16.mxu0 %v1515
    %2147 = vmatpush1.bf16.msra.mxu0 %v1514
    %2148 = vmatprep.subr.bf16.mxu0 %v1519
    %2149 = vmatpush1.bf16.msra.mxu0 %v1518
    %2150 = vmatprep.subr.bf16.mxu0 %v1523
    %2151 = vmatpush1.bf16.msra.mxu0 %v1522
    %2152 = vmatprep.subr.bf16.mxu0 %v1527
    %2153 = vmatpush1.bf16.msra.mxu0 %v1526
    %2154 = vmatprep.subr.bf16.mxu0 %v1531
    %2155 = vmatpush1.bf16.msra.mxu0 %v1530
    %2156 = vmatprep.subr.bf16.mxu0 0
    %2157 = vmatpush1.bf16.msra.mxu0 0
    %2158 = vmatprep.subr.bf16.mxu0 0
    %2159 = vmatpush1.bf16.msra.mxu0 0
    %2160 = vmatprep.subr.bf16.mxu0 0
    %2161 = vmatpush1.bf16.msra.mxu0 0
    %2162 = vmatprep.subr.bf16.mxu0 0
    %2163 = vmatpush1.bf16.msra.mxu0 0
    %2164 = vmatprep.subr.bf16.mxu0 0
    %2165 = vmatpush1.bf16.msra.mxu0 0
    %2166 = vmatprep.subr.bf16.mxu0 0
    %2167 = vmatpush1.bf16.msra.mxu0 0
    %2168 = vmatprep.subr.bf16.mxu0 0
    %2169 = vmatpush1.bf16.msra.mxu0 0
    %2170 = vmatprep.subr.bf16.mxu0 0
    %2171 = vmatpush1.bf16.msra.mxu0 0
    %2172 = vmatprep.mubr.bf16.mxu0 0
    %2173 = vmatmul.mubr.bf16.gmra.mrb[0].mxu0 %v1972
    %v2174 = vpop.f32.mrb[0].mxu0
    %v2175 = vadd.f32 0.0, %v2174
    %v2176 = vpop.f32.mrb[0].mxu0
    %v2177 = vadd.f32 0.0, %v2176
    %v2178 = vpop.f32.mrb[0].mxu0
    %v2179 = vpop.f32.mrb[0].mxu0
    %2180 = vdwg.mxu0
    %2181 = vmatprep.subr.bf16.mxu0 %v1505
    %2182 = vmatpush1.bf16.msra.mxu0 %v1504
    %2183 = vmatprep.subr.bf16.mxu0 %v1509
    %2184 = vmatpush1.bf16.msra.mxu0 %v1508
    %2185 = vmatprep.subr.bf16.mxu0 %v1513
    %2186 = vmatpush1.bf16.msra.mxu0 %v1512
    %2187 = vmatprep.subr.bf16.mxu0 %v1517
    %2188 = vmatpush1.bf16.msra.mxu0 %v1516
    %2189 = vmatprep.subr.bf16.mxu0 %v1521
    %2190 = vmatpush1.bf16.msra.mxu0 %v1520
    %2191 = vmatprep.subr.bf16.mxu0 %v1525
    %2192 = vmatpush1.bf16.msra.mxu0 %v1524
    %2193 = vmatprep.subr.bf16.mxu0 %v1529
    %2194 = vmatpush1.bf16.msra.mxu0 %v1528
    %2195 = vmatprep.subr.bf16.mxu0 %v1533
    %2196 = vmatpush1.bf16.msra.mxu0 %v1532
    %2197 = vmatprep.subr.bf16.mxu0 0
    %2198 = vmatpush1.bf16.msra.mxu0 0
    %2199 = vmatprep.subr.bf16.mxu0 0
    %2200 = vmatpush1.bf16.msra.mxu0 0
    %2201 = vmatprep.subr.bf16.mxu0 0
    %2202 = vmatpush1.bf16.msra.mxu0 0
    %2203 = vmatprep.subr.bf16.mxu0 0
    %2204 = vmatpush1.bf16.msra.mxu0 0
    %2205 = vmatprep.subr.bf16.mxu0 0
    %2206 = vmatpush1.bf16.msra.mxu0 0
    %2207 = vmatprep.subr.bf16.mxu0 0
    %2208 = vmatpush1.bf16.msra.mxu0 0
    %2209 = vmatprep.subr.bf16.mxu0 0
    %2210 = vmatpush1.bf16.msra.mxu0 0
    %2211 = vmatprep.subr.bf16.mxu0 0
    %2212 = vmatpush1.bf16.msra.mxu0 0
    %2213 = vmatprep.mubr.bf16.mxu0 0
    %2214 = vmatmul.mubr.bf16.gmra.mrb[0].mxu0 %v1972
    %v2215 = vpop.f32.mrb[0].mxu0
    %v2216 = vadd.f32 0.0, %v2215
    %v2217 = vpop.f32.mrb[0].mxu0
    %v2218 = vadd.f32 0.0, %v2217
    %v2219 = vpop.f32.mrb[0].mxu0
    %v2220 = vpop.f32.mrb[0].mxu0
    %2221 = vdwg.mxu0
    %v2222 = vadd.f32 %v2093, %v2175
    %v2223 = vadd.f32 %v2095, %v2177
    %v2224 = vadd.f32 %v2134, %v2216
    %v2225 = vadd.f32 %v2136, %v2218
    %v2226 = vadd.f32 %v1968, %v2222
    %v2227 = vadd.f32 %v1969, %v2223
    %v2228 = vadd.f32 %v1970, %v2224
    %v2229 = vadd.f32 %v1971, %v2225
    %v2230 = vxor.u32 %v2226, 2147483648
    %v2231 = vxor.u32 %v2227, 2147483648
    %v2232 = vxor.u32 %v2228, 2147483648
    %v2233 = vmul.f32 %v2230, 1.442695
    %v2234 = vpow.pop %v2233
    %v2235 = vmul.f32 %v2231, 1.442695
    %v2236 = vpow.pop %v2235
    %v2237 = vmul.f32 %v2232, 1.442695
    %v2238 = vpow.pop %v2237
    %v2239 = vadd.f32 %v2234, 1.0
    %v2240 = vadd.f32 %v2236, 1.0
    %v2241 = vadd.f32 %v2238, 1.0
    %v2242 = vrcp.pop %v2239
    %v2243 = vmul.f32 1.0, %v2242
    %v2244 = vrcp.pop %v2240
    %v2245 = vmul.f32 1.0, %v2244
    %v2246 = vrcp.pop %v2241
    %v2247 = vmul.f32 1.0, %v2246
    %v2248 = vtanh.pop %v2229
    %v2249 = vmul.f32 %v2245, %v1964
    %v2250 = vmul.f32 %v2243, %v2248
    %v2251 = vadd.f32 %v2249, %v2250
    %v2252 = vtanh.pop %v2251
    %v2253 = vmul.f32 %v2247, %v2252
    %s2254 = scalar_lea.vmem [#allocation2], 96
    %v2255 = vld [vmem:[%s2254] sm:$0xff]
    %v2256 = vld [vmem:[%s2254 + $0x8] sm:$0xff]
    %v2257 = vld [vmem:[%s2254 + $0x10] sm:$0xff]
    %v2258 = vld [vmem:[%s2254 + $0x18] sm:$0xff]
    %v2259 = vpack.c.bf16 %v2253, %v2253
    %v2260 = vunpack.c.l.bf16 %v2259
    %v2261 = vsub.f32 %v2253, %v2260
    %v2262 = vpack.c.bf16 %v2261, %v2261
    %2263 = vmatprep.subr.bf16.mxu0 %v1147
    %2264 = vmatpush1.bf16.msra.mxu0 %v1146
    %2265 = vmatprep.subr.bf16.mxu0 %v1151
    %2266 = vmatpush1.bf16.msra.mxu0 %v1150
    %2267 = vmatprep.subr.bf16.mxu0 %v1155
    %2268 = vmatpush1.bf16.msra.mxu0 %v1154
    %2269 = vmatprep.subr.bf16.mxu0 %v1159
    %2270 = vmatpush1.bf16.msra.mxu0 %v1158
    %2271 = vmatprep.subr.bf16.mxu0 %v1163
    %2272 = vmatpush1.bf16.msra.mxu0 %v1162
    %2273 = vmatprep.subr.bf16.mxu0 %v1167
    %2274 = vmatpush1.bf16.msra.mxu0 %v1166
    %2275 = vmatprep.subr.bf16.mxu0 %v1171
    %2276 = vmatpush1.bf16.msra.mxu0 %v1170
    %2277 = vmatprep.subr.bf16.mxu0 %v1175
    %2278 = vmatpush1.bf16.msra.mxu0 %v1174
    %2279 = vmatprep.subr.bf16.mxu0 0
    %2280 = vmatpush1.bf16.msra.mxu0 0
    %2281 = vmatprep.subr.bf16.mxu0 0
    %2282 = vmatpush1.bf16.msra.mxu0 0
    %2283 = vmatprep.subr.bf16.mxu0 0
    %2284 = vmatpush1.bf16.msra.mxu0 0
    %2285 = vmatprep.subr.bf16.mxu0 0
    %2286 = vmatpush1.bf16.msra.mxu0 0
    %2287 = vmatprep.subr.bf16.mxu0 0
    %2288 = vmatpush1.bf16.msra.mxu0 0
    %2289 = vmatprep.subr.bf16.mxu0 0
    %2290 = vmatpush1.bf16.msra.mxu0 0
    %2291 = vmatprep.subr.bf16.mxu0 0
    %2292 = vmatpush1.bf16.msra.mxu0 0
    %2293 = vmatprep.subr.bf16.mxu0 0
    %2294 = vmatpush1.bf16.msra.mxu0 0
    %2295 = vmatprep.mubr.bf16.mxu0 0
    %2296 = vmatmul.mubr.bf16.gmra.mrb[0].mxu0 %v2262
    %v2297 = vpop.f32.mrb[0].mxu0
    %v2298 = vadd.f32 0.0, %v2297
    %v2299 = vpop.f32.mrb[0].mxu0
    %v2300 = vadd.f32 0.0, %v2299
    %v2301 = vpop.f32.mrb[0].mxu0
    %v2302 = vpop.f32.mrb[0].mxu0
    %2303 = vdwg.mxu0
    %2304 = vmatprep.subr.bf16.mxu0 %v1149
    %2305 = vmatpush1.bf16.msra.mxu0 %v1148
    %2306 = vmatprep.subr.bf16.mxu0 %v1153
    %2307 = vmatpush1.bf16.msra.mxu0 %v1152
    %2308 = vmatprep.subr.bf16.mxu0 %v1157
    %2309 = vmatpush1.bf16.msra.mxu0 %v1156
    %2310 = vmatprep.subr.bf16.mxu0 %v1161
    %2311 = vmatpush1.bf16.msra.mxu0 %v1160
    %2312 = vmatprep.subr.bf16.mxu0 %v1165
    %2313 = vmatpush1.bf16.msra.mxu0 %v1164
    %2314 = vmatprep.subr.bf16.mxu0 %v1169
    %2315 = vmatpush1.bf16.msra.mxu0 %v1168
    %2316 = vmatprep.subr.bf16.mxu0 %v1173
    %2317 = vmatpush1.bf16.msra.mxu0 %v1172
    %2318 = vmatprep.subr.bf16.mxu0 %v1177
    %2319 = vmatpush1.bf16.msra.mxu0 %v1176
    %2320 = vmatprep.subr.bf16.mxu0 0
    %2321 = vmatpush1.bf16.msra.mxu0 0
    %2322 = vmatprep.subr.bf16.mxu0 0
    %2323 = vmatpush1.bf16.msra.mxu0 0
    %2324 = vmatprep.subr.bf16.mxu0 0
    %2325 = vmatpush1.bf16.msra.mxu0 0
    %2326 = vmatprep.subr.bf16.mxu0 0
    %2327 = vmatpush1.bf16.msra.mxu0 0
    %2328 = vmatprep.subr.bf16.mxu0 0
    %2329 = vmatpush1.bf16.msra.mxu0 0
    %2330 = vmatprep.subr.bf16.mxu0 0
    %2331 = vmatpush1.bf16.msra.mxu0 0
    %2332 = vmatprep.subr.bf16.mxu0 0
    %2333 = vmatpush1.bf16.msra.mxu0 0
    %2334 = vmatprep.subr.bf16.mxu0 0
    %2335 = vmatpush1.bf16.msra.mxu0 0
    %2336 = vmatprep.mubr.bf16.mxu0 0
    %2337 = vmatmul.mubr.bf16.gmra.mrb[0].mxu0 %v2262
    %v2338 = vpop.f32.mrb[0].mxu0
    %v2339 = vadd.f32 0.0, %v2338
    %v2340 = vpop.f32.mrb[0].mxu0
    %v2341 = vadd.f32 0.0, %v2340
    %v2342 = vpop.f32.mrb[0].mxu0
    %v2343 = vpop.f32.mrb[0].mxu0
    %2344 = vdwg.mxu0
    %2345 = vmatprep.subr.bf16.mxu0 %v1147
    %2346 = vmatpush1.bf16.msra.mxu0 %v1146
    %2347 = vmatprep.subr.bf16.mxu0 %v1151
    %2348 = vmatpush1.bf16.msra.mxu0 %v1150
    %2349 = vmatprep.subr.bf16.mxu0 %v1155
    %2350 = vmatpush1.bf16.msra.mxu0 %v1154
    %2351 = vmatprep.subr.bf16.mxu0 %v1159
    %2352 = vmatpush1.bf16.msra.mxu0 %v1158
    %2353 = vmatprep.subr.bf16.mxu0 %v1163
    %2354 = vmatpush1.bf16.msra.mxu0 %v1162
    %2355 = vmatprep.subr.bf16.mxu0 %v1167
    %2356 = vmatpush1.bf16.msra.mxu0 %v1166
    %2357 = vmatprep.subr.bf16.mxu0 %v1171
    %2358 = vmatpush1.bf16.msra.mxu0 %v1170
    %2359 = vmatprep.subr.bf16.mxu0 %v1175
    %2360 = vmatpush1.bf16.msra.mxu0 %v1174
    %2361 = vmatprep.subr.bf16.mxu0 0
    %2362 = vmatpush1.bf16.msra.mxu0 0
    %2363 = vmatprep.subr.bf16.mxu0 0
    %2364 = vmatpush1.bf16.msra.mxu0 0
    %2365 = vmatprep.subr.bf16.mxu0 0
    %2366 = vmatpush1.bf16.msra.mxu0 0
    %2367 = vmatprep.subr.bf16.mxu0 0
    %2368 = vmatpush1.bf16.msra.mxu0 0
    %2369 = vmatprep.subr.bf16.mxu0 0
    %2370 = vmatpush1.bf16.msra.mxu0 0
    %2371 = vmatprep.subr.bf16.mxu0 0
    %2372 = vmatpush1.bf16.msra.mxu0 0
    %2373 = vmatprep.subr.bf16.mxu0 0
    %2374 = vmatpush1.bf16.msra.mxu0 0
    %2375 = vmatprep.subr.bf16.mxu0 0
    %2376 = vmatpush1.bf16.msra.mxu0 0
    %2377 = vmatprep.mubr.bf16.mxu0 0
    %2378 = vmatmul.mubr.bf16.gmra.mrb[0].mxu0 %v2259
    %v2379 = vpop.f32.mrb[0].mxu0
    %v2380 = vadd.f32 %v2298, %v2379
    %v2381 = vpop.f32.mrb[0].mxu0
    %v2382 = vadd.f32 %v2300, %v2381
    %v2383 = vpop.f32.mrb[0].mxu0
    %v2384 = vpop.f32.mrb[0].mxu0
    %2385 = vdwg.mxu0
    %2386 = vmatprep.subr.bf16.mxu0 %v1149
    %2387 = vmatpush1.bf16.msra.mxu0 %v1148
    %2388 = vmatprep.subr.bf16.mxu0 %v1153
    %2389 = vmatpush1.bf16.msra.mxu0 %v1152
    %2390 = vmatprep.subr.bf16.mxu0 %v1157
    %2391 = vmatpush1.bf16.msra.mxu0 %v1156
    %2392 = vmatprep.subr.bf16.mxu0 %v1161
    %2393 = vmatpush1.bf16.msra.mxu0 %v1160
    %2394 = vmatprep.subr.bf16.mxu0 %v1165
    %2395 = vmatpush1.bf16.msra.mxu0 %v1164
    %2396 = vmatprep.subr.bf16.mxu0 %v1169
    %2397 = vmatpush1.bf16.msra.mxu0 %v1168
    %2398 = vmatprep.subr.bf16.mxu0 %v1173
    %2399 = vmatpush1.bf16.msra.mxu0 %v1172
    %2400 = vmatprep.subr.bf16.mxu0 %v1177
    %2401 = vmatpush1.bf16.msra.mxu0 %v1176
    %2402 = vmatprep.subr.bf16.mxu0 0
    %2403 = vmatpush1.bf16.msra.mxu0 0
    %2404 = vmatprep.subr.bf16.mxu0 0
    %2405 = vmatpush1.bf16.msra.mxu0 0
    %2406 = vmatprep.subr.bf16.mxu0 0
    %2407 = vmatpush1.bf16.msra.mxu0 0
    %2408 = vmatprep.subr.bf16.mxu0 0
    %2409 = vmatpush1.bf16.msra.mxu0 0
    %2410 = vmatprep.subr.bf16.mxu0 0
    %2411 = vmatpush1.bf16.msra.mxu0 0
    %2412 = vmatprep.subr.bf16.mxu0 0
    %2413 = vmatpush1.bf16.msra.mxu0 0
    %2414 = vmatprep.subr.bf16.mxu0 0
    %2415 = vmatpush1.bf16.msra.mxu0 0
    %2416 = vmatprep.subr.bf16.mxu0 0
    %2417 = vmatpush1.bf16.msra.mxu0 0
    %2418 = vmatprep.mubr.bf16.mxu0 0
    %2419 = vmatmul.mubr.bf16.gmra.mrb[0].mxu0 %v2259
    %v2420 = vpop.f32.mrb[0].mxu0
    %v2421 = vadd.f32 %v2339, %v2420
    %v2422 = vpop.f32.mrb[0].mxu0
    %v2423 = vadd.f32 %v2341, %v2422
    %v2424 = vpop.f32.mrb[0].mxu0
    %v2425 = vpop.f32.mrb[0].mxu0
    %2426 = vdwg.mxu0
    %2427 = vmatprep.subr.bf16.mxu0 %v1503
    %2428 = vmatpush1.bf16.msra.mxu0 %v1502
    %2429 = vmatprep.subr.bf16.mxu0 %v1507
    %2430 = vmatpush1.bf16.msra.mxu0 %v1506
    %2431 = vmatprep.subr.bf16.mxu0 %v1511
    %2432 = vmatpush1.bf16.msra.mxu0 %v1510
    %2433 = vmatprep.subr.bf16.mxu0 %v1515
    %2434 = vmatpush1.bf16.msra.mxu0 %v1514
    %2435 = vmatprep.subr.bf16.mxu0 %v1519
    %2436 = vmatpush1.bf16.msra.mxu0 %v1518
    %2437 = vmatprep.subr.bf16.mxu0 %v1523
    %2438 = vmatpush1.bf16.msra.mxu0 %v1522
    %2439 = vmatprep.subr.bf16.mxu0 %v1527
    %2440 = vmatpush1.bf16.msra.mxu0 %v1526
    %2441 = vmatprep.subr.bf16.mxu0 %v1531
    %2442 = vmatpush1.bf16.msra.mxu0 %v1530
    %2443 = vmatprep.subr.bf16.mxu0 0
    %2444 = vmatpush1.bf16.msra.mxu0 0
    %2445 = vmatprep.subr.bf16.mxu0 0
    %2446 = vmatpush1.bf16.msra.mxu0 0
    %2447 = vmatprep.subr.bf16.mxu0 0
    %2448 = vmatpush1.bf16.msra.mxu0 0
    %2449 = vmatprep.subr.bf16.mxu0 0
    %2450 = vmatpush1.bf16.msra.mxu0 0
    %2451 = vmatprep.subr.bf16.mxu0 0
    %2452 = vmatpush1.bf16.msra.mxu0 0
    %2453 = vmatprep.subr.bf16.mxu0 0
    %2454 = vmatpush1.bf16.msra.mxu0 0
    %2455 = vmatprep.subr.bf16.mxu0 0
    %2456 = vmatpush1.bf16.msra.mxu0 0
    %2457 = vmatprep.subr.bf16.mxu0 0
    %2458 = vmatpush1.bf16.msra.mxu0 0
    %2459 = vmatprep.mubr.bf16.mxu0 0
    %2460 = vmatmul.mubr.bf16.gmra.mrb[0].mxu0 %v2259
    %v2461 = vpop.f32.mrb[0].mxu0
    %v2462 = vadd.f32 0.0, %v2461
    %v2463 = vpop.f32.mrb[0].mxu0
    %v2464 = vadd.f32 0.0, %v2463
    %v2465 = vpop.f32.mrb[0].mxu0
    %v2466 = vpop.f32.mrb[0].mxu0
    %2467 = vdwg.mxu0
    %2468 = vmatprep.subr.bf16.mxu0 %v1505
    %2469 = vmatpush1.bf16.msra.mxu0 %v1504
    %2470 = vmatprep.subr.bf16.mxu0 %v1509
    %2471 = vmatpush1.bf16.msra.mxu0 %v1508
    %2472 = vmatprep.subr.bf16.mxu0 %v1513
    %2473 = vmatpush1.bf16.msra.mxu0 %v1512
    %2474 = vmatprep.subr.bf16.mxu0 %v1517
    %2475 = vmatpush1.bf16.msra.mxu0 %v1516
    %2476 = vmatprep.subr.bf16.mxu0 %v1521
    %2477 = vmatpush1.bf16.msra.mxu0 %v1520
    %2478 = vmatprep.subr.bf16.mxu0 %v1525
    %2479 = vmatpush1.bf16.msra.mxu0 %v1524
    %2480 = vmatprep.subr.bf16.mxu0 %v1529
    %2481 = vmatpush1.bf16.msra.mxu0 %v1528
    %2482 = vmatprep.subr.bf16.mxu0 %v1533
    %2483 = vmatpush1.bf16.msra.mxu0 %v1532
    %2484 = vmatprep.subr.bf16.mxu0 0
    %2485 = vmatpush1.bf16.msra.mxu0 0
    %2486 = vmatprep.subr.bf16.mxu0 0
    %2487 = vmatpush1.bf16.msra.mxu0 0
    %2488 = vmatprep.subr.bf16.mxu0 0
    %2489 = vmatpush1.bf16.msra.mxu0 0
    %2490 = vmatprep.subr.bf16.mxu0 0
    %2491 = vmatpush1.bf16.msra.mxu0 0
    %2492 = vmatprep.subr.bf16.mxu0 0
    %2493 = vmatpush1.bf16.msra.mxu0 0
    %2494 = vmatprep.subr.bf16.mxu0 0
    %2495 = vmatpush1.bf16.msra.mxu0 0
    %2496 = vmatprep.subr.bf16.mxu0 0
    %2497 = vmatpush1.bf16.msra.mxu0 0
    %2498 = vmatprep.subr.bf16.mxu0 0
    %2499 = vmatpush1.bf16.msra.mxu0 0
    %2500 = vmatprep.mubr.bf16.mxu0 0
    %2501 = vmatmul.mubr.bf16.gmra.mrb[0].mxu0 %v2259
    %v2502 = vpop.f32.mrb[0].mxu0
    %v2503 = vadd.f32 0.0, %v2502
    %v2504 = vpop.f32.mrb[0].mxu0
    %v2505 = vadd.f32 0.0, %v2504
    %v2506 = vpop.f32.mrb[0].mxu0
    %v2507 = vpop.f32.mrb[0].mxu0
    %2508 = vdwg.mxu0
    %v2509 = vadd.f32 %v2380, %v2462
    %v2510 = vadd.f32 %v2382, %v2464
    %v2511 = vadd.f32 %v2421, %v2503
    %v2512 = vadd.f32 %v2423, %v2505
    %v2513 = vadd.f32 %v2255, %v2509
    %v2514 = vadd.f32 %v2256, %v2510
    %v2515 = vadd.f32 %v2257, %v2511
    %v2516 = vadd.f32 %v2258, %v2512
    %v2517 = vxor.u32 %v2513, 2147483648
    %v2518 = vxor.u32 %v2514, 2147483648
    %v2519 = vxor.u32 %v2515, 2147483648
    %v2520 = vmul.f32 %v2517, 1.442695
    %v2521 = vpow.pop %v2520
    %v2522 = vmul.f32 %v2518, 1.442695
    %v2523 = vpow.pop %v2522
    %v2524 = vmul.f32 %v2519, 1.442695
    %v2525 = vpow.pop %v2524
    %v2526 = vadd.f32 %v2521, 1.0
    %v2527 = vadd.f32 %v2523, 1.0
    %v2528 = vadd.f32 %v2525, 1.0
    %v2529 = vrcp.pop %v2526
    %v2530 = vmul.f32 1.0, %v2529
    %v2531 = vrcp.pop %v2527
    %v2532 = vmul.f32 1.0, %v2531
    %v2533 = vrcp.pop %v2528
    %v2534 = vmul.f32 1.0, %v2533
    %v2535 = vtanh.pop %v2516
    %v2536 = vmul.f32 %v2532, %v2251
    %v2537 = vmul.f32 %v2530, %v2535
    %v2538 = vadd.f32 %v2536, %v2537
    %v2539 = vtanh.pop %v2538
    %v2540 = vmul.f32 %v2534, %v2539
    %s2541 = scalar_lea.vmem [#allocation2], 128
    %v2542 = vld [vmem:[%s2541] sm:$0xff]
    %v2543 = vld [vmem:[%s2541 + $0x8] sm:$0xff]
    %v2544 = vld [vmem:[%s2541 + $0x10] sm:$0xff]
    %v2545 = vld [vmem:[%s2541 + $0x18] sm:$0xff]
    %v2546 = vpack.c.bf16 %v2540, %v2540
    %v2547 = vunpack.c.l.bf16 %v2546
    %v2548 = vsub.f32 %v2540, %v2547
    %v2549 = vpack.c.bf16 %v2548, %v2548
    %2550 = vmatprep.subr.bf16.mxu0 %v1147
    %2551 = vmatpush1.bf16.msra.mxu0 %v1146
    %2552 = vmatprep.subr.bf16.mxu0 %v1151
    %2553 = vmatpush1.bf16.msra.mxu0 %v1150
    %2554 = vmatprep.subr.bf16.mxu0 %v1155
    %2555 = vmatpush1.bf16.msra.mxu0 %v1154
    %2556 = vmatprep.subr.bf16.mxu0 %v1159
    %2557 = vmatpush1.bf16.msra.mxu0 %v1158
    %2558 = vmatprep.subr.bf16.mxu0 %v1163
    %2559 = vmatpush1.bf16.msra.mxu0 %v1162
    %2560 = vmatprep.subr.bf16.mxu0 %v1167
    %2561 = vmatpush1.bf16.msra.mxu0 %v1166
    %2562 = vmatprep.subr.bf16.mxu0 %v1171
    %2563 = vmatpush1.bf16.msra.mxu0 %v1170
    %2564 = vmatprep.subr.bf16.mxu0 %v1175
    %2565 = vmatpush1.bf16.msra.mxu0 %v1174
    %2566 = vmatprep.subr.bf16.mxu0 0
    %2567 = vmatpush1.bf16.msra.mxu0 0
    %2568 = vmatprep.subr.bf16.mxu0 0
    %2569 = vmatpush1.bf16.msra.mxu0 0
    %2570 = vmatprep.subr.bf16.mxu0 0
    %2571 = vmatpush1.bf16.msra.mxu0 0
    %2572 = vmatprep.subr.bf16.mxu0 0
    %2573 = vmatpush1.bf16.msra.mxu0 0
    %2574 = vmatprep.subr.bf16.mxu0 0
    %2575 = vmatpush1.bf16.msra.mxu0 0
    %2576 = vmatprep.subr.bf16.mxu0 0
    %2577 = vmatpush1.bf16.msra.mxu0 0
    %2578 = vmatprep.subr.bf16.mxu0 0
    %2579 = vmatpush1.bf16.msra.mxu0 0
    %2580 = vmatprep.subr.bf16.mxu0 0
    %2581 = vmatpush1.bf16.msra.mxu0 0
    %2582 = vmatprep.mubr.bf16.mxu0 0
    %2583 = vmatmul.mubr.bf16.gmra.mrb[0].mxu0 %v2549
    %v2584 = vpop.f32.mrb[0].mxu0
    %v2585 = vadd.f32 0.0, %v2584
    %v2586 = vpop.f32.mrb[0].mxu0
    %v2587 = vadd.f32 0.0, %v2586
    %v2588 = vpop.f32.mrb[0].mxu0
    %v2589 = vpop.f32.mrb[0].mxu0
    %2590 = vdwg.mxu0
    %2591 = vmatprep.subr.bf16.mxu0 %v1149
    %2592 = vmatpush1.bf16.msra.mxu0 %v1148
    %2593 = vmatprep.subr.bf16.mxu0 %v1153
    %2594 = vmatpush1.bf16.msra.mxu0 %v1152
    %2595 = vmatprep.subr.bf16.mxu0 %v1157
    %2596 = vmatpush1.bf16.msra.mxu0 %v1156
    %2597 = vmatprep.subr.bf16.mxu0 %v1161
    %2598 = vmatpush1.bf16.msra.mxu0 %v1160
    %2599 = vmatprep.subr.bf16.mxu0 %v1165
    %2600 = vmatpush1.bf16.msra.mxu0 %v1164
    %2601 = vmatprep.subr.bf16.mxu0 %v1169
    %2602 = vmatpush1.bf16.msra.mxu0 %v1168
    %2603 = vmatprep.subr.bf16.mxu0 %v1173
    %2604 = vmatpush1.bf16.msra.mxu0 %v1172
    %2605 = vmatprep.subr.bf16.mxu0 %v1177
    %2606 = vmatpush1.bf16.msra.mxu0 %v1176
    %2607 = vmatprep.subr.bf16.mxu0 0
    %2608 = vmatpush1.bf16.msra.mxu0 0
    %2609 = vmatprep.subr.bf16.mxu0 0
    %2610 = vmatpush1.bf16.msra.mxu0 0
    %2611 = vmatprep.subr.bf16.mxu0 0
    %2612 = vmatpush1.bf16.msra.mxu0 0
    %2613 = vmatprep.subr.bf16.mxu0 0
    %2614 = vmatpush1.bf16.msra.mxu0 0
    %2615 = vmatprep.subr.bf16.mxu0 0
    %2616 = vmatpush1.bf16.msra.mxu0 0
    %2617 = vmatprep.subr.bf16.mxu0 0
    %2618 = vmatpush1.bf16.msra.mxu0 0
    %2619 = vmatprep.subr.bf16.mxu0 0
    %2620 = vmatpush1.bf16.msra.mxu0 0
    %2621 = vmatprep.subr.bf16.mxu0 0
    %2622 = vmatpush1.bf16.msra.mxu0 0
    %2623 = vmatprep.mubr.bf16.mxu0 0
    %2624 = vmatmul.mubr.bf16.gmra.mrb[0].mxu0 %v2549
    %v2625 = vpop.f32.mrb[0].mxu0
    %v2626 = vadd.f32 0.0, %v2625
    %v2627 = vpop.f32.mrb[0].mxu0
    %v2628 = vadd.f32 0.0, %v2627
    %v2629 = vpop.f32.mrb[0].mxu0
    %v2630 = vpop.f32.mrb[0].mxu0
    %2631 = vdwg.mxu0
    %2632 = vmatprep.subr.bf16.mxu0 %v1147
    %2633 = vmatpush1.bf16.msra.mxu0 %v1146
    %2634 = vmatprep.subr.bf16.mxu0 %v1151
    %2635 = vmatpush1.bf16.msra.mxu0 %v1150
    %2636 = vmatprep.subr.bf16.mxu0 %v1155
    %2637 = vmatpush1.bf16.msra.mxu0 %v1154
    %2638 = vmatprep.subr.bf16.mxu0 %v1159
    %2639 = vmatpush1.bf16.msra.mxu0 %v1158
    %2640 = vmatprep.subr.bf16.mxu0 %v1163
    %2641 = vmatpush1.bf16.msra.mxu0 %v1162
    %2642 = vmatprep.subr.bf16.mxu0 %v1167
    %2643 = vmatpush1.bf16.msra.mxu0 %v1166
    %2644 = vmatprep.subr.bf16.mxu0 %v1171
    %2645 = vmatpush1.bf16.msra.mxu0 %v1170
    %2646 = vmatprep.subr.bf16.mxu0 %v1175
    %2647 = vmatpush1.bf16.msra.mxu0 %v1174
    %2648 = vmatprep.subr.bf16.mxu0 0
    %2649 = vmatpush1.bf16.msra.mxu0 0
    %2650 = vmatprep.subr.bf16.mxu0 0
    %2651 = vmatpush1.bf16.msra.mxu0 0
    %2652 = vmatprep.subr.bf16.mxu0 0
    %2653 = vmatpush1.bf16.msra.mxu0 0
    %2654 = vmatprep.subr.bf16.mxu0 0
    %2655 = vmatpush1.bf16.msra.mxu0 0
    %2656 = vmatprep.subr.bf16.mxu0 0
    %2657 = vmatpush1.bf16.msra.mxu0 0
    %2658 = vmatprep.subr.bf16.mxu0 0
    %2659 = vmatpush1.bf16.msra.mxu0 0
    %2660 = vmatprep.subr.bf16.mxu0 0
    %2661 = vmatpush1.bf16.msra.mxu0 0
    %2662 = vmatprep.subr.bf16.mxu0 0
    %2663 = vmatpush1.bf16.msra.mxu0 0
    %2664 = vmatprep.mubr.bf16.mxu0 0
    %2665 = vmatmul.mubr.bf16.gmra.mrb[0].mxu0 %v2546
    %v2666 = vpop.f32.mrb[0].mxu0
    %v2667 = vadd.f32 %v2585, %v2666
    %v2668 = vpop.f32.mrb[0].mxu0
    %v2669 = vadd.f32 %v2587, %v2668
    %v2670 = vpop.f32.mrb[0].mxu0
    %v2671 = vpop.f32.mrb[0].mxu0
    %2672 = vdwg.mxu0
    %2673 = vmatprep.subr.bf16.mxu0 %v1149
    %2674 = vmatpush1.bf16.msra.mxu0 %v1148
    %2675 = vmatprep.subr.bf16.mxu0 %v1153
    %2676 = vmatpush1.bf16.msra.mxu0 %v1152
    %2677 = vmatprep.subr.bf16.mxu0 %v1157
    %2678 = vmatpush1.bf16.msra.mxu0 %v1156
    %2679 = vmatprep.subr.bf16.mxu0 %v1161
    %2680 = vmatpush1.bf16.msra.mxu0 %v1160
    %2681 = vmatprep.subr.bf16.mxu0 %v1165
    %2682 = vmatpush1.bf16.msra.mxu0 %v1164
    %2683 = vmatprep.subr.bf16.mxu0 %v1169
    %2684 = vmatpush1.bf16.msra.mxu0 %v1168
    %2685 = vmatprep.subr.bf16.mxu0 %v1173
    %2686 = vmatpush1.bf16.msra.mxu0 %v1172
    %2687 = vmatprep.subr.bf16.mxu0 %v1177
    %2688 = vmatpush1.bf16.msra.mxu0 %v1176
    %2689 = vmatprep.subr.bf16.mxu0 0
    %2690 = vmatpush1.bf16.msra.mxu0 0
    %2691 = vmatprep.subr.bf16.mxu0 0
    %2692 = vmatpush1.bf16.msra.mxu0 0
    %2693 = vmatprep.subr.bf16.mxu0 0
    %2694 = vmatpush1.bf16.msra.mxu0 0
    %2695 = vmatprep.subr.bf16.mxu0 0
    %2696 = vmatpush1.bf16.msra.mxu0 0
    %2697 = vmatprep.subr.bf16.mxu0 0
    %2698 = vmatpush1.bf16.msra.mxu0 0
    %2699 = vmatprep.subr.bf16.mxu0 0
    %2700 = vmatpush1.bf16.msra.mxu0 0
    %2701 = vmatprep.subr.bf16.mxu0 0
    %2702 = vmatpush1.bf16.msra.mxu0 0
    %2703 = vmatprep.subr.bf16.mxu0 0
    %2704 = vmatpush1.bf16.msra.mxu0 0
    %2705 = vmatprep.mubr.bf16.mxu0 0
    %2706 = vmatmul.mubr.bf16.gmra.mrb[0].mxu0 %v2546
    %v2707 = vpop.f32.mrb[0].mxu0
    %v2708 = vadd.f32 %v2626, %v2707
    %v2709 = vpop.f32.mrb[0].mxu0
    %v2710 = vadd.f32 %v2628, %v2709
    %v2711 = vpop.f32.mrb[0].mxu0
    %v2712 = vpop.f32.mrb[0].mxu0
    %2713 = vdwg.mxu0
    %2714 = vmatprep.subr.bf16.mxu0 %v1503
    %2715 = vmatpush1.bf16.msra.mxu0 %v1502
    %2716 = vmatprep.subr.bf16.mxu0 %v1507
    %2717 = vmatpush1.bf16.msra.mxu0 %v1506
    %2718 = vmatprep.subr.bf16.mxu0 %v1511
    %2719 = vmatpush1.bf16.msra.mxu0 %v1510
    %2720 = vmatprep.subr.bf16.mxu0 %v1515
    %2721 = vmatpush1.bf16.msra.mxu0 %v1514
    %2722 = vmatprep.subr.bf16.mxu0 %v1519
    %2723 = vmatpush1.bf16.msra.mxu0 %v1518
    %2724 = vmatprep.subr.bf16.mxu0 %v1523
    %2725 = vmatpush1.bf16.msra.mxu0 %v1522
    %2726 = vmatprep.subr.bf16.mxu0 %v1527
    %2727 = vmatpush1.bf16.msra.mxu0 %v1526
    %2728 = vmatprep.subr.bf16.mxu0 %v1531
    %2729 = vmatpush1.bf16.msra.mxu0 %v1530
    %2730 = vmatprep.subr.bf16.mxu0 0
    %2731 = vmatpush1.bf16.msra.mxu0 0
    %2732 = vmatprep.subr.bf16.mxu0 0
    %2733 = vmatpush1.bf16.msra.mxu0 0
    %2734 = vmatprep.subr.bf16.mxu0 0
    %2735 = vmatpush1.bf16.msra.mxu0 0
    %2736 = vmatprep.subr.bf16.mxu0 0
    %2737 = vmatpush1.bf16.msra.mxu0 0
    %2738 = vmatprep.subr.bf16.mxu0 0
    %2739 = vmatpush1.bf16.msra.mxu0 0
    %2740 = vmatprep.subr.bf16.mxu0 0
    %2741 = vmatpush1.bf16.msra.mxu0 0
    %2742 = vmatprep.subr.bf16.mxu0 0
    %2743 = vmatpush1.bf16.msra.mxu0 0
    %2744 = vmatprep.subr.bf16.mxu0 0
    %2745 = vmatpush1.bf16.msra.mxu0 0
    %2746 = vmatprep.mubr.bf16.mxu0 0
    %2747 = vmatmul.mubr.bf16.gmra.mrb[0].mxu0 %v2546
    %v2748 = vpop.f32.mrb[0].mxu0
    %v2749 = vadd.f32 0.0, %v2748
    %v2750 = vpop.f32.mrb[0].mxu0
    %v2751 = vadd.f32 0.0, %v2750
    %v2752 = vpop.f32.mrb[0].mxu0
    %v2753 = vpop.f32.mrb[0].mxu0
    %2754 = vdwg.mxu0
    %2755 = vmatprep.subr.bf16.mxu0 %v1505
    %2756 = vmatpush1.bf16.msra.mxu0 %v1504
    %2757 = vmatprep.subr.bf16.mxu0 %v1509
    %2758 = vmatpush1.bf16.msra.mxu0 %v1508
    %2759 = vmatprep.subr.bf16.mxu0 %v1513
    %2760 = vmatpush1.bf16.msra.mxu0 %v1512
    %2761 = vmatprep.subr.bf16.mxu0 %v1517
    %2762 = vmatpush1.bf16.msra.mxu0 %v1516
    %2763 = vmatprep.subr.bf16.mxu0 %v1521
    %2764 = vmatpush1.bf16.msra.mxu0 %v1520
    %2765 = vmatprep.subr.bf16.mxu0 %v1525
    %2766 = vmatpush1.bf16.msra.mxu0 %v1524
    %2767 = vmatprep.subr.bf16.mxu0 %v1529
    %2768 = vmatpush1.bf16.msra.mxu0 %v1528
    %2769 = vmatprep.subr.bf16.mxu0 %v1533
    %2770 = vmatpush1.bf16.msra.mxu0 %v1532
    %2771 = vmatprep.subr.bf16.mxu0 0
    %2772 = vmatpush1.bf16.msra.mxu0 0
    %2773 = vmatprep.subr.bf16.mxu0 0
    %2774 = vmatpush1.bf16.msra.mxu0 0
    %2775 = vmatprep.subr.bf16.mxu0 0
    %2776 = vmatpush1.bf16.msra.mxu0 0
    %2777 = vmatprep.subr.bf16.mxu0 0
    %2778 = vmatpush1.bf16.msra.mxu0 0
    %2779 = vmatprep.subr.bf16.mxu0 0
    %2780 = vmatpush1.bf16.msra.mxu0 0
    %2781 = vmatprep.subr.bf16.mxu0 0
    %2782 = vmatpush1.bf16.msra.mxu0 0
    %2783 = vmatprep.subr.bf16.mxu0 0
    %2784 = vmatpush1.bf16.msra.mxu0 0
    %2785 = vmatprep.subr.bf16.mxu0 0
    %2786 = vmatpush1.bf16.msra.mxu0 0
    %2787 = vmatprep.mubr.bf16.mxu0 0
    %2788 = vmatmul.mubr.bf16.gmra.mrb[0].mxu0 %v2546
    %v2789 = vpop.f32.mrb[0].mxu0
    %v2790 = vadd.f32 0.0, %v2789
    %v2791 = vpop.f32.mrb[0].mxu0
    %v2792 = vadd.f32 0.0, %v2791
    %v2793 = vpop.f32.mrb[0].mxu0
    %v2794 = vpop.f32.mrb[0].mxu0
    %2795 = vdwg.mxu0
    %v2796 = vadd.f32 %v2667, %v2749
    %v2797 = vadd.f32 %v2669, %v2751
    %v2798 = vadd.f32 %v2708, %v2790
    %v2799 = vadd.f32 %v2710, %v2792
    %v2800 = vadd.f32 %v2542, %v2796
    %v2801 = vadd.f32 %v2543, %v2797
    %v2802 = vadd.f32 %v2544, %v2798
    %v2803 = vadd.f32 %v2545, %v2799
    %v2804 = vxor.u32 %v2800, 2147483648
    %v2805 = vxor.u32 %v2801, 2147483648
    %v2806 = vxor.u32 %v2802, 2147483648
    %v2807 = vmul.f32 %v2804, 1.442695
    %v2808 = vpow.pop %v2807
    %v2809 = vmul.f32 %v2805, 1.442695
    %v2810 = vpow.pop %v2809
    %v2811 = vmul.f32 %v2806, 1.442695
    %v2812 = vpow.pop %v2811
    %v2813 = vadd.f32 %v2808, 1.0
    %v2814 = vadd.f32 %v2810, 1.0
    %v2815 = vadd.f32 %v2812, 1.0
    %v2816 = vrcp.pop %v2813
    %v2817 = vmul.f32 1.0, %v2816
    %v2818 = vrcp.pop %v2814
    %v2819 = vmul.f32 1.0, %v2818
    %v2820 = vrcp.pop %v2815
    %v2821 = vmul.f32 1.0, %v2820
    %v2822 = vtanh.pop %v2803
    %v2823 = vmul.f32 %v2819, %v2538
    %v2824 = vmul.f32 %v2817, %v2822
    %v2825 = vadd.f32 %v2823, %v2824
    %v2826 = vtanh.pop %v2825
    %v2827 = vmul.f32 %v2821, %v2826
    %s2828 = scalar_lea.vmem [#allocation2], 160
    %v2829 = vld [vmem:[%s2828] sm:$0xff]
    %v2830 = vld [vmem:[%s2828 + $0x8] sm:$0xff]
    %v2831 = vld [vmem:[%s2828 + $0x10] sm:$0xff]
    %v2832 = vld [vmem:[%s2828 + $0x18] sm:$0xff]
    %v2833 = vpack.c.bf16 %v2827, %v2827
    %v2834 = vunpack.c.l.bf16 %v2833
    %v2835 = vsub.f32 %v2827, %v2834
    %v2836 = vpack.c.bf16 %v2835, %v2835
    %2837 = vmatprep.subr.bf16.mxu0 %v1147
    %2838 = vmatpush1.bf16.msra.mxu0 %v1146
    %2839 = vmatprep.subr.bf16.mxu0 %v1151
    %2840 = vmatpush1.bf16.msra.mxu0 %v1150
    %2841 = vmatprep.subr.bf16.mxu0 %v1155
    %2842 = vmatpush1.bf16.msra.mxu0 %v1154
    %2843 = vmatprep.subr.bf16.mxu0 %v1159
    %2844 = vmatpush1.bf16.msra.mxu0 %v1158
    %2845 = vmatprep.subr.bf16.mxu0 %v1163
    %2846 = vmatpush1.bf16.msra.mxu0 %v1162
    %2847 = vmatprep.subr.bf16.mxu0 %v1167
    %2848 = vmatpush1.bf16.msra.mxu0 %v1166
    %2849 = vmatprep.subr.bf16.mxu0 %v1171
    %2850 = vmatpush1.bf16.msra.mxu0 %v1170
    %2851 = vmatprep.subr.bf16.mxu0 %v1175
    %2852 = vmatpush1.bf16.msra.mxu0 %v1174
    %2853 = vmatprep.subr.bf16.mxu0 0
    %2854 = vmatpush1.bf16.msra.mxu0 0
    %2855 = vmatprep.subr.bf16.mxu0 0
    %2856 = vmatpush1.bf16.msra.mxu0 0
    %2857 = vmatprep.subr.bf16.mxu0 0
    %2858 = vmatpush1.bf16.msra.mxu0 0
    %2859 = vmatprep.subr.bf16.mxu0 0
    %2860 = vmatpush1.bf16.msra.mxu0 0
    %2861 = vmatprep.subr.bf16.mxu0 0
    %2862 = vmatpush1.bf16.msra.mxu0 0
    %2863 = vmatprep.subr.bf16.mxu0 0
    %2864 = vmatpush1.bf16.msra.mxu0 0
    %2865 = vmatprep.subr.bf16.mxu0 0
    %2866 = vmatpush1.bf16.msra.mxu0 0
    %2867 = vmatprep.subr.bf16.mxu0 0
    %2868 = vmatpush1.bf16.msra.mxu0 0
    %2869 = vmatprep.mubr.bf16.mxu0 0
    %2870 = vmatmul.mubr.bf16.gmra.mrb[0].mxu0 %v2836
    %v2871 = vpop.f32.mrb[0].mxu0
    %v2872 = vadd.f32 0.0, %v2871
    %v2873 = vpop.f32.mrb[0].mxu0
    %v2874 = vadd.f32 0.0, %v2873
    %v2875 = vpop.f32.mrb[0].mxu0
    %v2876 = vpop.f32.mrb[0].mxu0
    %2877 = vdwg.mxu0
    %2878 = vmatprep.subr.bf16.mxu0 %v1149
    %2879 = vmatpush1.bf16.msra.mxu0 %v1148
    %2880 = vmatprep.subr.bf16.mxu0 %v1153
    %2881 = vmatpush1.bf16.msra.mxu0 %v1152
    %2882 = vmatprep.subr.bf16.mxu0 %v1157
    %2883 = vmatpush1.bf16.msra.mxu0 %v1156
    %2884 = vmatprep.subr.bf16.mxu0 %v1161
    %2885 = vmatpush1.bf16.msra.mxu0 %v1160
    %2886 = vmatprep.subr.bf16.mxu0 %v1165
    %2887 = vmatpush1.bf16.msra.mxu0 %v1164
    %2888 = vmatprep.subr.bf16.mxu0 %v1169
    %2889 = vmatpush1.bf16.msra.mxu0 %v1168
    %2890 = vmatprep.subr.bf16.mxu0 %v1173
    %2891 = vmatpush1.bf16.msra.mxu0 %v1172
    %2892 = vmatprep.subr.bf16.mxu0 %v1177
    %2893 = vmatpush1.bf16.msra.mxu0 %v1176
    %2894 = vmatprep.subr.bf16.mxu0 0
    %2895 = vmatpush1.bf16.msra.mxu0 0
    %2896 = vmatprep.subr.bf16.mxu0 0
    %2897 = vmatpush1.bf16.msra.mxu0 0
    %2898 = vmatprep.subr.bf16.mxu0 0
    %2899 = vmatpush1.bf16.msra.mxu0 0
    %2900 = vmatprep.subr.bf16.mxu0 0
    %2901 = vmatpush1.bf16.msra.mxu0 0
    %2902 = vmatprep.subr.bf16.mxu0 0
    %2903 = vmatpush1.bf16.msra.mxu0 0
    %2904 = vmatprep.subr.bf16.mxu0 0
    %2905 = vmatpush1.bf16.msra.mxu0 0
    %2906 = vmatprep.subr.bf16.mxu0 0
    %2907 = vmatpush1.bf16.msra.mxu0 0
    %2908 = vmatprep.subr.bf16.mxu0 0
    %2909 = vmatpush1.bf16.msra.mxu0 0
    %2910 = vmatprep.mubr.bf16.mxu0 0
    %2911 = vmatmul.mubr.bf16.gmra.mrb[0].mxu0 %v2836
    %v2912 = vpop.f32.mrb[0].mxu0
    %v2913 = vadd.f32 0.0, %v2912
    %v2914 = vpop.f32.mrb[0].mxu0
    %v2915 = vadd.f32 0.0, %v2914
    %v2916 = vpop.f32.mrb[0].mxu0
    %v2917 = vpop.f32.mrb[0].mxu0
    %2918 = vdwg.mxu0
    %2919 = vmatprep.subr.bf16.mxu0 %v1147
    %2920 = vmatpush1.bf16.msra.mxu0 %v1146
    %2921 = vmatprep.subr.bf16.mxu0 %v1151
    %2922 = vmatpush1.bf16.msra.mxu0 %v1150
    %2923 = vmatprep.subr.bf16.mxu0 %v1155
    %2924 = vmatpush1.bf16.msra.mxu0 %v1154
    %2925 = vmatprep.subr.bf16.mxu0 %v1159
    %2926 = vmatpush1.bf16.msra.mxu0 %v1158
    %2927 = vmatprep.subr.bf16.mxu0 %v1163
    %2928 = vmatpush1.bf16.msra.mxu0 %v1162
    %2929 = vmatprep.subr.bf16.mxu0 %v1167
    %2930 = vmatpush1.bf16.msra.mxu0 %v1166
    %2931 = vmatprep.subr.bf16.mxu0 %v1171
    %2932 = vmatpush1.bf16.msra.mxu0 %v1170
    %2933 = vmatprep.subr.bf16.mxu0 %v1175
    %2934 = vmatpush1.bf16.msra.mxu0 %v1174
    %2935 = vmatprep.subr.bf16.mxu0 0
    %2936 = vmatpush1.bf16.msra.mxu0 0
    %2937 = vmatprep.subr.bf16.mxu0 0
    %2938 = vmatpush1.bf16.msra.mxu0 0
    %2939 = vmatprep.subr.bf16.mxu0 0
    %2940 = vmatpush1.bf16.msra.mxu0 0
    %2941 = vmatprep.subr.bf16.mxu0 0
    %2942 = vmatpush1.bf16.msra.mxu0 0
    %2943 = vmatprep.subr.bf16.mxu0 0
    %2944 = vmatpush1.bf16.msra.mxu0 0
    %2945 = vmatprep.subr.bf16.mxu0 0
    %2946 = vmatpush1.bf16.msra.mxu0 0
    %2947 = vmatprep.subr.bf16.mxu0 0
    %2948 = vmatpush1.bf16.msra.mxu0 0
    %2949 = vmatprep.subr.bf16.mxu0 0
    %2950 = vmatpush1.bf16.msra.mxu0 0
    %2951 = vmatprep.mubr.bf16.mxu0 0
    %2952 = vmatmul.mubr.bf16.gmra.mrb[0].mxu0 %v2833
    %v2953 = vpop.f32.mrb[0].mxu0
    %v2954 = vadd.f32 %v2872, %v2953
    %v2955 = vpop.f32.mrb[0].mxu0
    %v2956 = vadd.f32 %v2874, %v2955
    %v2957 = vpop.f32.mrb[0].mxu0
    %v2958 = vpop.f32.mrb[0].mxu0
    %2959 = vdwg.mxu0
    %2960 = vmatprep.subr.bf16.mxu0 %v1149
    %2961 = vmatpush1.bf16.msra.mxu0 %v1148
    %2962 = vmatprep.subr.bf16.mxu0 %v1153
    %2963 = vmatpush1.bf16.msra.mxu0 %v1152
    %2964 = vmatprep.subr.bf16.mxu0 %v1157
    %2965 = vmatpush1.bf16.msra.mxu0 %v1156
    %2966 = vmatprep.subr.bf16.mxu0 %v1161
    %2967 = vmatpush1.bf16.msra.mxu0 %v1160
    %2968 = vmatprep.subr.bf16.mxu0 %v1165
    %2969 = vmatpush1.bf16.msra.mxu0 %v1164
    %2970 = vmatprep.subr.bf16.mxu0 %v1169
    %2971 = vmatpush1.bf16.msra.mxu0 %v1168
    %2972 = vmatprep.subr.bf16.mxu0 %v1173
    %2973 = vmatpush1.bf16.msra.mxu0 %v1172
    %2974 = vmatprep.subr.bf16.mxu0 %v1177
    %2975 = vmatpush1.bf16.msra.mxu0 %v1176
    %2976 = vmatprep.subr.bf16.mxu0 0
    %2977 = vmatpush1.bf16.msra.mxu0 0
    %2978 = vmatprep.subr.bf16.mxu0 0
    %2979 = vmatpush1.bf16.msra.mxu0 0
    %2980 = vmatprep.subr.bf16.mxu0 0
    %2981 = vmatpush1.bf16.msra.mxu0 0
    %2982 = vmatprep.subr.bf16.mxu0 0
    %2983 = vmatpush1.bf16.msra.mxu0 0
    %2984 = vmatprep.subr.bf16.mxu0 0
    %2985 = vmatpush1.bf16.msra.mxu0 0
    %2986 = vmatprep.subr.bf16.mxu0 0
    %2987 = vmatpush1.bf16.msra.mxu0 0
    %2988 = vmatprep.subr.bf16.mxu0 0
    %2989 = vmatpush1.bf16.msra.mxu0 0
    %2990 = vmatprep.subr.bf16.mxu0 0
    %2991 = vmatpush1.bf16.msra.mxu0 0
    %2992 = vmatprep.mubr.bf16.mxu0 0
    %2993 = vmatmul.mubr.bf16.gmra.mrb[0].mxu0 %v2833
    %v2994 = vpop.f32.mrb[0].mxu0
    %v2995 = vadd.f32 %v2913, %v2994
    %v2996 = vpop.f32.mrb[0].mxu0
    %v2997 = vadd.f32 %v2915, %v2996
    %v2998 = vpop.f32.mrb[0].mxu0
    %v2999 = vpop.f32.mrb[0].mxu0
    %3000 = vdwg.mxu0
    %3001 = vmatprep.subr.bf16.mxu0 %v1503
    %3002 = vmatpush1.bf16.msra.mxu0 %v1502
    %3003 = vmatprep.subr.bf16.mxu0 %v1507
    %3004 = vmatpush1.bf16.msra.mxu0 %v1506
    %3005 = vmatprep.subr.bf16.mxu0 %v1511
    %3006 = vmatpush1.bf16.msra.mxu0 %v1510
    %3007 = vmatprep.subr.bf16.mxu0 %v1515
    %3008 = vmatpush1.bf16.msra.mxu0 %v1514
    %3009 = vmatprep.subr.bf16.mxu0 %v1519
    %3010 = vmatpush1.bf16.msra.mxu0 %v1518
    %3011 = vmatprep.subr.bf16.mxu0 %v1523
    %3012 = vmatpush1.bf16.msra.mxu0 %v1522
    %3013 = vmatprep.subr.bf16.mxu0 %v1527
    %3014 = vmatpush1.bf16.msra.mxu0 %v1526
    %3015 = vmatprep.subr.bf16.mxu0 %v1531
    %3016 = vmatpush1.bf16.msra.mxu0 %v1530
    %3017 = vmatprep.subr.bf16.mxu0 0
    %3018 = vmatpush1.bf16.msra.mxu0 0
    %3019 = vmatprep.subr.bf16.mxu0 0
    %3020 = vmatpush1.bf16.msra.mxu0 0
    %3021 = vmatprep.subr.bf16.mxu0 0
    %3022 = vmatpush1.bf16.msra.mxu0 0
    %3023 = vmatprep.subr.bf16.mxu0 0
    %3024 = vmatpush1.bf16.msra.mxu0 0
    %3025 = vmatprep.subr.bf16.mxu0 0
    %3026 = vmatpush1.bf16.msra.mxu0 0
    %3027 = vmatprep.subr.bf16.mxu0 0
    %3028 = vmatpush1.bf16.msra.mxu0 0
    %3029 = vmatprep.subr.bf16.mxu0 0
    %3030 = vmatpush1.bf16.msra.mxu0 0
    %3031 = vmatprep.subr.bf16.mxu0 0
    %3032 = vmatpush1.bf16.msra.mxu0 0
    %3033 = vmatprep.mubr.bf16.mxu0 0
    %3034 = vmatmul.mubr.bf16.gmra.mrb[0].mxu0 %v2833
    %v3035 = vpop.f32.mrb[0].mxu0
    %v3036 = vadd.f32 0.0, %v3035
    %v3037 = vpop.f32.mrb[0].mxu0
    %v3038 = vadd.f32 0.0, %v3037
    %v3039 = vpop.f32.mrb[0].mxu0
    %v3040 = vpop.f32.mrb[0].mxu0
    %3041 = vdwg.mxu0
    %3042 = vmatprep.subr.bf16.mxu0 %v1505
    %3043 = vmatpush1.bf16.msra.mxu0 %v1504
    %3044 = vmatprep.subr.bf16.mxu0 %v1509
    %3045 = vmatpush1.bf16.msra.mxu0 %v1508
    %3046 = vmatprep.subr.bf16.mxu0 %v1513
    %3047 = vmatpush1.bf16.msra.mxu0 %v1512
    %3048 = vmatprep.subr.bf16.mxu0 %v1517
    %3049 = vmatpush1.bf16.msra.mxu0 %v1516
    %3050 = vmatprep.subr.bf16.mxu0 %v1521
    %3051 = vmatpush1.bf16.msra.mxu0 %v1520
    %3052 = vmatprep.subr.bf16.mxu0 %v1525
    %3053 = vmatpush1.bf16.msra.mxu0 %v1524
    %3054 = vmatprep.subr.bf16.mxu0 %v1529
    %3055 = vmatpush1.bf16.msra.mxu0 %v1528
    %3056 = vmatprep.subr.bf16.mxu0 %v1533
    %3057 = vmatpush1.bf16.msra.mxu0 %v1532
    %3058 = vmatprep.subr.bf16.mxu0 0
    %3059 = vmatpush1.bf16.msra.mxu0 0
    %3060 = vmatprep.subr.bf16.mxu0 0
    %3061 = vmatpush1.bf16.msra.mxu0 0
    %3062 = vmatprep.subr.bf16.mxu0 0
    %3063 = vmatpush1.bf16.msra.mxu0 0
    %3064 = vmatprep.subr.bf16.mxu0 0
    %3065 = vmatpush1.bf16.msra.mxu0 0
    %3066 = vmatprep.subr.bf16.mxu0 0
    %3067 = vmatpush1.bf16.msra.mxu0 0
    %3068 = vmatprep.subr.bf16.mxu0 0
    %3069 = vmatpush1.bf16.msra.mxu0 0
    %3070 = vmatprep.subr.bf16.mxu0 0
    %3071 = vmatpush1.bf16.msra.mxu0 0
    %3072 = vmatprep.subr.bf16.mxu0 0
    %3073 = vmatpush1.bf16.msra.mxu0 0
    %3074 = vmatprep.mubr.bf16.mxu0 0
    %3075 = vmatmul.mubr.bf16.gmra.mrb[0].mxu0 %v2833
    %v3076 = vpop.f32.mrb[0].mxu0
    %v3077 = vadd.f32 0.0, %v3076
    %v3078 = vpop.f32.mrb[0].mxu0
    %v3079 = vadd.f32 0.0, %v3078
    %v3080 = vpop.f32.mrb[0].mxu0
    %v3081 = vpop.f32.mrb[0].mxu0
    %3082 = vdwg.mxu0
    %v3083 = vadd.f32 %v2954, %v3036
    %v3084 = vadd.f32 %v2956, %v3038
    %v3085 = vadd.f32 %v2995, %v3077
    %v3086 = vadd.f32 %v2997, %v3079
    %v3087 = vadd.f32 %v2829, %v3083
    %v3088 = vadd.f32 %v2830, %v3084
    %v3089 = vadd.f32 %v2831, %v3085
    %v3090 = vadd.f32 %v2832, %v3086
    %v3091 = vxor.u32 %v3087, 2147483648
    %v3092 = vxor.u32 %v3088, 2147483648
    %v3093 = vxor.u32 %v3089, 2147483648
    %v3094 = vmul.f32 %v3091, 1.442695
    %v3095 = vpow.pop %v3094
    %v3096 = vmul.f32 %v3092, 1.442695
    %v3097 = vpow.pop %v3096
    %v3098 = vmul.f32 %v3093, 1.442695
    %v3099 = vpow.pop %v3098
    %v3100 = vadd.f32 %v3095, 1.0
    %v3101 = vadd.f32 %v3097, 1.0
    %v3102 = vadd.f32 %v3099, 1.0
    %v3103 = vrcp.pop %v3100
    %v3104 = vmul.f32 1.0, %v3103
    %v3105 = vrcp.pop %v3101
    %v3106 = vmul.f32 1.0, %v3105
    %v3107 = vrcp.pop %v3102
    %v3108 = vmul.f32 1.0, %v3107
    %v3109 = vtanh.pop %v3090
    %v3110 = vmul.f32 %v3106, %v2825
    %v3111 = vmul.f32 %v3104, %v3109
    %v3112 = vadd.f32 %v3110, %v3111
    %v3113 = vtanh.pop %v3112
    %v3114 = vmul.f32 %v3108, %v3113
    %s3115 = scalar_lea.vmem [#allocation2], 192
    %v3116 = vld [vmem:[%s3115] sm:$0xff]
    %v3117 = vld [vmem:[%s3115 + $0x8] sm:$0xff]
    %v3118 = vld [vmem:[%s3115 + $0x10] sm:$0xff]
    %v3119 = vld [vmem:[%s3115 + $0x18] sm:$0xff]
    %v3120 = vpack.c.bf16 %v3114, %v3114
    %v3121 = vunpack.c.l.bf16 %v3120
    %v3122 = vsub.f32 %v3114, %v3121
    %v3123 = vpack.c.bf16 %v3122, %v3122
    %3124 = vmatprep.subr.bf16.mxu0 %v1147
    %3125 = vmatpush1.bf16.msra.mxu0 %v1146
    %3126 = vmatprep.subr.bf16.mxu0 %v1151
    %3127 = vmatpush1.bf16.msra.mxu0 %v1150
    %3128 = vmatprep.subr.bf16.mxu0 %v1155
    %3129 = vmatpush1.bf16.msra.mxu0 %v1154
    %3130 = vmatprep.subr.bf16.mxu0 %v1159
    %3131 = vmatpush1.bf16.msra.mxu0 %v1158
    %3132 = vmatprep.subr.bf16.mxu0 %v1163
    %3133 = vmatpush1.bf16.msra.mxu0 %v1162
    %3134 = vmatprep.subr.bf16.mxu0 %v1167
    %3135 = vmatpush1.bf16.msra.mxu0 %v1166
    %3136 = vmatprep.subr.bf16.mxu0 %v1171
    %3137 = vmatpush1.bf16.msra.mxu0 %v1170
    %3138 = vmatprep.subr.bf16.mxu0 %v1175
    %3139 = vmatpush1.bf16.msra.mxu0 %v1174
    %3140 = vmatprep.subr.bf16.mxu0 0
    %3141 = vmatpush1.bf16.msra.mxu0 0
    %3142 = vmatprep.subr.bf16.mxu0 0
    %3143 = vmatpush1.bf16.msra.mxu0 0
    %3144 = vmatprep.subr.bf16.mxu0 0
    %3145 = vmatpush1.bf16.msra.mxu0 0
    %3146 = vmatprep.subr.bf16.mxu0 0
    %3147 = vmatpush1.bf16.msra.mxu0 0
    %3148 = vmatprep.subr.bf16.mxu0 0
    %3149 = vmatpush1.bf16.msra.mxu0 0
    %3150 = vmatprep.subr.bf16.mxu0 0
    %3151 = vmatpush1.bf16.msra.mxu0 0
    %3152 = vmatprep.subr.bf16.mxu0 0
    %3153 = vmatpush1.bf16.msra.mxu0 0
    %3154 = vmatprep.subr.bf16.mxu0 0
    %3155 = vmatpush1.bf16.msra.mxu0 0
    %3156 = vmatprep.mubr.bf16.mxu0 0
    %3157 = vmatmul.mubr.bf16.gmra.mrb[0].mxu0 %v3123
    %v3158 = vpop.f32.mrb[0].mxu0
    %v3159 = vadd.f32 0.0, %v3158
    %v3160 = vpop.f32.mrb[0].mxu0
    %v3161 = vadd.f32 0.0, %v3160
    %v3162 = vpop.f32.mrb[0].mxu0
    %v3163 = vpop.f32.mrb[0].mxu0
    %3164 = vdwg.mxu0
    %3165 = vmatprep.subr.bf16.mxu0 %v1149
    %3166 = vmatpush1.bf16.msra.mxu0 %v1148
    %3167 = vmatprep.subr.bf16.mxu0 %v1153
    %3168 = vmatpush1.bf16.msra.mxu0 %v1152
    %3169 = vmatprep.subr.bf16.mxu0 %v1157
    %3170 = vmatpush1.bf16.msra.mxu0 %v1156
    %3171 = vmatprep.subr.bf16.mxu0 %v1161
    %3172 = vmatpush1.bf16.msra.mxu0 %v1160
    %3173 = vmatprep.subr.bf16.mxu0 %v1165
    %3174 = vmatpush1.bf16.msra.mxu0 %v1164
    %3175 = vmatprep.subr.bf16.mxu0 %v1169
    %3176 = vmatpush1.bf16.msra.mxu0 %v1168
    %3177 = vmatprep.subr.bf16.mxu0 %v1173
    %3178 = vmatpush1.bf16.msra.mxu0 %v1172
    %3179 = vmatprep.subr.bf16.mxu0 %v1177
    %3180 = vmatpush1.bf16.msra.mxu0 %v1176
    %3181 = vmatprep.subr.bf16.mxu0 0
    %3182 = vmatpush1.bf16.msra.mxu0 0
    %3183 = vmatprep.subr.bf16.mxu0 0
    %3184 = vmatpush1.bf16.msra.mxu0 0
    %3185 = vmatprep.subr.bf16.mxu0 0
    %3186 = vmatpush1.bf16.msra.mxu0 0
    %3187 = vmatprep.subr.bf16.mxu0 0
    %3188 = vmatpush1.bf16.msra.mxu0 0
    %3189 = vmatprep.subr.bf16.mxu0 0
    %3190 = vmatpush1.bf16.msra.mxu0 0
    %3191 = vmatprep.subr.bf16.mxu0 0
    %3192 = vmatpush1.bf16.msra.mxu0 0
    %3193 = vmatprep.subr.bf16.mxu0 0
    %3194 = vmatpush1.bf16.msra.mxu0 0
    %3195 = vmatprep.subr.bf16.mxu0 0
    %3196 = vmatpush1.bf16.msra.mxu0 0
    %3197 = vmatprep.mubr.bf16.mxu0 0
    %3198 = vmatmul.mubr.bf16.gmra.mrb[0].mxu0 %v3123
    %v3199 = vpop.f32.mrb[0].mxu0
    %v3200 = vadd.f32 0.0, %v3199
    %v3201 = vpop.f32.mrb[0].mxu0
    %v3202 = vadd.f32 0.0, %v3201
    %v3203 = vpop.f32.mrb[0].mxu0
    %v3204 = vpop.f32.mrb[0].mxu0
    %3205 = vdwg.mxu0
    %3206 = vmatprep.subr.bf16.mxu0 %v1147
    %3207 = vmatpush1.bf16.msra.mxu0 %v1146
    %3208 = vmatprep.subr.bf16.mxu0 %v1151
    %3209 = vmatpush1.bf16.msra.mxu0 %v1150
    %3210 = vmatprep.subr.bf16.mxu0 %v1155
    %3211 = vmatpush1.bf16.msra.mxu0 %v1154
    %3212 = vmatprep.subr.bf16.mxu0 %v1159
    %3213 = vmatpush1.bf16.msra.mxu0 %v1158
    %3214 = vmatprep.subr.bf16.mxu0 %v1163
    %3215 = vmatpush1.bf16.msra.mxu0 %v1162
    %3216 = vmatprep.subr.bf16.mxu0 %v1167
    %3217 = vmatpush1.bf16.msra.mxu0 %v1166
    %3218 = vmatprep.subr.bf16.mxu0 %v1171
    %3219 = vmatpush1.bf16.msra.mxu0 %v1170
    %3220 = vmatprep.subr.bf16.mxu0 %v1175
    %3221 = vmatpush1.bf16.msra.mxu0 %v1174
    %3222 = vmatprep.subr.bf16.mxu0 0
    %3223 = vmatpush1.bf16.msra.mxu0 0
    %3224 = vmatprep.subr.bf16.mxu0 0
    %3225 = vmatpush1.bf16.msra.mxu0 0
    %3226 = vmatprep.subr.bf16.mxu0 0
    %3227 = vmatpush1.bf16.msra.mxu0 0
    %3228 = vmatprep.subr.bf16.mxu0 0
    %3229 = vmatpush1.bf16.msra.mxu0 0
    %3230 = vmatprep.subr.bf16.mxu0 0
    %3231 = vmatpush1.bf16.msra.mxu0 0
    %3232 = vmatprep.subr.bf16.mxu0 0
    %3233 = vmatpush1.bf16.msra.mxu0 0
    %3234 = vmatprep.subr.bf16.mxu0 0
    %3235 = vmatpush1.bf16.msra.mxu0 0
    %3236 = vmatprep.subr.bf16.mxu0 0
    %3237 = vmatpush1.bf16.msra.mxu0 0
    %3238 = vmatprep.mubr.bf16.mxu0 0
    %3239 = vmatmul.mubr.bf16.gmra.mrb[0].mxu0 %v3120
    %v3240 = vpop.f32.mrb[0].mxu0
    %v3241 = vadd.f32 %v3159, %v3240
    %v3242 = vpop.f32.mrb[0].mxu0
    %v3243 = vadd.f32 %v3161, %v3242
    %v3244 = vpop.f32.mrb[0].mxu0
    %v3245 = vpop.f32.mrb[0].mxu0
    %3246 = vdwg.mxu0
    %3247 = vmatprep.subr.bf16.mxu0 %v1149
    %3248 = vmatpush1.bf16.msra.mxu0 %v1148
    %3249 = vmatprep.subr.bf16.mxu0 %v1153
    %3250 = vmatpush1.bf16.msra.mxu0 %v1152
    %3251 = vmatprep.subr.bf16.mxu0 %v1157
    %3252 = vmatpush1.bf16.msra.mxu0 %v1156
    %3253 = vmatprep.subr.bf16.mxu0 %v1161
    %3254 = vmatpush1.bf16.msra.mxu0 %v1160
    %3255 = vmatprep.subr.bf16.mxu0 %v1165
    %3256 = vmatpush1.bf16.msra.mxu0 %v1164
    %3257 = vmatprep.subr.bf16.mxu0 %v1169
    %3258 = vmatpush1.bf16.msra.mxu0 %v1168
    %3259 = vmatprep.subr.bf16.mxu0 %v1173
    %3260 = vmatpush1.bf16.msra.mxu0 %v1172
    %3261 = vmatprep.subr.bf16.mxu0 %v1177
    %3262 = vmatpush1.bf16.msra.mxu0 %v1176
    %3263 = vmatprep.subr.bf16.mxu0 0
    %3264 = vmatpush1.bf16.msra.mxu0 0
    %3265 = vmatprep.subr.bf16.mxu0 0
    %3266 = vmatpush1.bf16.msra.mxu0 0
    %3267 = vmatprep.subr.bf16.mxu0 0
    %3268 = vmatpush1.bf16.msra.mxu0 0
    %3269 = vmatprep.subr.bf16.mxu0 0
    %3270 = vmatpush1.bf16.msra.mxu0 0
    %3271 = vmatprep.subr.bf16.mxu0 0
    %3272 = vmatpush1.bf16.msra.mxu0 0
    %3273 = vmatprep.subr.bf16.mxu0 0
    %3274 = vmatpush1.bf16.msra.mxu0 0
    %3275 = vmatprep.subr.bf16.mxu0 0
    %3276 = vmatpush1.bf16.msra.mxu0 0
    %3277 = vmatprep.subr.bf16.mxu0 0
    %3278 = vmatpush1.bf16.msra.mxu0 0
    %3279 = vmatprep.mubr.bf16.mxu0 0
    %3280 = vmatmul.mubr.bf16.gmra.mrb[0].mxu0 %v3120
    %v3281 = vpop.f32.mrb[0].mxu0
    %v3282 = vadd.f32 %v3200, %v3281
    %v3283 = vpop.f32.mrb[0].mxu0
    %v3284 = vadd.f32 %v3202, %v3283
    %v3285 = vpop.f32.mrb[0].mxu0
    %v3286 = vpop.f32.mrb[0].mxu0
    %3287 = vdwg.mxu0
    %3288 = vmatprep.subr.bf16.mxu0 %v1503
    %3289 = vmatpush1.bf16.msra.mxu0 %v1502
    %3290 = vmatprep.subr.bf16.mxu0 %v1507
    %3291 = vmatpush1.bf16.msra.mxu0 %v1506
    %3292 = vmatprep.subr.bf16.mxu0 %v1511
    %3293 = vmatpush1.bf16.msra.mxu0 %v1510
    %3294 = vmatprep.subr.bf16.mxu0 %v1515
    %3295 = vmatpush1.bf16.msra.mxu0 %v1514
    %3296 = vmatprep.subr.bf16.mxu0 %v1519
    %3297 = vmatpush1.bf16.msra.mxu0 %v1518
    %3298 = vmatprep.subr.bf16.mxu0 %v1523
    %3299 = vmatpush1.bf16.msra.mxu0 %v1522
    %3300 = vmatprep.subr.bf16.mxu0 %v1527
    %3301 = vmatpush1.bf16.msra.mxu0 %v1526
    %3302 = vmatprep.subr.bf16.mxu0 %v1531
    %3303 = vmatpush1.bf16.msra.mxu0 %v1530
    %3304 = vmatprep.subr.bf16.mxu0 0
    %3305 = vmatpush1.bf16.msra.mxu0 0
    %3306 = vmatprep.subr.bf16.mxu0 0
    %3307 = vmatpush1.bf16.msra.mxu0 0
    %3308 = vmatprep.subr.bf16.mxu0 0
    %3309 = vmatpush1.bf16.msra.mxu0 0
    %3310 = vmatprep.subr.bf16.mxu0 0
    %3311 = vmatpush1.bf16.msra.mxu0 0
    %3312 = vmatprep.subr.bf16.mxu0 0
    %3313 = vmatpush1.bf16.msra.mxu0 0
    %3314 = vmatprep.subr.bf16.mxu0 0
    %3315 = vmatpush1.bf16.msra.mxu0 0
    %3316 = vmatprep.subr.bf16.mxu0 0
    %3317 = vmatpush1.bf16.msra.mxu0 0
    %3318 = vmatprep.subr.bf16.mxu0 0
    %3319 = vmatpush1.bf16.msra.mxu0 0
    %3320 = vmatprep.mubr.bf16.mxu0 0
    %3321 = vmatmul.mubr.bf16.gmra.mrb[0].mxu0 %v3120
    %v3322 = vpop.f32.mrb[0].mxu0
    %v3323 = vadd.f32 0.0, %v3322
    %v3324 = vpop.f32.mrb[0].mxu0
    %v3325 = vadd.f32 0.0, %v3324
    %v3326 = vpop.f32.mrb[0].mxu0
    %v3327 = vpop.f32.mrb[0].mxu0
    %3328 = vdwg.mxu0
    %3329 = vmatprep.subr.bf16.mxu0 %v1505
    %3330 = vmatpush1.bf16.msra.mxu0 %v1504
    %3331 = vmatprep.subr.bf16.mxu0 %v1509
    %3332 = vmatpush1.bf16.msra.mxu0 %v1508
    %3333 = vmatprep.subr.bf16.mxu0 %v1513
    %3334 = vmatpush1.bf16.msra.mxu0 %v1512
    %3335 = vmatprep.subr.bf16.mxu0 %v1517
    %3336 = vmatpush1.bf16.msra.mxu0 %v1516
    %3337 = vmatprep.subr.bf16.mxu0 %v1521
    %3338 = vmatpush1.bf16.msra.mxu0 %v1520
    %3339 = vmatprep.subr.bf16.mxu0 %v1525
    %3340 = vmatpush1.bf16.msra.mxu0 %v1524
    %3341 = vmatprep.subr.bf16.mxu0 %v1529
    %3342 = vmatpush1.bf16.msra.mxu0 %v1528
    %3343 = vmatprep.subr.bf16.mxu0 %v1533
    %3344 = vmatpush1.bf16.msra.mxu0 %v1532
    %3345 = vmatprep.subr.bf16.mxu0 0
    %3346 = vmatpush1.bf16.msra.mxu0 0
    %3347 = vmatprep.subr.bf16.mxu0 0
    %3348 = vmatpush1.bf16.msra.mxu0 0
    %3349 = vmatprep.subr.bf16.mxu0 0
    %3350 = vmatpush1.bf16.msra.mxu0 0
    %3351 = vmatprep.subr.bf16.mxu0 0
    %3352 = vmatpush1.bf16.msra.mxu0 0
    %3353 = vmatprep.subr.bf16.mxu0 0
    %3354 = vmatpush1.bf16.msra.mxu0 0
    %3355 = vmatprep.subr.bf16.mxu0 0
    %3356 = vmatpush1.bf16.msra.mxu0 0
    %3357 = vmatprep.subr.bf16.mxu0 0
    %3358 = vmatpush1.bf16.msra.mxu0 0
    %3359 = vmatprep.subr.bf16.mxu0 0
    %3360 = vmatpush1.bf16.msra.mxu0 0
    %3361 = vmatprep.mubr.bf16.mxu0 0
    %3362 = vmatmul.mubr.bf16.gmra.mrb[0].mxu0 %v3120
    %v3363 = vpop.f32.mrb[0].mxu0
    %v3364 = vadd.f32 0.0, %v3363
    %v3365 = vpop.f32.mrb[0].mxu0
    %v3366 = vadd.f32 0.0, %v3365
    %v3367 = vpop.f32.mrb[0].mxu0
    %v3368 = vpop.f32.mrb[0].mxu0
    %3369 = vdwg.mxu0
    %v3370 = vadd.f32 %v3241, %v3323
    %v3371 = vadd.f32 %v3243, %v3325
    %v3372 = vadd.f32 %v3282, %v3364
    %v3373 = vadd.f32 %v3284, %v3366
    %v3374 = vadd.f32 %v3116, %v3370
    %v3375 = vadd.f32 %v3117, %v3371
    %v3376 = vadd.f32 %v3118, %v3372
    %v3377 = vadd.f32 %v3119, %v3373
    %v3378 = vxor.u32 %v3374, 2147483648
    %v3379 = vxor.u32 %v3375, 2147483648
    %v3380 = vxor.u32 %v3376, 2147483648
    %v3381 = vmul.f32 %v3378, 1.442695
    %v3382 = vpow.pop %v3381
    %v3383 = vmul.f32 %v3379, 1.442695
    %v3384 = vpow.pop %v3383
    %v3385 = vmul.f32 %v3380, 1.442695
    %v3386 = vpow.pop %v3385
    %v3387 = vadd.f32 %v3382, 1.0
    %v3388 = vadd.f32 %v3384, 1.0
    %v3389 = vadd.f32 %v3386, 1.0
    %v3390 = vrcp.pop %v3387
    %v3391 = vmul.f32 1.0, %v3390
    %v3392 = vrcp.pop %v3388
    %v3393 = vmul.f32 1.0, %v3392
    %v3394 = vrcp.pop %v3389
    %v3395 = vmul.f32 1.0, %v3394
    %v3396 = vtanh.pop %v3377
    %v3397 = vmul.f32 %v3393, %v3112
    %v3398 = vmul.f32 %v3391, %v3396
    %v3399 = vadd.f32 %v3397, %v3398
    %v3400 = vtanh.pop %v3399
    %v3401 = vmul.f32 %v3395, %v3400
    %s3402 = scalar_lea.vmem [#allocation2], 224
    %v3403 = vld [vmem:[%s3402] sm:$0xff]
    %v3404 = vld [vmem:[%s3402 + $0x8] sm:$0xff]
    %v3405 = vld [vmem:[%s3402 + $0x10] sm:$0xff]
    %v3406 = vld [vmem:[%s3402 + $0x18] sm:$0xff]
    %v3407 = vpack.c.bf16 %v3401, %v3401
    %v3408 = vunpack.c.l.bf16 %v3407
    %v3409 = vsub.f32 %v3401, %v3408
    %v3410 = vpack.c.bf16 %v3409, %v3409
    %3411 = vmatprep.subr.bf16.mxu0 %v1147
    %3412 = vmatpush1.bf16.msra.mxu0 %v1146
    %3413 = vmatprep.subr.bf16.mxu0 %v1151
    %3414 = vmatpush1.bf16.msra.mxu0 %v1150
    %3415 = vmatprep.subr.bf16.mxu0 %v1155
    %3416 = vmatpush1.bf16.msra.mxu0 %v1154
    %3417 = vmatprep.subr.bf16.mxu0 %v1159
    %3418 = vmatpush1.bf16.msra.mxu0 %v1158
    %3419 = vmatprep.subr.bf16.mxu0 %v1163
    %3420 = vmatpush1.bf16.msra.mxu0 %v1162
    %3421 = vmatprep.subr.bf16.mxu0 %v1167
    %3422 = vmatpush1.bf16.msra.mxu0 %v1166
    %3423 = vmatprep.subr.bf16.mxu0 %v1171
    %3424 = vmatpush1.bf16.msra.mxu0 %v1170
    %3425 = vmatprep.subr.bf16.mxu0 %v1175
    %3426 = vmatpush1.bf16.msra.mxu0 %v1174
    %3427 = vmatprep.subr.bf16.mxu0 0
    %3428 = vmatpush1.bf16.msra.mxu0 0
    %3429 = vmatprep.subr.bf16.mxu0 0
    %3430 = vmatpush1.bf16.msra.mxu0 0
    %3431 = vmatprep.subr.bf16.mxu0 0
    %3432 = vmatpush1.bf16.msra.mxu0 0
    %3433 = vmatprep.subr.bf16.mxu0 0
    %3434 = vmatpush1.bf16.msra.mxu0 0
    %3435 = vmatprep.subr.bf16.mxu0 0
    %3436 = vmatpush1.bf16.msra.mxu0 0
    %3437 = vmatprep.subr.bf16.mxu0 0
    %3438 = vmatpush1.bf16.msra.mxu0 0
    %3439 = vmatprep.subr.bf16.mxu0 0
    %3440 = vmatpush1.bf16.msra.mxu0 0
    %3441 = vmatprep.subr.bf16.mxu0 0
    %3442 = vmatpush1.bf16.msra.mxu0 0
    %3443 = vmatprep.mubr.bf16.mxu0 0
    %3444 = vmatmul.mubr.bf16.gmra.mrb[0].mxu0 %v3410
    %v3445 = vpop.f32.mrb[0].mxu0
    %v3446 = vadd.f32 0.0, %v3445
    %v3447 = vpop.f32.mrb[0].mxu0
    %v3448 = vadd.f32 0.0, %v3447
    %v3449 = vpop.f32.mrb[0].mxu0
    %v3450 = vpop.f32.mrb[0].mxu0
    %3451 = vdwg.mxu0
    %3452 = vmatprep.subr.bf16.mxu0 %v1149
    %3453 = vmatpush1.bf16.msra.mxu0 %v1148
    %3454 = vmatprep.subr.bf16.mxu0 %v1153
    %3455 = vmatpush1.bf16.msra.mxu0 %v1152
    %3456 = vmatprep.subr.bf16.mxu0 %v1157
    %3457 = vmatpush1.bf16.msra.mxu0 %v1156
    %3458 = vmatprep.subr.bf16.mxu0 %v1161
    %3459 = vmatpush1.bf16.msra.mxu0 %v1160
    %3460 = vmatprep.subr.bf16.mxu0 %v1165
    %3461 = vmatpush1.bf16.msra.mxu0 %v1164
    %3462 = vmatprep.subr.bf16.mxu0 %v1169
    %3463 = vmatpush1.bf16.msra.mxu0 %v1168
    %3464 = vmatprep.subr.bf16.mxu0 %v1173
    %3465 = vmatpush1.bf16.msra.mxu0 %v1172
    %3466 = vmatprep.subr.bf16.mxu0 %v1177
    %3467 = vmatpush1.bf16.msra.mxu0 %v1176
    %3468 = vmatprep.subr.bf16.mxu0 0
    %3469 = vmatpush1.bf16.msra.mxu0 0
    %3470 = vmatprep.subr.bf16.mxu0 0
    %3471 = vmatpush1.bf16.msra.mxu0 0
    %3472 = vmatprep.subr.bf16.mxu0 0
    %3473 = vmatpush1.bf16.msra.mxu0 0
    %3474 = vmatprep.subr.bf16.mxu0 0
    %3475 = vmatpush1.bf16.msra.mxu0 0
    %3476 = vmatprep.subr.bf16.mxu0 0
    %3477 = vmatpush1.bf16.msra.mxu0 0
    %3478 = vmatprep.subr.bf16.mxu0 0
    %3479 = vmatpush1.bf16.msra.mxu0 0
    %3480 = vmatprep.subr.bf16.mxu0 0
    %3481 = vmatpush1.bf16.msra.mxu0 0
    %3482 = vmatprep.subr.bf16.mxu0 0
    %3483 = vmatpush1.bf16.msra.mxu0 0
    %3484 = vmatprep.mubr.bf16.mxu0 0
    %3485 = vmatmul.mubr.bf16.gmra.mrb[0].mxu0 %v3410
    %v3486 = vpop.f32.mrb[0].mxu0
    %v3487 = vadd.f32 0.0, %v3486
    %v3488 = vpop.f32.mrb[0].mxu0
    %v3489 = vadd.f32 0.0, %v3488
    %v3490 = vpop.f32.mrb[0].mxu0
    %v3491 = vpop.f32.mrb[0].mxu0
    %3492 = vdwg.mxu0
    %3493 = vmatprep.subr.bf16.mxu0 %v1147
    %3494 = vmatpush1.bf16.msra.mxu0 %v1146
    %3495 = vmatprep.subr.bf16.mxu0 %v1151
    %3496 = vmatpush1.bf16.msra.mxu0 %v1150
    %3497 = vmatprep.subr.bf16.mxu0 %v1155
    %3498 = vmatpush1.bf16.msra.mxu0 %v1154
    %3499 = vmatprep.subr.bf16.mxu0 %v1159
    %3500 = vmatpush1.bf16.msra.mxu0 %v1158
    %3501 = vmatprep.subr.bf16.mxu0 %v1163
    %3502 = vmatpush1.bf16.msra.mxu0 %v1162
    %3503 = vmatprep.subr.bf16.mxu0 %v1167
    %3504 = vmatpush1.bf16.msra.mxu0 %v1166
    %3505 = vmatprep.subr.bf16.mxu0 %v1171
    %3506 = vmatpush1.bf16.msra.mxu0 %v1170
    %3507 = vmatprep.subr.bf16.mxu0 %v1175
    %3508 = vmatpush1.bf16.msra.mxu0 %v1174
    %3509 = vmatprep.subr.bf16.mxu0 0
    %3510 = vmatpush1.bf16.msra.mxu0 0
    %3511 = vmatprep.subr.bf16.mxu0 0
    %3512 = vmatpush1.bf16.msra.mxu0 0
    %3513 = vmatprep.subr.bf16.mxu0 0
    %3514 = vmatpush1.bf16.msra.mxu0 0
    %3515 = vmatprep.subr.bf16.mxu0 0
    %3516 = vmatpush1.bf16.msra.mxu0 0
    %3517 = vmatprep.subr.bf16.mxu0 0
    %3518 = vmatpush1.bf16.msra.mxu0 0
    %3519 = vmatprep.subr.bf16.mxu0 0
    %3520 = vmatpush1.bf16.msra.mxu0 0
    %3521 = vmatprep.subr.bf16.mxu0 0
    %3522 = vmatpush1.bf16.msra.mxu0 0
    %3523 = vmatprep.subr.bf16.mxu0 0
    %3524 = vmatpush1.bf16.msra.mxu0 0
    %3525 = vmatprep.mubr.bf16.mxu0 0
    %3526 = vmatmul.mubr.bf16.gmra.mrb[0].mxu0 %v3407
    %v3527 = vpop.f32.mrb[0].mxu0
    %v3528 = vadd.f32 %v3446, %v3527
    %v3529 = vpop.f32.mrb[0].mxu0
    %v3530 = vadd.f32 %v3448, %v3529
    %v3531 = vpop.f32.mrb[0].mxu0
    %v3532 = vpop.f32.mrb[0].mxu0
    %3533 = vdwg.mxu0
    %3534 = vmatprep.subr.bf16.mxu0 %v1149
    %3535 = vmatpush1.bf16.msra.mxu0 %v1148
    %3536 = vmatprep.subr.bf16.mxu0 %v1153
    %3537 = vmatpush1.bf16.msra.mxu0 %v1152
    %3538 = vmatprep.subr.bf16.mxu0 %v1157
    %3539 = vmatpush1.bf16.msra.mxu0 %v1156
    %3540 = vmatprep.subr.bf16.mxu0 %v1161
    %3541 = vmatpush1.bf16.msra.mxu0 %v1160
    %3542 = vmatprep.subr.bf16.mxu0 %v1165
    %3543 = vmatpush1.bf16.msra.mxu0 %v1164
    %3544 = vmatprep.subr.bf16.mxu0 %v1169
    %3545 = vmatpush1.bf16.msra.mxu0 %v1168
    %3546 = vmatprep.subr.bf16.mxu0 %v1173
    %3547 = vmatpush1.bf16.msra.mxu0 %v1172
    %3548 = vmatprep.subr.bf16.mxu0 %v1177
    %3549 = vmatpush1.bf16.msra.mxu0 %v1176
    %3550 = vmatprep.subr.bf16.mxu0 0
    %3551 = vmatpush1.bf16.msra.mxu0 0
    %3552 = vmatprep.subr.bf16.mxu0 0
    %3553 = vmatpush1.bf16.msra.mxu0 0
    %3554 = vmatprep.subr.bf16.mxu0 0
    %3555 = vmatpush1.bf16.msra.mxu0 0
    %3556 = vmatprep.subr.bf16.mxu0 0
    %3557 = vmatpush1.bf16.msra.mxu0 0
    %3558 = vmatprep.subr.bf16.mxu0 0
    %3559 = vmatpush1.bf16.msra.mxu0 0
    %3560 = vmatprep.subr.bf16.mxu0 0
    %3561 = vmatpush1.bf16.msra.mxu0 0
    %3562 = vmatprep.subr.bf16.mxu0 0
    %3563 = vmatpush1.bf16.msra.mxu0 0
    %3564 = vmatprep.subr.bf16.mxu0 0
    %3565 = vmatpush1.bf16.msra.mxu0 0
    %3566 = vmatprep.mubr.bf16.mxu0 0
    %3567 = vmatmul.mubr.bf16.gmra.mrb[0].mxu0 %v3407
    %v3568 = vpop.f32.mrb[0].mxu0
    %v3569 = vadd.f32 %v3487, %v3568
    %v3570 = vpop.f32.mrb[0].mxu0
    %v3571 = vadd.f32 %v3489, %v3570
    %v3572 = vpop.f32.mrb[0].mxu0
    %v3573 = vpop.f32.mrb[0].mxu0
    %3574 = vdwg.mxu0
    %3575 = vmatprep.subr.bf16.mxu0 %v1503
    %3576 = vmatpush1.bf16.msra.mxu0 %v1502
    %3577 = vmatprep.subr.bf16.mxu0 %v1507
    %3578 = vmatpush1.bf16.msra.mxu0 %v1506
    %3579 = vmatprep.subr.bf16.mxu0 %v1511
    %3580 = vmatpush1.bf16.msra.mxu0 %v1510
    %3581 = vmatprep.subr.bf16.mxu0 %v1515
    %3582 = vmatpush1.bf16.msra.mxu0 %v1514
    %3583 = vmatprep.subr.bf16.mxu0 %v1519
    %3584 = vmatpush1.bf16.msra.mxu0 %v1518
    %3585 = vmatprep.subr.bf16.mxu0 %v1523
    %3586 = vmatpush1.bf16.msra.mxu0 %v1522
    %3587 = vmatprep.subr.bf16.mxu0 %v1527
    %3588 = vmatpush1.bf16.msra.mxu0 %v1526
    %3589 = vmatprep.subr.bf16.mxu0 %v1531
    %3590 = vmatpush1.bf16.msra.mxu0 %v1530
    %3591 = vmatprep.subr.bf16.mxu0 0
    %3592 = vmatpush1.bf16.msra.mxu0 0
    %3593 = vmatprep.subr.bf16.mxu0 0
    %3594 = vmatpush1.bf16.msra.mxu0 0
    %3595 = vmatprep.subr.bf16.mxu0 0
    %3596 = vmatpush1.bf16.msra.mxu0 0
    %3597 = vmatprep.subr.bf16.mxu0 0
    %3598 = vmatpush1.bf16.msra.mxu0 0
    %3599 = vmatprep.subr.bf16.mxu0 0
    %3600 = vmatpush1.bf16.msra.mxu0 0
    %3601 = vmatprep.subr.bf16.mxu0 0
    %3602 = vmatpush1.bf16.msra.mxu0 0
    %3603 = vmatprep.subr.bf16.mxu0 0
    %3604 = vmatpush1.bf16.msra.mxu0 0
    %3605 = vmatprep.subr.bf16.mxu0 0
    %3606 = vmatpush1.bf16.msra.mxu0 0
    %3607 = vmatprep.mubr.bf16.mxu0 0
    %3608 = vmatmul.mubr.bf16.gmra.mrb[0].mxu0 %v3407
    %v3609 = vpop.f32.mrb[0].mxu0
    %v3610 = vadd.f32 0.0, %v3609
    %v3611 = vpop.f32.mrb[0].mxu0
    %v3612 = vadd.f32 0.0, %v3611
    %v3613 = vpop.f32.mrb[0].mxu0
    %v3614 = vpop.f32.mrb[0].mxu0
    %3615 = vdwg.mxu0
    %3616 = vmatprep.subr.bf16.mxu0 %v1505
    %3617 = vmatpush1.bf16.msra.mxu0 %v1504
    %3618 = vmatprep.subr.bf16.mxu0 %v1509
    %3619 = vmatpush1.bf16.msra.mxu0 %v1508
    %3620 = vmatprep.subr.bf16.mxu0 %v1513
    %3621 = vmatpush1.bf16.msra.mxu0 %v1512
    %3622 = vmatprep.subr.bf16.mxu0 %v1517
    %3623 = vmatpush1.bf16.msra.mxu0 %v1516
    %3624 = vmatprep.subr.bf16.mxu0 %v1521
    %3625 = vmatpush1.bf16.msra.mxu0 %v1520
    %3626 = vmatprep.subr.bf16.mxu0 %v1525
    %3627 = vmatpush1.bf16.msra.mxu0 %v1524
    %3628 = vmatprep.subr.bf16.mxu0 %v1529
    %3629 = vmatpush1.bf16.msra.mxu0 %v1528
    %3630 = vmatprep.subr.bf16.mxu0 %v1533
    %3631 = vmatpush1.bf16.msra.mxu0 %v1532
    %3632 = vmatprep.subr.bf16.mxu0 0
    %3633 = vmatpush1.bf16.msra.mxu0 0
    %3634 = vmatprep.subr.bf16.mxu0 0
    %3635 = vmatpush1.bf16.msra.mxu0 0
    %3636 = vmatprep.subr.bf16.mxu0 0
    %3637 = vmatpush1.bf16.msra.mxu0 0
    %3638 = vmatprep.subr.bf16.mxu0 0
    %3639 = vmatpush1.bf16.msra.mxu0 0
    %3640 = vmatprep.subr.bf16.mxu0 0
    %3641 = vmatpush1.bf16.msra.mxu0 0
    %3642 = vmatprep.subr.bf16.mxu0 0
    %3643 = vmatpush1.bf16.msra.mxu0 0
    %3644 = vmatprep.subr.bf16.mxu0 0
    %3645 = vmatpush1.bf16.msra.mxu0 0
    %3646 = vmatprep.subr.bf16.mxu0 0
    %3647 = vmatpush1.bf16.msra.mxu0 0
    %3648 = vmatprep.mubr.bf16.mxu0 0
    %3649 = vmatmul.mubr.bf16.gmra.mrb[0].mxu0 %v3407
    %v3650 = vpop.f32.mrb[0].mxu0
    %v3651 = vadd.f32 0.0, %v3650
    %v3652 = vpop.f32.mrb[0].mxu0
    %v3653 = vadd.f32 0.0, %v3652
    %v3654 = vpop.f32.mrb[0].mxu0
    %v3655 = vpop.f32.mrb[0].mxu0
    %3656 = vdwg.mxu0
    %v3657 = vadd.f32 %v3528, %v3610
    %v3658 = vadd.f32 %v3530, %v3612
    %v3659 = vadd.f32 %v3569, %v3651
    %v3660 = vadd.f32 %v3571, %v3653
    %v3661 = vadd.f32 %v3403, %v3657
    %v3662 = vadd.f32 %v3404, %v3658
    %v3663 = vadd.f32 %v3405, %v3659
    %v3664 = vadd.f32 %v3406, %v3660
    %v3665 = vxor.u32 %v3661, 2147483648
    %v3666 = vxor.u32 %v3662, 2147483648
    %v3667 = vxor.u32 %v3663, 2147483648
    %v3668 = vmul.f32 %v3665, 1.442695
    %v3669 = vpow.pop %v3668
    %v3670 = vmul.f32 %v3666, 1.442695
    %v3671 = vpow.pop %v3670
    %v3672 = vmul.f32 %v3667, 1.442695
    %v3673 = vpow.pop %v3672
    %v3674 = vadd.f32 %v3669, 1.0
    %v3675 = vadd.f32 %v3671, 1.0
    %v3676 = vadd.f32 %v3673, 1.0
    %v3677 = vrcp.pop %v3674
    %v3678 = vmul.f32 1.0, %v3677
    %v3679 = vrcp.pop %v3675
    %v3680 = vmul.f32 1.0, %v3679
    %v3681 = vrcp.pop %v3676
    %v3682 = vmul.f32 1.0, %v3681
    %v3683 = vtanh.pop %v3664
    %v3684 = vmul.f32 %v3680, %v3399
    %v3685 = vmul.f32 %v3678, %v3683
    %v3686 = vadd.f32 %v3684, %v3685
    %v3687 = vtanh.pop %v3686
    %v3688 = vmul.f32 %v3682, %v3687
    %v3689 = vld [vmem:[#allocation12] sm:$0xff]
    %v3690 = vld [vmem:[#allocation12 + $0x8] sm:$0xff]
    %v3691 = vld [vmem:[#allocation12 + $0x10] sm:$0xff]
    %v3692 = vld [vmem:[#allocation12 + $0x18] sm:$0xff]
    %v3693 = vld [vmem:[#allocation12 + $0x20] sm:$0xff]
    %v3694 = vld [vmem:[#allocation12 + $0x28] sm:$0xff]
    %v3695 = vld [vmem:[#allocation12 + $0x30] sm:$0xff]
    %v3696 = vld [vmem:[#allocation12 + $0x38] sm:$0xff]
    %v3697 = vld [vmem:[#allocation12 + $0x40] sm:$0xff]
    %v3698 = vld [vmem:[#allocation12 + $0x48] sm:$0xff]
    %v3699 = vld [vmem:[#allocation12 + $0x50] sm:$0xff]
    %v3700 = vld [vmem:[#allocation12 + $0x58] sm:$0xff]
    %v3701 = vld [vmem:[#allocation12 + $0x60] sm:$0xff]
    %v3702 = vld [vmem:[#allocation12 + $0x68] sm:$0xff]
    %v3703 = vld [vmem:[#allocation12 + $0x70] sm:$0xff]
    %v3704 = vld [vmem:[#allocation12 + $0x78] sm:$0xff]
    %v3705 = vld [vmem:[%s7] sm:$0x1]
    %v3707 = vlaneseq
    %v3708 = vshrl.u32 %v3707, 7
    %v3709 = vsub.s32 0, %v3708
    %v3710 = vrot.slane %v3705, %v3709
    %3712 = vmatprep.subr.mxu0 0.0
    %3713 = vmatpush1.msra.mxu0 %v3689
    %3714 = vmatprep.subr.mxu0 0.0
    %3715 = vmatpush1.msra.mxu0 %v3690
    %3716 = vmatprep.subr.mxu0 0.0
    %3717 = vmatpush1.msra.mxu0 %v3691
    %3718 = vmatprep.subr.mxu0 0.0
    %3719 = vmatpush1.msra.mxu0 %v3692
    %3720 = vmatprep.subr.mxu0 0.0
    %3721 = vmatpush1.msra.mxu0 %v3693
    %3722 = vmatprep.subr.mxu0 0.0
    %3723 = vmatpush1.msra.mxu0 %v3694
    %3724 = vmatprep.subr.mxu0 0.0
    %3725 = vmatpush1.msra.mxu0 %v3695
    %3726 = vmatprep.subr.mxu0 0.0
    %3727 = vmatpush1.msra.mxu0 %v3696
    %3728 = vmatprep.subr.mxu0 0.0
    %3729 = vmatpush1.msra.mxu0 %v3697
    %3730 = vmatprep.subr.mxu0 0.0
    %3731 = vmatpush1.msra.mxu0 %v3698
    %3732 = vmatprep.subr.mxu0 0.0
    %3733 = vmatpush1.msra.mxu0 %v3699
    %3734 = vmatprep.subr.mxu0 0.0
    %3735 = vmatpush1.msra.mxu0 %v3700
    %3736 = vmatprep.subr.mxu0 0.0
    %3737 = vmatpush1.msra.mxu0 %v3701
    %3738 = vmatprep.subr.mxu0 0.0
    %3739 = vmatpush1.msra.mxu0 %v3702
    %3740 = vmatprep.subr.mxu0 0.0
    %3741 = vmatpush1.msra.mxu0 %v3703
    %3742 = vmatprep.subr.mxu0 0.0
    %3743 = vmatpush1.msra.mxu0 %v3704
    %3744 = vmatprep.subr.mxu0 0.0
    %3745 = vmatpush1.msra.mxu0 0.0
    %3746 = vmatprep.subr.mxu0 0.0
    %3747 = vmatpush1.msra.mxu0 0.0
    %3748 = vmatprep.subr.mxu0 0.0
    %3749 = vmatpush1.msra.mxu0 0.0
    %3750 = vmatprep.subr.mxu0 0.0
    %3751 = vmatpush1.msra.mxu0 0.0
    %3752 = vmatprep.subr.mxu0 0.0
    %3753 = vmatpush1.msra.mxu0 0.0
    %3754 = vmatprep.subr.mxu0 0.0
    %3755 = vmatpush1.msra.mxu0 0.0
    %3756 = vmatprep.subr.mxu0 0.0
    %3757 = vmatpush1.msra.mxu0 0.0
    %3758 = vmatprep.subr.mxu0 0.0
    %3759 = vmatpush1.msra.mxu0 0.0
    %3760 = vmatprep.subr.mxu0 0.0
    %3761 = vmatpush1.msra.mxu0 0.0
    %3762 = vmatprep.subr.mxu0 0.0
    %3763 = vmatpush1.msra.mxu0 0.0
    %3764 = vmatprep.subr.mxu0 0.0
    %3765 = vmatpush1.msra.mxu0 0.0
    %3766 = vmatprep.subr.mxu0 0.0
    %3767 = vmatpush1.msra.mxu0 0.0
    %3768 = vmatprep.subr.mxu0 0.0
    %3769 = vmatpush1.msra.mxu0 0.0
    %3770 = vmatprep.subr.mxu0 0.0
    %3771 = vmatpush1.msra.mxu0 0.0
    %3772 = vmatprep.subr.mxu0 0.0
    %3773 = vmatpush1.msra.mxu0 0.0
    %3774 = vmatprep.subr.mxu0 0.0
    %3775 = vmatpush1.msra.mxu0 0.0
    %3776 = vmatprep.mubr.f32.mxu0 0.0
    %3777 = vmatmul.mubr.f32.gmra.mrb[0].mxu0 %v3688
    %v3778 = vpop.f32.mrb[0].mxu0
    %v3779 = vadd.f32 %v3710, %v3778
    %v3780 = vpop.f32.mrb[0].mxu0
    %3781 = vdwg.mxu0
    %3782 = vst [vmem:[#allocation14] sm:$0xff] %v3779
    // Predicated region
    $region58: #{tpu_custom_call.1} parent=1 // pred_check
      _
    $region59: #{tpu_custom_call.1} parent=1 // pred_check_branch
      %3784 = sbr.rel (0) target = $region61
    $region60: #{tpu_custom_call.1} parent=1 // pred_region
      %s3786 = ssub.s32 128, 128
      %3787 = vsyncadd [#allocation5], %s3786
      %s3789 = sshll.u32 [#allocation14], 4
      %s3790 = int_to_ptr.vmem [resolvable:$true] %s3789
      %3792 = dma.vmem_to_hbm [thread:$0]  %s3790, 128, %s8, [#allocation5]
    $region61: #{tpu_custom_call.1} parent=1 // pred_fallthru
      _
    // Predicated region
    $region62: #{tpu_custom_call.1} parent=1 // pred_check
      _
    $region63: #{tpu_custom_call.1} parent=1 // pred_check_branch
      %3794 = sbr.rel (0) target = $region65
    $region64: #{tpu_custom_call.1} parent=1 // pred_region
      %3795 = dma.done [#allocation5], 128
    $region65: #{tpu_custom_call.1} parent=1 // pred_fallthru
      _
    %3796 = vsyncpa [#allocation4], 1
    %3797 = vsyncpa [#allocation7], 1
    %3798 = vsyncpa [#allocation10], 1
    %3799 = vsyncpa [#allocation13], 1
    %3800 = vsyncpa [#allocation5], 1

</llo_original>
